<compile_context>
chip_gen: v5e
topology: v5e:2x2
jax: 0.10.0
libtpu: 0.0.40
codegen_flags: <defaults>
</compile_context>

<pallas_src>
import functools
import math

import jax
import jax.numpy as jnp
from jax.experimental import pallas as pl
from jax.experimental.pallas import tpu as pltpu


# ----------------------------------------------------------------------------
# Pallas kernel: one (batch-block, time-chunk) grid step
# ----------------------------------------------------------------------------
def semantic_lstm_kernel(hidden_size, tchunk, per_gate, exp_dtype,
                         emb_ref,        # (bblk, tchunk, E)  word embeddings
                         tmp2_ref,       # (bblk, 4H)         tag2lstm1(tags)
                         gconst_ref,     # (bblk, 4H)         tmp3*tmp4 path + fc bias
                         tagp_ref,       # (bblk, 4H)         fc_tag_{i,f,o,c}(tags)
                         w_w2l_ref,      # (E, 4H)            word2lstm
                         w_gates_ref,    # (4,2H,H) per-gate  OR (2,4H,4H) block-diag
                         w_hid_ref,      # (H, 4H)            fc_hidden_state_{i,f,o,c}
                         logit_w_ref,    # (H, Vp)            word2logit.W @ embed[:-2].T
                         logit_b_ref,    # (1, Vp)            logit bias (-1e30 on pad)
                         out_ref,        # (bblk, tchunk, Vp) log-probs
                         h_ref,          # (bblk, H) f32 scratch (carried state)
                         c_ref,          # (bblk, H) f32 scratch (carried state)
                         hbuf_ref):      # (bblk, tchunk, H) f32 scratch
    # Grid contract: axis 0 = batch blocks ("parallel"), axis 1 = time chunks
    # ("arbitrary", innermost).  h/c scratch carries state along axis 1 and is
    # reset when it wraps to 0 -- do NOT reorder the grid axes.
    H = hidden_size
    f32 = jnp.float32
    cdt = w_hid_ref.dtype                       # MXU operand dtype
    bblk = out_ref.shape[0]
    Vp = out_ref.shape[2]

    t = pl.program_id(1)

    @pl.when(t == 0)
    def _():
        h_ref[...] = jnp.zeros_like(h_ref)
        c_ref[...] = jnp.zeros_like(c_ref)

    # hoist step-invariant loads out of the unrolled time loop
    tmp2 = tmp2_ref[...]
    gconst = gconst_ref[...]
    tagp = tagp_ref[...]
    w_w2l = w_w2l_ref[...]
    w_hid = w_hid_ref[...]
    if per_gate:
        w_g = [w_gates_ref[g] for g in range(4)]
    else:
        w_a = w_gates_ref[0]
        w_b = w_gates_ref[1]

    h = h_ref[...]
    c = c_ref[...]

    # Unrolled recurrence over the tchunk steps of this chunk (static step
    # indices -> static Ref slices; h/c carried as values, written back once).
    for s in range(tchunk):
        we = emb_ref[:, s, :]                                         # (B, E)
        tmp1 = jnp.dot(we, w_w2l, preferred_element_type=f32)         # (B,4H)
        tmp12 = tmp1 * tmp2
        hidp = jnp.dot(h.astype(cdt), w_hid, preferred_element_type=f32)
        prod = hidp * tagp

        if per_gate:
            # exact per-gate matmuls: (B, 2H) @ (2H, H), no zero padding
            pre = []
            for g in range(4):
                sl = slice(g * H, (g + 1) * H)
                xg = jnp.concatenate([tmp12[:, sl], prod[:, sl]],
                                     axis=-1).astype(cdt)             # (B,2H)
                pre.append(jnp.dot(xg, w_g[g], preferred_element_type=f32)
                           + gconst[:, sl])
            i_g = jax.nn.sigmoid(pre[0])
            f_g = jax.nn.sigmoid(pre[1])
            o_g = jax.nn.sigmoid(pre[2])
            g_g = jnp.tanh(pre[3])
        else:
            # fused block-diagonal form (small / lane-unaligned H)
            preacts = (jnp.dot(tmp12.astype(cdt), w_a,
                               preferred_element_type=f32)
                       + jnp.dot(prod.astype(cdt), w_b,
                                 preferred_element_type=f32)
                       + gconst)                                      # (B,4H)
            i_g = jax.nn.sigmoid(preacts[:, 0 * H:1 * H])
            f_g = jax.nn.sigmoid(preacts[:, 1 * H:2 * H])
            o_g = jax.nn.sigmoid(preacts[:, 2 * H:3 * H])
            g_g = jnp.tanh(preacts[:, 3 * H:4 * H])

        c = f_g * c + i_g * g_g
        h = o_g * jnp.tanh(c)
        hbuf_ref[:, s, :] = h

    h_ref[...] = h
    c_ref[...] = c

    # Batched tied logits + log_softmax for the whole chunk: one lane-dense
    # (bblk*tchunk, H) @ (H, Vp) matmul and one dense (bblk, tchunk, Vp) store.
    h_all = hbuf_ref[...].reshape(bblk * tchunk, H).astype(cdt)
    logit = (jnp.dot(h_all, logit_w_ref[...], preferred_element_type=f32)
             + logit_b_ref[...])                                      # (B*tc,Vp)
    m = jnp.max(logit, axis=-1, keepdims=True)
    z = logit - m
    p = jnp.exp(z.astype(exp_dtype)).astype(f32)
    lse = jnp.log(jnp.sum(p, axis=-1, keepdims=True))
    out = (z - lse).astype(out_ref.dtype)
    out_ref[...] = out.reshape(bblk, tchunk, Vp)


# ----------------------------------------------------------------------------
# Parameter init (deterministic, xavier-normal like the PyTorch _init)
# ----------------------------------------------------------------------------
def _xavier(key, fan_in, fan_out):
    std = (2.0 / (fan_in + fan_out)) ** 0.5
    return std * jax.random.normal(key, (fan_in, fan_out), jnp.float32)


def init_params(key, vocab_size, embedding_dim, feat_size, tag_size, hidden_size):
    V, E, F, Tg, H = vocab_size, embedding_dim, feat_size, tag_size, hidden_size
    keys = jax.random.split(key, 12)
    word_embed = jax.random.normal(keys[0], (V, E), jnp.float32)
    params = {
        'hidden_size': H,
        'word_embed': word_embed,
        'embT_trunc': word_embed[:V - 2].T,                      # (E, V-2)
        'w_feat2input': _xavier(keys[1], F, E),                  # feat2input
        'w_tag2lstm1': _xavier(keys[2], Tg, 4 * H),
        'w_feat2lstm': _xavier(keys[3], F, 4 * H),
        'w_tag2lstm2': _xavier(keys[4], Tg, 4 * H),
        'w_word2lstm': _xavier(keys[5], E, 4 * H),
        'w_fc': _xavier(keys[6], 2 * H, 4 * H),                  # fc_{i,f,o,c}
        'b_fc': jnp.zeros((1, 4 * H), jnp.float32),
        'w_hid': _xavier(keys[7], H, 4 * H),                     # fc_hidden_state_*
        'w_tag': _xavier(keys[8], Tg, 4 * H),                    # fc_tag_*
        'w_both': jnp.stack([_xavier(k, H, H)
                             for k in jax.random.split(keys[9], 4)]),  # (4,H,H)
        'w_word2logit': _xavier(keys[10], H, E),                 # stored (H, E)
        'logit_bias': jnp.zeros((1, V - 2), jnp.float32),
    }
    return params


# ----------------------------------------------------------------------------
# helpers
# ----------------------------------------------------------------------------
def _round_up(x, m):
    return ((x + m - 1) // m) * m


def _nbytes(shape, dtype):
    return math.prod(shape) * jnp.dtype(dtype).itemsize


def _block_diag4(blocks):
    # blocks: (4, H, Ho) -> (4H, 4Ho) block-diagonal
    G, H, Ho = blocks.shape
    out = jnp.zeros((G * H, G * Ho), blocks.dtype)
    for g in range(G):
        out = out.at[g * H:(g + 1) * H, g * Ho:(g + 1) * Ho].set(blocks[g])
    return out


def _tpu_generation():
    try:
        kind = jax.devices()[0].device_kind.lower()
    except Exception:
        return 6
    for gen in (7, 6, 5, 4):
        if ("v%d" % gen) in kind or ("tpu%d" % gen) in kind:
            return gen
    return 6


def _vmem_capacity_bytes(gen):
    try:
        cap = getattr(pltpu.get_tpu_info(), "vmem_capacity_bytes", None)
        if cap:
            return int(cap)
    except Exception:
        pass
    return (64 << 20) if gen >= 7 else (128 << 20)


# ----------------------------------------------------------------------------
# Wrapper: glue (embedding gather, padding, invariant precompute) + pallas_call
# ----------------------------------------------------------------------------
def semantic_lstm_forward(params, feats, tags, seq,
                          compute_dtype=jnp.bfloat16,
                          out_dtype=jnp.float32):
    f32 = jnp.float32
    cdt = jnp.dtype(compute_dtype)
    odt = jnp.dtype(out_dtype)

    B, F = feats.shape
    Tg = tags.shape[1]
    L = seq.shape[1]
    T = L + 1
    V, E = params['word_embed'].shape
    H = params['hidden_size']
    Vm2 = V - 2

    gen = _tpu_generation()
    per_gate = (H % 128 == 0)                 # exact per-gate matmuls if aligned
    exp_dtype = jnp.bfloat16 if (cdt == jnp.dtype(jnp.bfloat16)
                                 and gen >= 6) else f32

    tchunk = 8
    Tp = _round_up(T, tchunk)
    Tc = Tp // tchunk
    Vp = _round_up(Vm2, 128)

    # --- gate-weight packing (step invariant) --------------------------------
    w_fc = params['w_fc']                                  # (2H, 4H)
    if per_gate:
        w_gates = jnp.stack(
            [jnp.concatenate([w_fc[0:H, g * H:(g + 1) * H],
                              params['w_both'][g]], axis=0)
             for g in range(4)])                           # (4, 2H, H)
    else:
        wbd_fc1 = _block_diag4(jnp.stack(
            [w_fc[0:H, g * H:(g + 1) * H] for g in range(4)]))       # (4H,4H)
        wbd_both = _block_diag4(params['w_both'])                    # (4H,4H)
        w_gates = jnp.stack([wbd_fc1, wbd_both])                     # (2,4H,4H)
    wbd_fc2 = _block_diag4(jnp.stack(
        [w_fc[H:2 * H, g * H:(g + 1) * H] for g in range(4)]))       # (4H,4H)

    # --- generation-aware batch-block size -----------------------------------
    Bp0 = _round_up(max(B, 8), 8)
    bblk_cap = 256 if gen >= 6 else 128          # v6e/v7x MXU likes M >= 256
    bblk = min(Bp0, bblk_cap)
    if gen >= 7 and Bp0 >= 16:
        # >= 2 batch blocks so the "parallel" axis spans both v7x TensorCores
        bblk = min(bblk, _round_up((Bp0 + 1) // 2, 8))

    w_bytes = 2 * (_nbytes((E, 4 * H), cdt) + _nbytes(w_gates.shape, cdt)
                   + _nbytes((H, 4 * H), cdt) + _nbytes((H, Vp), cdt)
                   + _nbytes((1, Vp), f32))
    vmem_cap = _vmem_capacity_bytes(gen) - (8 << 20)

    def est_bytes(bb):
        # conservative: assumes everything double-buffered (covers fallback)
        return (w_bytes
                + 2 * _nbytes((bb, tchunk, E), cdt)
                + 2 * _nbytes((bb, tchunk, Vp), odt)
                + 2 * 3 * _nbytes((bb, 4 * H), f32)
                + 2 * _nbytes((bb, H), f32)
                + _nbytes((bb, tchunk, H), f32))

    while bblk > 8 and est_bytes(bblk) > vmem_cap:
        bblk = max(8, _round_up(bblk // 2, 8))

    Bp = _round_up(Bp0, bblk)
    nb = Bp // bblk

    # --- pad inputs -----------------------------------------------------------
    feats_p = jnp.zeros((Bp, F), f32).at[:B].set(feats.astype(f32))
    tags_p = jnp.zeros((Bp, Tg), f32).at[:B].set(tags.astype(f32))
    seq_p = jnp.zeros((Bp, L), seq.dtype).at[:B].set(seq)

    # --- step-invariant precompute (one-shot XLA matmuls, f32) ----------------
    tmp2 = tags_p @ params['w_tag2lstm1']                            # (Bp,4H)
    tmp3 = feats_p @ params['w_feat2lstm']
    tmp4 = tags_p @ params['w_tag2lstm2']
    tag_proj = tags_p @ params['w_tag']                              # (Bp,4H)
    gate_const = (tmp3 * tmp4) @ wbd_fc2 + params['b_fc']            # (Bp,4H)

    # tied output projection (once); vocab padded to a lane multiple
    logit_w = params['w_word2logit'] @ params['embT_trunc']          # (H,Vm2)
    logit_w = jnp.pad(logit_w, ((0, 0), (0, Vp - Vm2)))
    logit_b = jnp.pad(params['logit_bias'], ((0, 0), (0, Vp - Vm2)),
                      constant_values=-1e30)                         # (1, Vp)

    # per-step word embedding stream in PyTorch (B, T, E) order (no transpose)
    emb0 = feats_p @ params['w_feat2input']                          # (Bp, E)
    emb_rest = params['word_embed'][seq_p]                           # (Bp,L,E)
    emb_seq = jnp.zeros((Bp, Tp, E), f32)
    emb_seq = emb_seq.at[:, 0, :].set(emb0)
    emb_seq = emb_seq.at[:, 1:T, :].set(emb_rest)

    # --- dtype policy: MXU operands in compute_dtype, elementwise math in f32 -
    emb_seq = emb_seq.astype(cdt)
    w_w2l = params['w_word2lstm'].astype(cdt)
    w_gates = w_gates.astype(cdt)
    w_hid = params['w_hid'].astype(cdt)
    logit_w = logit_w.astype(cdt)

    # --- cost estimate / VMEM budget ------------------------------------------
    gate_flops = (16 * H * H) if per_gate else (64 * H * H)
    flops = Bp * Tp * (8 * E * H + 8 * H * H + gate_flops + 2 * H * Vp)
    transcend = Bp * Tp * (Vp + 6 * H)
    bytes_acc = (Bp * Tp * (Vp * odt.itemsize + E * cdt.itemsize)
                 + nb * (w_bytes // 2) + Bp * 3 * 4 * H * 4)
    try:
        cost = pl.CostEstimate(flops=int(flops), transcendentals=int(transcend),
                               bytes_accessed=int(bytes_acc))
    except Exception:
        cost = None
    vmem_limit = int(min(max(est_bytes(bblk) + (8 << 20), 32 << 20), vmem_cap))

    # --- grid / specs / call --------------------------------------------------
    grid = (nb, Tc)
    scratch_shapes = [pltpu.VMEM((bblk, H), f32),                # h state
                      pltpu.VMEM((bblk, H), f32),                # c state
                      pltpu.VMEM((bblk, tchunk, H), f32)]        # per-chunk h's
    kernel = functools.partial(semantic_lstm_kernel, H, tchunk, per_gate,
                               exp_dtype)
    args = (emb_seq, tmp2, gate_const, tag_proj, w_w2l, w_gates, w_hid,
            logit_w, logit_b)

    def run(single_buffer_weights):
        def spec(shape, index_map, invariant):
            if invariant and single_buffer_weights:
                return pl.BlockSpec(shape, index_map,
                                    pipeline_mode=pl.Buffered(1))
            return pl.BlockSpec(shape, index_map)

        in_specs = [
            # streamed per (batch-block, time-chunk)
            pl.BlockSpec((bblk, tchunk, E), lambda b, t: (b, t, 0)),
            # step-invariant, per batch block
            spec((bblk, 4 * H), lambda b, t: (b, 0), True),      # tmp2
            spec((bblk, 4 * H), lambda b, t: (b, 0), True),      # gate_const
            spec((bblk, 4 * H), lambda b, t: (b, 0), True),      # tag_proj
            # step-invariant weights
            spec((E, 4 * H), lambda b, t: (0, 0), True),         # w_word2lstm
            spec(w_gates.shape, lambda b, t: (0, 0, 0), True),   # gate weights
            spec((H, 4 * H), lambda b, t: (0, 0), True),         # w_hid
            spec((H, Vp), lambda b, t: (0, 0), True),            # logit_w
            spec((1, Vp), lambda b, t: (0, 0), True),            # logit_b
        ]
        out_specs = pl.BlockSpec((bblk, tchunk, Vp), lambda b, t: (b, t, 0))
        return pl.pallas_call(
            kernel,
            out_shape=jax.ShapeDtypeStruct((Bp, Tp, Vp), odt),
            grid=grid,
            in_specs=in_specs,
            out_specs=out_specs,
            scratch_shapes=scratch_shapes,
            compiler_params=pltpu.CompilerParams(
                dimension_semantics=("parallel", "arbitrary"),
                vmem_limit_bytes=vmem_limit),
            cost_estimate=cost,
        )(*args)

    try:
        out_full = run(True)
    except Exception:
        # this JAX/Mosaic version rejects pl.Buffered(1) single-buffering;
        # fall back to the default double-buffered pipeline.
        out_full = run(False)

    return out_full[:B, :T, :Vm2]                                 # (B, T, V-2)


# ----------------------------------------------------------------------------
# Pure-JAX reference (mirrors the PyTorch forward in eval mode)
# ----------------------------------------------------------------------------
def reference_forward(params, feats, tags, seq):
    H = params['hidden_size']
    B = feats.shape[0]

    tmp2 = tags @ params['w_tag2lstm1']
    tmp3 = feats @ params['w_feat2lstm']
    tmp4 = tags @ params['w_tag2lstm2']
    tmp34 = tmp3 * tmp4
    tag_proj = tags @ params['w_tag']
    logit_w = params['w_word2logit'] @ params['embT_trunc']

    emb0 = feats @ params['w_feat2input']
    emb_rest = params['word_embed'][seq]
    emb_seq = jnp.concatenate([emb0[:, None, :], emb_rest], axis=1)  # (B,T,E)

    h = jnp.zeros((B, H), jnp.float32)
    c = jnp.zeros((B, H), jnp.float32)
    outs = []
    for t in range(emb_seq.shape[1]):
        we = emb_seq[:, t]
        tmp12 = (we @ params['w_word2lstm']) * tmp2
        prod = (h @ params['w_hid']) * tag_proj
        pre = []
        for g in range(4):
            sl = slice(g * H, (g + 1) * H)
            inp = (tmp12[:, sl] @ params['w_fc'][0:H, sl]
                   + tmp34[:, sl] @ params['w_fc'][H:, sl]
                   + params['b_fc'][:, sl])
            pre.append(prod[:, sl] @ params['w_both'][g] + inp)
        i = jax.nn.sigmoid(pre[0])
        f = jax.nn.sigmoid(pre[1])
        o = jax.nn.sigmoid(pre[2])
        c = f * c + i * jnp.tanh(pre[3])
        h = o * jnp.tanh(c)
        outs.append(h @ logit_w + params['logit_bias'])
    res = jnp.stack(outs, axis=1)
    return jax.nn.log_softmax(res, axis=-1)


# ----------------------------------------------------------------------------
if __name__ == "__main__":
    # small shapes consistent with the module
    B, F, Tg, E, H, V, L = 2, 24, 12, 16, 32, 32, 7   # T = L + 1 = 8 steps

    root = jax.random.PRNGKey(0)
    k_param, k_feat, k_tag, k_seq = jax.random.split(root, 4)

    params = init_params(k_param, V, E, F, Tg, H)
    feats = jax.random.normal(k_feat, (B, F), jnp.float32)
    tags = jax.random.uniform(k_tag, (B, Tg), jnp.float32)
    # tokens in [3, V) so none are bos/eos/pad (the early-break never triggers)
    seq = jax.random.randint(k_seq, (B, L), 3, V)

    ref = reference_forward(params, feats, tags, seq)

    # f32 MXU path + f32 output: tight check against the pure-JAX reference
    out_f32 = semantic_lstm_forward(params, feats, tags, seq,
                                    compute_dtype=jnp.float32,
                                    out_dtype=jnp.float32)
    out_f32 = jax.block_until_ready(out_f32)
    assert out_f32.shape == (B, L + 1, V - 2), out_f32.shape
    assert jnp.allclose(out_f32, ref, atol=2e-2, rtol=2e-2), \
        f"f32 max abs err = {jnp.max(jnp.abs(out_f32 - ref))}"

    # bf16 MXU path + bf16 output (f32 accumulation / gate math): loose check
    out_bf16 = semantic_lstm_forward(params, feats, tags, seq,
                                     compute_dtype=jnp.bfloat16,
                                     out_dtype=jnp.bfloat16)
    out_bf16 = jax.block_until_ready(out_bf16)
    assert out_bf16.shape == (B, L + 1, V - 2), out_bf16.shape
    out_bf16 = out_bf16.astype(jnp.float32)
    assert bool(jnp.all(jnp.isfinite(out_bf16)))
    assert float(jnp.max(jnp.abs(out_bf16 - ref))) < 0.3, \
        f"bf16 max abs err = {jnp.max(jnp.abs(out_bf16 - ref))}"

    print("KERNEL_OK")
</pallas_src>

<mosaic_0001>
module attributes {stable_mosaic.version = 11 : i64} {
  func.func @semantic_lstm_kernel(%arg0: i32, %arg1: i32, %arg2: memref<8x8x16xf32, #tpu.memory_space<vmem>>, %arg3: memref<8x128xf32, #tpu.memory_space<vmem>>, %arg4: memref<8x128xf32, #tpu.memory_space<vmem>>, %arg5: memref<8x128xf32, #tpu.memory_space<vmem>>, %arg6: memref<16x128xf32, #tpu.memory_space<vmem>>, %arg7: memref<2x128x128xf32, #tpu.memory_space<vmem>>, %arg8: memref<32x128xf32, #tpu.memory_space<vmem>>, %arg9: memref<32x128xf32, #tpu.memory_space<vmem>>, %arg10: memref<1x128xf32, #tpu.memory_space<vmem>>, %arg11: memref<8x8x128xf32, #tpu.memory_space<vmem>>, %arg12: memref<8x32xf32, #tpu.memory_space<vmem>>, %arg13: memref<8x32xf32, #tpu.memory_space<vmem>>, %arg14: memref<8x8x32xf32, #tpu.memory_space<vmem>>) attributes {dimension_semantics = [#tpu.dimension_semantics<parallel>, #tpu.dimension_semantics<arbitrary>], iteration_bounds = array<i64: 1, 1>, scalar_prefetch = 0 : i64, scratch_operands = 3 : i64, tpu.core_type = #tpu.core_type<tc>, window_params = [{transform_indices = @transform_0, window_bounds = array<i64: 8, 8, 16>}, {pipeline_mode = #tpu.pipeline_mode<synchronous>, transform_indices = @transform_1, window_bounds = array<i64: 8, 128>}, {pipeline_mode = #tpu.pipeline_mode<synchronous>, transform_indices = @transform_2, window_bounds = array<i64: 8, 128>}, {pipeline_mode = #tpu.pipeline_mode<synchronous>, transform_indices = @transform_3, window_bounds = array<i64: 8, 128>}, {pipeline_mode = #tpu.pipeline_mode<synchronous>, transform_indices = @transform_4, window_bounds = array<i64: 16, 128>}, {pipeline_mode = #tpu.pipeline_mode<synchronous>, transform_indices = @transform_5, window_bounds = array<i64: 2, 128, 128>}, {pipeline_mode = #tpu.pipeline_mode<synchronous>, transform_indices = @transform_6, window_bounds = array<i64: 32, 128>}, {pipeline_mode = #tpu.pipeline_mode<synchronous>, transform_indices = @transform_7, window_bounds = array<i64: 32, 128>}, {pipeline_mode = #tpu.pipeline_mode<synchronous>, transform_indices = @transform_8, window_bounds = array<i64: 1, 128>}, {transform_indices = @transform_9, window_bounds = array<i64: 8, 8, 128>}]} {
    %c0_i32 = arith.constant 0 : i32
    %0 = arith.cmpi eq, %arg1, %c0_i32 : i32
    %1 = arith.extui %0 : i1 to i32
    %c0_i32_0 = arith.constant 0 : i32
    %2 = arith.cmpi ne, %1, %c0_i32_0 : i32
    scf.if %2 {
      %cst_133 = arith.constant 0.000000e+00 : f32
      %339 = vector.broadcast %cst_133 : f32 to vector<8x32xf32>
      %c0_134 = arith.constant 0 : index
      %c0_135 = arith.constant 0 : index
      %340 = vector.load %arg12[%c0_134, %c0_135] : memref<8x32xf32, #tpu.memory_space<vmem>>, vector<8x32xf32>
      tpu.vector_store %arg12[%c0_134, %c0_135], %339 {strides = array<i32>} : memref<8x32xf32, #tpu.memory_space<vmem>>, vector<8x32xf32>,
      %cst_136 = arith.constant 0.000000e+00 : f32
      %341 = vector.broadcast %cst_136 : f32 to vector<8x32xf32>
      %c0_137 = arith.constant 0 : index
      %c0_138 = arith.constant 0 : index
      %342 = vector.load %arg13[%c0_137, %c0_138] : memref<8x32xf32, #tpu.memory_space<vmem>>, vector<8x32xf32>
      tpu.vector_store %arg13[%c0_137, %c0_138], %341 {strides = array<i32>} : memref<8x32xf32, #tpu.memory_space<vmem>>, vector<8x32xf32>,
    } else {
    }
    %c0 = arith.constant 0 : index
    %c0_1 = arith.constant 0 : index
    %3 = vector.load %arg3[%c0, %c0_1] : memref<8x128xf32, #tpu.memory_space<vmem>>, vector<8x128xf32>
    %c0_2 = arith.constant 0 : index
    %c0_3 = arith.constant 0 : index
    %4 = vector.load %arg4[%c0_2, %c0_3] : memref<8x128xf32, #tpu.memory_space<vmem>>, vector<8x128xf32>
    %c0_4 = arith.constant 0 : index
    %c0_5 = arith.constant 0 : index
    %5 = vector.load %arg5[%c0_4, %c0_5] : memref<8x128xf32, #tpu.memory_space<vmem>>, vector<8x128xf32>
    %c0_6 = arith.constant 0 : index
    %c0_7 = arith.constant 0 : index
    %6 = vector.load %arg6[%c0_6, %c0_7] : memref<16x128xf32, #tpu.memory_space<vmem>>, vector<16x128xf32>
    %c0_8 = arith.constant 0 : index
    %c0_9 = arith.constant 0 : index
    %7 = vector.load %arg8[%c0_8, %c0_9] : memref<32x128xf32, #tpu.memory_space<vmem>>, vector<32x128xf32>
    %c0_10 = arith.constant 0 : index
    %c0_11 = arith.constant 0 : index
    %c0_12 = arith.constant 0 : index
    %8 = vector.load %arg7[%c0_10, %c0_11, %c0_12] : memref<2x128x128xf32, #tpu.memory_space<vmem>>, vector<1x128x128xf32>
    %9 = vector.shape_cast %8 : vector<1x128x128xf32> to vector<128x128xf32>
    %c1 = arith.constant 1 : index
    %c0_13 = arith.constant 0 : index
    %c0_14 = arith.constant 0 : index
    %10 = vector.load %arg7[%c1, %c0_13, %c0_14] : memref<2x128x128xf32, #tpu.memory_space<vmem>>, vector<1x128x128xf32>
    %11 = vector.shape_cast %10 : vector<1x128x128xf32> to vector<128x128xf32>
    %c0_15 = arith.constant 0 : index
    %c0_16 = arith.constant 0 : index
    %12 = vector.load %arg12[%c0_15, %c0_16] : memref<8x32xf32, #tpu.memory_space<vmem>>, vector<8x32xf32>
    %c0_17 = arith.constant 0 : index
    %c0_18 = arith.constant 0 : index
    %13 = vector.load %arg13[%c0_17, %c0_18] : memref<8x32xf32, #tpu.memory_space<vmem>>, vector<8x32xf32>
    %c0_19 = arith.constant 0 : index
    %c0_20 = arith.constant 0 : index
    %c0_21 = arith.constant 0 : index
    %14 = vector.load %arg2[%c0_19, %c0_20, %c0_21] : memref<8x8x16xf32, #tpu.memory_space<vmem>>, vector<8x1x16xf32>
    %15 = vector.shape_cast %14 : vector<8x1x16xf32> to vector<8x16xf32>
    %cst = arith.constant dense<0.000000e+00> : vector<8x128xf32>
    %16 = tpu.matmul %15, %6, %cst {dimension_numbers = #tpu.dot_dimension_numbers<[1], [0], [0], [1], [0, 0, 1, 1], [], []>} : vector<8x16xf32>, vector<16x128xf32>, vector<8x128xf32> -> vector<8x128xf32>
    %17 = arith.mulf %16, %3 : vector<8x128xf32>
    %cst_22 = arith.constant dense<0.000000e+00> : vector<8x128xf32>
    %18 = tpu.matmul %12, %7, %cst_22 {dimension_numbers = #tpu.dot_dimension_numbers<[1], [0], [0], [1], [0, 0, 1, 1], [], []>} : vector<8x32xf32>, vector<32x128xf32>, vector<8x128xf32> -> vector<8x128xf32>
    %19 = arith.mulf %18, %5 : vector<8x128xf32>
    %cst_23 = arith.constant dense<0.000000e+00> : vector<8x128xf32>
    %20 = tpu.matmul %17, %9, %cst_23 {dimension_numbers = #tpu.dot_dimension_numbers<[1], [0], [0], [1], [0, 0, 1, 1], [], []>} : vector<8x128xf32>, vector<128x128xf32>, vector<8x128xf32> -> vector<8x128xf32>
    %cst_24 = arith.constant dense<0.000000e+00> : vector<8x128xf32>
    %21 = tpu.matmul %19, %11, %cst_24 {dimension_numbers = #tpu.dot_dimension_numbers<[1], [0], [0], [1], [0, 0, 1, 1], [], []>} : vector<8x128xf32>, vector<128x128xf32>, vector<8x128xf32> -> vector<8x128xf32>
    %22 = arith.addf %20, %21 : vector<8x128xf32>
    %23 = arith.addf %22, %4 : vector<8x128xf32>
    %24 = vector.extract_strided_slice %23 {offsets = [0, 0], sizes = [8, 32], strides = [1, 1]} : vector<8x128xf32> to vector<8x32xf32>
    %25 = arith.negf %24 : vector<8x32xf32>
    %26 = math.exp %25 : vector<8x32xf32>
    %cst_25 = arith.constant 1.000000e+00 : f32
    %27 = vector.broadcast %cst_25 : f32 to vector<8x32xf32>
    %28 = arith.addf %27, %26 : vector<8x32xf32>
    %29 = arith.divf %27, %28 : vector<8x32xf32>
    %30 = vector.extract_strided_slice %23 {offsets = [0, 32], sizes = [8, 32], strides = [1, 1]} : vector<8x128xf32> to vector<8x32xf32>
    %31 = arith.negf %30 : vector<8x32xf32>
    %32 = math.exp %31 : vector<8x32xf32>
    %cst_26 = arith.constant 1.000000e+00 : f32
    %33 = vector.broadcast %cst_26 : f32 to vector<8x32xf32>
    %34 = arith.addf %33, %32 : vector<8x32xf32>
    %35 = arith.divf %33, %34 : vector<8x32xf32>
    %36 = vector.extract_strided_slice %23 {offsets = [0, 64], sizes = [8, 32], strides = [1, 1]} : vector<8x128xf32> to vector<8x32xf32>
    %37 = arith.negf %36 : vector<8x32xf32>
    %38 = math.exp %37 : vector<8x32xf32>
    %cst_27 = arith.constant 1.000000e+00 : f32
    %39 = vector.broadcast %cst_27 : f32 to vector<8x32xf32>
    %40 = arith.addf %39, %38 : vector<8x32xf32>
    %41 = arith.divf %39, %40 : vector<8x32xf32>
    %42 = vector.extract_strided_slice %23 {offsets = [0, 96], sizes = [8, 32], strides = [1, 1]} : vector<8x128xf32> to vector<8x32xf32>
    %43 = math.tanh %42 : vector<8x32xf32>
    %44 = arith.mulf %35, %13 : vector<8x32xf32>
    %45 = arith.mulf %29, %43 : vector<8x32xf32>
    %46 = arith.addf %44, %45 : vector<8x32xf32>
    %47 = math.tanh %46 : vector<8x32xf32>
    %48 = arith.mulf %41, %47 : vector<8x32xf32>
    %c0_28 = arith.constant 0 : index
    %c0_29 = arith.constant 0 : index
    %c0_30 = arith.constant 0 : index
    %49 = vector.load %arg14[%c0_28, %c0_29, %c0_30] : memref<8x8x32xf32, #tpu.memory_space<vmem>>, vector<8x1x32xf32>
    %50 = vector.shape_cast %49 : vector<8x1x32xf32> to vector<8x32xf32>
    %51 = vector.shape_cast %48 : vector<8x32xf32> to vector<8x1x32xf32>
    tpu.vector_store %arg14[%c0_28, %c0_29, %c0_30], %51 {strides = array<i32>} : memref<8x8x32xf32, #tpu.memory_space<vmem>>, vector<8x1x32xf32>,
    %c0_31 = arith.constant 0 : index
    %c1_32 = arith.constant 1 : index
    %c0_33 = arith.constant 0 : index
    %52 = vector.load %arg2[%c0_31, %c1_32, %c0_33] : memref<8x8x16xf32, #tpu.memory_space<vmem>>, vector<8x1x16xf32>
    %53 = vector.shape_cast %52 : vector<8x1x16xf32> to vector<8x16xf32>
    %cst_34 = arith.constant dense<0.000000e+00> : vector<8x128xf32>
    %54 = tpu.matmul %53, %6, %cst_34 {dimension_numbers = #tpu.dot_dimension_numbers<[1], [0], [0], [1], [0, 0, 1, 1], [], []>} : vector<8x16xf32>, vector<16x128xf32>, vector<8x128xf32> -> vector<8x128xf32>
    %55 = arith.mulf %54, %3 : vector<8x128xf32>
    %cst_35 = arith.constant dense<0.000000e+00> : vector<8x128xf32>
    %56 = tpu.matmul %48, %7, %cst_35 {dimension_numbers = #tpu.dot_dimension_numbers<[1], [0], [0], [1], [0, 0, 1, 1], [], []>} : vector<8x32xf32>, vector<32x128xf32>, vector<8x128xf32> -> vector<8x128xf32>
    %57 = arith.mulf %56, %5 : vector<8x128xf32>
    %cst_36 = arith.constant dense<0.000000e+00> : vector<8x128xf32>
    %58 = tpu.matmul %55, %9, %cst_36 {dimension_numbers = #tpu.dot_dimension_numbers<[1], [0], [0], [1], [0, 0, 1, 1], [], []>} : vector<8x128xf32>, vector<128x128xf32>, vector<8x128xf32> -> vector<8x128xf32>
    %cst_37 = arith.constant dense<0.000000e+00> : vector<8x128xf32>
    %59 = tpu.matmul %57, %11, %cst_37 {dimension_numbers = #tpu.dot_dimension_numbers<[1], [0], [0], [1], [0, 0, 1, 1], [], []>} : vector<8x128xf32>, vector<128x128xf32>, vector<8x128xf32> -> vector<8x128xf32>
    %60 = arith.addf %58, %59 : vector<8x128xf32>
    %61 = arith.addf %60, %4 : vector<8x128xf32>
    %62 = vector.extract_strided_slice %61 {offsets = [0, 0], sizes = [8, 32], strides = [1, 1]} : vector<8x128xf32> to vector<8x32xf32>
    %63 = arith.negf %62 : vector<8x32xf32>
    %64 = math.exp %63 : vector<8x32xf32>
    %cst_38 = arith.constant 1.000000e+00 : f32
    %65 = vector.broadcast %cst_38 : f32 to vector<8x32xf32>
    %66 = arith.addf %65, %64 : vector<8x32xf32>
    %67 = arith.divf %65, %66 : vector<8x32xf32>
    %68 = vector.extract_strided_slice %61 {offsets = [0, 32], sizes = [8, 32], strides = [1, 1]} : vector<8x128xf32> to vector<8x32xf32>
    %69 = arith.negf %68 : vector<8x32xf32>
    %70 = math.exp %69 : vector<8x32xf32>
    %cst_39 = arith.constant 1.000000e+00 : f32
    %71 = vector.broadcast %cst_39 : f32 to vector<8x32xf32>
    %72 = arith.addf %71, %70 : vector<8x32xf32>
    %73 = arith.divf %71, %72 : vector<8x32xf32>
    %74 = vector.extract_strided_slice %61 {offsets = [0, 64], sizes = [8, 32], strides = [1, 1]} : vector<8x128xf32> to vector<8x32xf32>
    %75 = arith.negf %74 : vector<8x32xf32>
    %76 = math.exp %75 : vector<8x32xf32>
    %cst_40 = arith.constant 1.000000e+00 : f32
    %77 = vector.broadcast %cst_40 : f32 to vector<8x32xf32>
    %78 = arith.addf %77, %76 : vector<8x32xf32>
    %79 = arith.divf %77, %78 : vector<8x32xf32>
    %80 = vector.extract_strided_slice %61 {offsets = [0, 96], sizes = [8, 32], strides = [1, 1]} : vector<8x128xf32> to vector<8x32xf32>
    %81 = math.tanh %80 : vector<8x32xf32>
    %82 = arith.mulf %73, %46 : vector<8x32xf32>
    %83 = arith.mulf %67, %81 : vector<8x32xf32>
    %84 = arith.addf %82, %83 : vector<8x32xf32>
    %85 = math.tanh %84 : vector<8x32xf32>
    %86 = arith.mulf %79, %85 : vector<8x32xf32>
    %c0_41 = arith.constant 0 : index
    %c1_42 = arith.constant 1 : index
    %c0_43 = arith.constant 0 : index
    %87 = vector.load %arg14[%c0_41, %c1_42, %c0_43] : memref<8x8x32xf32, #tpu.memory_space<vmem>>, vector<8x1x32xf32>
    %88 = vector.shape_cast %87 : vector<8x1x32xf32> to vector<8x32xf32>
    %89 = vector.shape_cast %86 : vector<8x32xf32> to vector<8x1x32xf32>
    tpu.vector_store %arg14[%c0_41, %c1_42, %c0_43], %89 {strides = array<i32>} : memref<8x8x32xf32, #tpu.memory_space<vmem>>, vector<8x1x32xf32>,
    %c0_44 = arith.constant 0 : index
    %c2 = arith.constant 2 : index
    %c0_45 = arith.constant 0 : index
    %90 = vector.load %arg2[%c0_44, %c2, %c0_45] : memref<8x8x16xf32, #tpu.memory_space<vmem>>, vector<8x1x16xf32>
    %91 = vector.shape_cast %90 : vector<8x1x16xf32> to vector<8x16xf32>
    %cst_46 = arith.constant dense<0.000000e+00> : vector<8x128xf32>
    %92 = tpu.matmul %91, %6, %cst_46 {dimension_numbers = #tpu.dot_dimension_numbers<[1], [0], [0], [1], [0, 0, 1, 1], [], []>} : vector<8x16xf32>, vector<16x128xf32>, vector<8x128xf32> -> vector<8x128xf32>
    %93 = arith.mulf %92, %3 : vector<8x128xf32>
    %cst_47 = arith.constant dense<0.000000e+00> : vector<8x128xf32>
    %94 = tpu.matmul %86, %7, %cst_47 {dimension_numbers = #tpu.dot_dimension_numbers<[1], [0], [0], [1], [0, 0, 1, 1], [], []>} : vector<8x32xf32>, vector<32x128xf32>, vector<8x128xf32> -> vector<8x128xf32>
    %95 = arith.mulf %94, %5 : vector<8x128xf32>
    %cst_48 = arith.constant dense<0.000000e+00> : vector<8x128xf32>
    %96 = tpu.matmul %93, %9, %cst_48 {dimension_numbers = #tpu.dot_dimension_numbers<[1], [0], [0], [1], [0, 0, 1, 1], [], []>} : vector<8x128xf32>, vector<128x128xf32>, vector<8x128xf32> -> vector<8x128xf32>
    %cst_49 = arith.constant dense<0.000000e+00> : vector<8x128xf32>
    %97 = tpu.matmul %95, %11, %cst_49 {dimension_numbers = #tpu.dot_dimension_numbers<[1], [0], [0], [1], [0, 0, 1, 1], [], []>} : vector<8x128xf32>, vector<128x128xf32>, vector<8x128xf32> -> vector<8x128xf32>
    %98 = arith.addf %96, %97 : vector<8x128xf32>
    %99 = arith.addf %98, %4 : vector<8x128xf32>
    %100 = vector.extract_strided_slice %99 {offsets = [0, 0], sizes = [8, 32], strides = [1, 1]} : vector<8x128xf32> to vector<8x32xf32>
    %101 = arith.negf %100 : vector<8x32xf32>
    %102 = math.exp %101 : vector<8x32xf32>
    %cst_50 = arith.constant 1.000000e+00 : f32
    %103 = vector.broadcast %cst_50 : f32 to vector<8x32xf32>
    %104 = arith.addf %103, %102 : vector<8x32xf32>
    %105 = arith.divf %103, %104 : vector<8x32xf32>
    %106 = vector.extract_strided_slice %99 {offsets = [0, 32], sizes = [8, 32], strides = [1, 1]} : vector<8x128xf32> to vector<8x32xf32>
    %107 = arith.negf %106 : vector<8x32xf32>
    %108 = math.exp %107 : vector<8x32xf32>
    %cst_51 = arith.constant 1.000000e+00 : f32
    %109 = vector.broadcast %cst_51 : f32 to vector<8x32xf32>
    %110 = arith.addf %109, %108 : vector<8x32xf32>
    %111 = arith.divf %109, %110 : vector<8x32xf32>
    %112 = vector.extract_strided_slice %99 {offsets = [0, 64], sizes = [8, 32], strides = [1, 1]} : vector<8x128xf32> to vector<8x32xf32>
    %113 = arith.negf %112 : vector<8x32xf32>
    %114 = math.exp %113 : vector<8x32xf32>
    %cst_52 = arith.constant 1.000000e+00 : f32
    %115 = vector.broadcast %cst_52 : f32 to vector<8x32xf32>
    %116 = arith.addf %115, %114 : vector<8x32xf32>
    %117 = arith.divf %115, %116 : vector<8x32xf32>
    %118 = vector.extract_strided_slice %99 {offsets = [0, 96], sizes = [8, 32], strides = [1, 1]} : vector<8x128xf32> to vector<8x32xf32>
    %119 = math.tanh %118 : vector<8x32xf32>
    %120 = arith.mulf %111, %84 : vector<8x32xf32>
    %121 = arith.mulf %105, %119 : vector<8x32xf32>
    %122 = arith.addf %120, %121 : vector<8x32xf32>
    %123 = math.tanh %122 : vector<8x32xf32>
    %124 = arith.mulf %117, %123 : vector<8x32xf32>
    %c0_53 = arith.constant 0 : index
    %c2_54 = arith.constant 2 : index
    %c0_55 = arith.constant 0 : index
    %125 = vector.load %arg14[%c0_53, %c2_54, %c0_55] : memref<8x8x32xf32, #tpu.memory_space<vmem>>, vector<8x1x32xf32>
    %126 = vector.shape_cast %125 : vector<8x1x32xf32> to vector<8x32xf32>
    %127 = vector.shape_cast %124 : vector<8x32xf32> to vector<8x1x32xf32>
    tpu.vector_store %arg14[%c0_53, %c2_54, %c0_55], %127 {strides = array<i32>} : memref<8x8x32xf32, #tpu.memory_space<vmem>>, vector<8x1x32xf32>,
    %c0_56 = arith.constant 0 : index
    %c3 = arith.constant 3 : index
    %c0_57 = arith.constant 0 : index
    %128 = vector.load %arg2[%c0_56, %c3, %c0_57] : memref<8x8x16xf32, #tpu.memory_space<vmem>>, vector<8x1x16xf32>
    %129 = vector.shape_cast %128 : vector<8x1x16xf32> to vector<8x16xf32>
    %cst_58 = arith.constant dense<0.000000e+00> : vector<8x128xf32>
    %130 = tpu.matmul %129, %6, %cst_58 {dimension_numbers = #tpu.dot_dimension_numbers<[1], [0], [0], [1], [0, 0, 1, 1], [], []>} : vector<8x16xf32>, vector<16x128xf32>, vector<8x128xf32> -> vector<8x128xf32>
    %131 = arith.mulf %130, %3 : vector<8x128xf32>
    %cst_59 = arith.constant dense<0.000000e+00> : vector<8x128xf32>
    %132 = tpu.matmul %124, %7, %cst_59 {dimension_numbers = #tpu.dot_dimension_numbers<[1], [0], [0], [1], [0, 0, 1, 1], [], []>} : vector<8x32xf32>, vector<32x128xf32>, vector<8x128xf32> -> vector<8x128xf32>
    %133 = arith.mulf %132, %5 : vector<8x128xf32>
    %cst_60 = arith.constant dense<0.000000e+00> : vector<8x128xf32>
    %134 = tpu.matmul %131, %9, %cst_60 {dimension_numbers = #tpu.dot_dimension_numbers<[1], [0], [0], [1], [0, 0, 1, 1], [], []>} : vector<8x128xf32>, vector<128x128xf32>, vector<8x128xf32> -> vector<8x128xf32>
    %cst_61 = arith.constant dense<0.000000e+00> : vector<8x128xf32>
    %135 = tpu.matmul %133, %11, %cst_61 {dimension_numbers = #tpu.dot_dimension_numbers<[1], [0], [0], [1], [0, 0, 1, 1], [], []>} : vector<8x128xf32>, vector<128x128xf32>, vector<8x128xf32> -> vector<8x128xf32>
    %136 = arith.addf %134, %135 : vector<8x128xf32>
    %137 = arith.addf %136, %4 : vector<8x128xf32>
    %138 = vector.extract_strided_slice %137 {offsets = [0, 0], sizes = [8, 32], strides = [1, 1]} : vector<8x128xf32> to vector<8x32xf32>
    %139 = arith.negf %138 : vector<8x32xf32>
    %140 = math.exp %139 : vector<8x32xf32>
    %cst_62 = arith.constant 1.000000e+00 : f32
    %141 = vector.broadcast %cst_62 : f32 to vector<8x32xf32>
    %142 = arith.addf %141, %140 : vector<8x32xf32>
    %143 = arith.divf %141, %142 : vector<8x32xf32>
    %144 = vector.extract_strided_slice %137 {offsets = [0, 32], sizes = [8, 32], strides = [1, 1]} : vector<8x128xf32> to vector<8x32xf32>
    %145 = arith.negf %144 : vector<8x32xf32>
    %146 = math.exp %145 : vector<8x32xf32>
    %cst_63 = arith.constant 1.000000e+00 : f32
    %147 = vector.broadcast %cst_63 : f32 to vector<8x32xf32>
    %148 = arith.addf %147, %146 : vector<8x32xf32>
    %149 = arith.divf %147, %148 : vector<8x32xf32>
    %150 = vector.extract_strided_slice %137 {offsets = [0, 64], sizes = [8, 32], strides = [1, 1]} : vector<8x128xf32> to vector<8x32xf32>
    %151 = arith.negf %150 : vector<8x32xf32>
    %152 = math.exp %151 : vector<8x32xf32>
    %cst_64 = arith.constant 1.000000e+00 : f32
    %153 = vector.broadcast %cst_64 : f32 to vector<8x32xf32>
    %154 = arith.addf %153, %152 : vector<8x32xf32>
    %155 = arith.divf %153, %154 : vector<8x32xf32>
    %156 = vector.extract_strided_slice %137 {offsets = [0, 96], sizes = [8, 32], strides = [1, 1]} : vector<8x128xf32> to vector<8x32xf32>
    %157 = math.tanh %156 : vector<8x32xf32>
    %158 = arith.mulf %149, %122 : vector<8x32xf32>
    %159 = arith.mulf %143, %157 : vector<8x32xf32>
    %160 = arith.addf %158, %159 : vector<8x32xf32>
    %161 = math.tanh %160 : vector<8x32xf32>
    %162 = arith.mulf %155, %161 : vector<8x32xf32>
    %c0_65 = arith.constant 0 : index
    %c3_66 = arith.constant 3 : index
    %c0_67 = arith.constant 0 : index
    %163 = vector.load %arg14[%c0_65, %c3_66, %c0_67] : memref<8x8x32xf32, #tpu.memory_space<vmem>>, vector<8x1x32xf32>
    %164 = vector.shape_cast %163 : vector<8x1x32xf32> to vector<8x32xf32>
    %165 = vector.shape_cast %162 : vector<8x32xf32> to vector<8x1x32xf32>
    tpu.vector_store %arg14[%c0_65, %c3_66, %c0_67], %165 {strides = array<i32>} : memref<8x8x32xf32, #tpu.memory_space<vmem>>, vector<8x1x32xf32>,
    %c0_68 = arith.constant 0 : index
    %c4 = arith.constant 4 : index
    %c0_69 = arith.constant 0 : index
    %166 = vector.load %arg2[%c0_68, %c4, %c0_69] : memref<8x8x16xf32, #tpu.memory_space<vmem>>, vector<8x1x16xf32>
    %167 = vector.shape_cast %166 : vector<8x1x16xf32> to vector<8x16xf32>
    %cst_70 = arith.constant dense<0.000000e+00> : vector<8x128xf32>
    %168 = tpu.matmul %167, %6, %cst_70 {dimension_numbers = #tpu.dot_dimension_numbers<[1], [0], [0], [1], [0, 0, 1, 1], [], []>} : vector<8x16xf32>, vector<16x128xf32>, vector<8x128xf32> -> vector<8x128xf32>
    %169 = arith.mulf %168, %3 : vector<8x128xf32>
    %cst_71 = arith.constant dense<0.000000e+00> : vector<8x128xf32>
    %170 = tpu.matmul %162, %7, %cst_71 {dimension_numbers = #tpu.dot_dimension_numbers<[1], [0], [0], [1], [0, 0, 1, 1], [], []>} : vector<8x32xf32>, vector<32x128xf32>, vector<8x128xf32> -> vector<8x128xf32>
    %171 = arith.mulf %170, %5 : vector<8x128xf32>
    %cst_72 = arith.constant dense<0.000000e+00> : vector<8x128xf32>
    %172 = tpu.matmul %169, %9, %cst_72 {dimension_numbers = #tpu.dot_dimension_numbers<[1], [0], [0], [1], [0, 0, 1, 1], [], []>} : vector<8x128xf32>, vector<128x128xf32>, vector<8x128xf32> -> vector<8x128xf32>
    %cst_73 = arith.constant dense<0.000000e+00> : vector<8x128xf32>
    %173 = tpu.matmul %171, %11, %cst_73 {dimension_numbers = #tpu.dot_dimension_numbers<[1], [0], [0], [1], [0, 0, 1, 1], [], []>} : vector<8x128xf32>, vector<128x128xf32>, vector<8x128xf32> -> vector<8x128xf32>
    %174 = arith.addf %172, %173 : vector<8x128xf32>
    %175 = arith.addf %174, %4 : vector<8x128xf32>
    %176 = vector.extract_strided_slice %175 {offsets = [0, 0], sizes = [8, 32], strides = [1, 1]} : vector<8x128xf32> to vector<8x32xf32>
    %177 = arith.negf %176 : vector<8x32xf32>
    %178 = math.exp %177 : vector<8x32xf32>
    %cst_74 = arith.constant 1.000000e+00 : f32
    %179 = vector.broadcast %cst_74 : f32 to vector<8x32xf32>
    %180 = arith.addf %179, %178 : vector<8x32xf32>
    %181 = arith.divf %179, %180 : vector<8x32xf32>
    %182 = vector.extract_strided_slice %175 {offsets = [0, 32], sizes = [8, 32], strides = [1, 1]} : vector<8x128xf32> to vector<8x32xf32>
    %183 = arith.negf %182 : vector<8x32xf32>
    %184 = math.exp %183 : vector<8x32xf32>
    %cst_75 = arith.constant 1.000000e+00 : f32
    %185 = vector.broadcast %cst_75 : f32 to vector<8x32xf32>
    %186 = arith.addf %185, %184 : vector<8x32xf32>
    %187 = arith.divf %185, %186 : vector<8x32xf32>
    %188 = vector.extract_strided_slice %175 {offsets = [0, 64], sizes = [8, 32], strides = [1, 1]} : vector<8x128xf32> to vector<8x32xf32>
    %189 = arith.negf %188 : vector<8x32xf32>
    %190 = math.exp %189 : vector<8x32xf32>
    %cst_76 = arith.constant 1.000000e+00 : f32
    %191 = vector.broadcast %cst_76 : f32 to vector<8x32xf32>
    %192 = arith.addf %191, %190 : vector<8x32xf32>
    %193 = arith.divf %191, %192 : vector<8x32xf32>
    %194 = vector.extract_strided_slice %175 {offsets = [0, 96], sizes = [8, 32], strides = [1, 1]} : vector<8x128xf32> to vector<8x32xf32>
    %195 = math.tanh %194 : vector<8x32xf32>
    %196 = arith.mulf %187, %160 : vector<8x32xf32>
    %197 = arith.mulf %181, %195 : vector<8x32xf32>
    %198 = arith.addf %196, %197 : vector<8x32xf32>
    %199 = math.tanh %198 : vector<8x32xf32>
    %200 = arith.mulf %193, %199 : vector<8x32xf32>
    %c0_77 = arith.constant 0 : index
    %c4_78 = arith.constant 4 : index
    %c0_79 = arith.constant 0 : index
    %201 = vector.load %arg14[%c0_77, %c4_78, %c0_79] : memref<8x8x32xf32, #tpu.memory_space<vmem>>, vector<8x1x32xf32>
    %202 = vector.shape_cast %201 : vector<8x1x32xf32> to vector<8x32xf32>
    %203 = vector.shape_cast %200 : vector<8x32xf32> to vector<8x1x32xf32>
    tpu.vector_store %arg14[%c0_77, %c4_78, %c0_79], %203 {strides = array<i32>} : memref<8x8x32xf32, #tpu.memory_space<vmem>>, vector<8x1x32xf32>,
    %c0_80 = arith.constant 0 : index
    %c5 = arith.constant 5 : index
    %c0_81 = arith.constant 0 : index
    %204 = vector.load %arg2[%c0_80, %c5, %c0_81] : memref<8x8x16xf32, #tpu.memory_space<vmem>>, vector<8x1x16xf32>
    %205 = vector.shape_cast %204 : vector<8x1x16xf32> to vector<8x16xf32>
    %cst_82 = arith.constant dense<0.000000e+00> : vector<8x128xf32>
    %206 = tpu.matmul %205, %6, %cst_82 {dimension_numbers = #tpu.dot_dimension_numbers<[1], [0], [0], [1], [0, 0, 1, 1], [], []>} : vector<8x16xf32>, vector<16x128xf32>, vector<8x128xf32> -> vector<8x128xf32>
    %207 = arith.mulf %206, %3 : vector<8x128xf32>
    %cst_83 = arith.constant dense<0.000000e+00> : vector<8x128xf32>
    %208 = tpu.matmul %200, %7, %cst_83 {dimension_numbers = #tpu.dot_dimension_numbers<[1], [0], [0], [1], [0, 0, 1, 1], [], []>} : vector<8x32xf32>, vector<32x128xf32>, vector<8x128xf32> -> vector<8x128xf32>
    %209 = arith.mulf %208, %5 : vector<8x128xf32>
    %cst_84 = arith.constant dense<0.000000e+00> : vector<8x128xf32>
    %210 = tpu.matmul %207, %9, %cst_84 {dimension_numbers = #tpu.dot_dimension_numbers<[1], [0], [0], [1], [0, 0, 1, 1], [], []>} : vector<8x128xf32>, vector<128x128xf32>, vector<8x128xf32> -> vector<8x128xf32>
    %cst_85 = arith.constant dense<0.000000e+00> : vector<8x128xf32>
    %211 = tpu.matmul %209, %11, %cst_85 {dimension_numbers = #tpu.dot_dimension_numbers<[1], [0], [0], [1], [0, 0, 1, 1], [], []>} : vector<8x128xf32>, vector<128x128xf32>, vector<8x128xf32> -> vector<8x128xf32>
    %212 = arith.addf %210, %211 : vector<8x128xf32>
    %213 = arith.addf %212, %4 : vector<8x128xf32>
    %214 = vector.extract_strided_slice %213 {offsets = [0, 0], sizes = [8, 32], strides = [1, 1]} : vector<8x128xf32> to vector<8x32xf32>
    %215 = arith.negf %214 : vector<8x32xf32>
    %216 = math.exp %215 : vector<8x32xf32>
    %cst_86 = arith.constant 1.000000e+00 : f32
    %217 = vector.broadcast %cst_86 : f32 to vector<8x32xf32>
    %218 = arith.addf %217, %216 : vector<8x32xf32>
    %219 = arith.divf %217, %218 : vector<8x32xf32>
    %220 = vector.extract_strided_slice %213 {offsets = [0, 32], sizes = [8, 32], strides = [1, 1]} : vector<8x128xf32> to vector<8x32xf32>
    %221 = arith.negf %220 : vector<8x32xf32>
    %222 = math.exp %221 : vector<8x32xf32>
    %cst_87 = arith.constant 1.000000e+00 : f32
    %223 = vector.broadcast %cst_87 : f32 to vector<8x32xf32>
    %224 = arith.addf %223, %222 : vector<8x32xf32>
    %225 = arith.divf %223, %224 : vector<8x32xf32>
    %226 = vector.extract_strided_slice %213 {offsets = [0, 64], sizes = [8, 32], strides = [1, 1]} : vector<8x128xf32> to vector<8x32xf32>
    %227 = arith.negf %226 : vector<8x32xf32>
    %228 = math.exp %227 : vector<8x32xf32>
    %cst_88 = arith.constant 1.000000e+00 : f32
    %229 = vector.broadcast %cst_88 : f32 to vector<8x32xf32>
    %230 = arith.addf %229, %228 : vector<8x32xf32>
    %231 = arith.divf %229, %230 : vector<8x32xf32>
    %232 = vector.extract_strided_slice %213 {offsets = [0, 96], sizes = [8, 32], strides = [1, 1]} : vector<8x128xf32> to vector<8x32xf32>
    %233 = math.tanh %232 : vector<8x32xf32>
    %234 = arith.mulf %225, %198 : vector<8x32xf32>
    %235 = arith.mulf %219, %233 : vector<8x32xf32>
    %236 = arith.addf %234, %235 : vector<8x32xf32>
    %237 = math.tanh %236 : vector<8x32xf32>
    %238 = arith.mulf %231, %237 : vector<8x32xf32>
    %c0_89 = arith.constant 0 : index
    %c5_90 = arith.constant 5 : index
    %c0_91 = arith.constant 0 : index
    %239 = vector.load %arg14[%c0_89, %c5_90, %c0_91] : memref<8x8x32xf32, #tpu.memory_space<vmem>>, vector<8x1x32xf32>
    %240 = vector.shape_cast %239 : vector<8x1x32xf32> to vector<8x32xf32>
    %241 = vector.shape_cast %238 : vector<8x32xf32> to vector<8x1x32xf32>
    tpu.vector_store %arg14[%c0_89, %c5_90, %c0_91], %241 {strides = array<i32>} : memref<8x8x32xf32, #tpu.memory_space<vmem>>, vector<8x1x32xf32>,
    %c0_92 = arith.constant 0 : index
    %c6 = arith.constant 6 : index
    %c0_93 = arith.constant 0 : index
    %242 = vector.load %arg2[%c0_92, %c6, %c0_93] : memref<8x8x16xf32, #tpu.memory_space<vmem>>, vector<8x1x16xf32>
    %243 = vector.shape_cast %242 : vector<8x1x16xf32> to vector<8x16xf32>
    %cst_94 = arith.constant dense<0.000000e+00> : vector<8x128xf32>
    %244 = tpu.matmul %243, %6, %cst_94 {dimension_numbers = #tpu.dot_dimension_numbers<[1], [0], [0], [1], [0, 0, 1, 1], [], []>} : vector<8x16xf32>, vector<16x128xf32>, vector<8x128xf32> -> vector<8x128xf32>
    %245 = arith.mulf %244, %3 : vector<8x128xf32>
    %cst_95 = arith.constant dense<0.000000e+00> : vector<8x128xf32>
    %246 = tpu.matmul %238, %7, %cst_95 {dimension_numbers = #tpu.dot_dimension_numbers<[1], [0], [0], [1], [0, 0, 1, 1], [], []>} : vector<8x32xf32>, vector<32x128xf32>, vector<8x128xf32> -> vector<8x128xf32>
    %247 = arith.mulf %246, %5 : vector<8x128xf32>
    %cst_96 = arith.constant dense<0.000000e+00> : vector<8x128xf32>
    %248 = tpu.matmul %245, %9, %cst_96 {dimension_numbers = #tpu.dot_dimension_numbers<[1], [0], [0], [1], [0, 0, 1, 1], [], []>} : vector<8x128xf32>, vector<128x128xf32>, vector<8x128xf32> -> vector<8x128xf32>
    %cst_97 = arith.constant dense<0.000000e+00> : vector<8x128xf32>
    %249 = tpu.matmul %247, %11, %cst_97 {dimension_numbers = #tpu.dot_dimension_numbers<[1], [0], [0], [1], [0, 0, 1, 1], [], []>} : vector<8x128xf32>, vector<128x128xf32>, vector<8x128xf32> -> vector<8x128xf32>
    %250 = arith.addf %248, %249 : vector<8x128xf32>
    %251 = arith.addf %250, %4 : vector<8x128xf32>
    %252 = vector.extract_strided_slice %251 {offsets = [0, 0], sizes = [8, 32], strides = [1, 1]} : vector<8x128xf32> to vector<8x32xf32>
    %253 = arith.negf %252 : vector<8x32xf32>
    %254 = math.exp %253 : vector<8x32xf32>
    %cst_98 = arith.constant 1.000000e+00 : f32
    %255 = vector.broadcast %cst_98 : f32 to vector<8x32xf32>
    %256 = arith.addf %255, %254 : vector<8x32xf32>
    %257 = arith.divf %255, %256 : vector<8x32xf32>
    %258 = vector.extract_strided_slice %251 {offsets = [0, 32], sizes = [8, 32], strides = [1, 1]} : vector<8x128xf32> to vector<8x32xf32>
    %259 = arith.negf %258 : vector<8x32xf32>
    %260 = math.exp %259 : vector<8x32xf32>
    %cst_99 = arith.constant 1.000000e+00 : f32
    %261 = vector.broadcast %cst_99 : f32 to vector<8x32xf32>
    %262 = arith.addf %261, %260 : vector<8x32xf32>
    %263 = arith.divf %261, %262 : vector<8x32xf32>
    %264 = vector.extract_strided_slice %251 {offsets = [0, 64], sizes = [8, 32], strides = [1, 1]} : vector<8x128xf32> to vector<8x32xf32>
    %265 = arith.negf %264 : vector<8x32xf32>
    %266 = math.exp %265 : vector<8x32xf32>
    %cst_100 = arith.constant 1.000000e+00 : f32
    %267 = vector.broadcast %cst_100 : f32 to vector<8x32xf32>
    %268 = arith.addf %267, %266 : vector<8x32xf32>
    %269 = arith.divf %267, %268 : vector<8x32xf32>
    %270 = vector.extract_strided_slice %251 {offsets = [0, 96], sizes = [8, 32], strides = [1, 1]} : vector<8x128xf32> to vector<8x32xf32>
    %271 = math.tanh %270 : vector<8x32xf32>
    %272 = arith.mulf %263, %236 : vector<8x32xf32>
    %273 = arith.mulf %257, %271 : vector<8x32xf32>
    %274 = arith.addf %272, %273 : vector<8x32xf32>
    %275 = math.tanh %274 : vector<8x32xf32>
    %276 = arith.mulf %269, %275 : vector<8x32xf32>
    %c0_101 = arith.constant 0 : index
    %c6_102 = arith.constant 6 : index
    %c0_103 = arith.constant 0 : index
    %277 = vector.load %arg14[%c0_101, %c6_102, %c0_103] : memref<8x8x32xf32, #tpu.memory_space<vmem>>, vector<8x1x32xf32>
    %278 = vector.shape_cast %277 : vector<8x1x32xf32> to vector<8x32xf32>
    %279 = vector.shape_cast %276 : vector<8x32xf32> to vector<8x1x32xf32>
    tpu.vector_store %arg14[%c0_101, %c6_102, %c0_103], %279 {strides = array<i32>} : memref<8x8x32xf32, #tpu.memory_space<vmem>>, vector<8x1x32xf32>,
    %c0_104 = arith.constant 0 : index
    %c7 = arith.constant 7 : index
    %c0_105 = arith.constant 0 : index
    %280 = vector.load %arg2[%c0_104, %c7, %c0_105] : memref<8x8x16xf32, #tpu.memory_space<vmem>>, vector<8x1x16xf32>
    %281 = vector.shape_cast %280 : vector<8x1x16xf32> to vector<8x16xf32>
    %cst_106 = arith.constant dense<0.000000e+00> : vector<8x128xf32>
    %282 = tpu.matmul %281, %6, %cst_106 {dimension_numbers = #tpu.dot_dimension_numbers<[1], [0], [0], [1], [0, 0, 1, 1], [], []>} : vector<8x16xf32>, vector<16x128xf32>, vector<8x128xf32> -> vector<8x128xf32>
    %283 = arith.mulf %282, %3 : vector<8x128xf32>
    %cst_107 = arith.constant dense<0.000000e+00> : vector<8x128xf32>
    %284 = tpu.matmul %276, %7, %cst_107 {dimension_numbers = #tpu.dot_dimension_numbers<[1], [0], [0], [1], [0, 0, 1, 1], [], []>} : vector<8x32xf32>, vector<32x128xf32>, vector<8x128xf32> -> vector<8x128xf32>
    %285 = arith.mulf %284, %5 : vector<8x128xf32>
    %cst_108 = arith.constant dense<0.000000e+00> : vector<8x128xf32>
    %286 = tpu.matmul %283, %9, %cst_108 {dimension_numbers = #tpu.dot_dimension_numbers<[1], [0], [0], [1], [0, 0, 1, 1], [], []>} : vector<8x128xf32>, vector<128x128xf32>, vector<8x128xf32> -> vector<8x128xf32>
    %cst_109 = arith.constant dense<0.000000e+00> : vector<8x128xf32>
    %287 = tpu.matmul %285, %11, %cst_109 {dimension_numbers = #tpu.dot_dimension_numbers<[1], [0], [0], [1], [0, 0, 1, 1], [], []>} : vector<8x128xf32>, vector<128x128xf32>, vector<8x128xf32> -> vector<8x128xf32>
    %288 = arith.addf %286, %287 : vector<8x128xf32>
    %289 = arith.addf %288, %4 : vector<8x128xf32>
    %290 = vector.extract_strided_slice %289 {offsets = [0, 0], sizes = [8, 32], strides = [1, 1]} : vector<8x128xf32> to vector<8x32xf32>
    %291 = arith.negf %290 : vector<8x32xf32>
    %292 = math.exp %291 : vector<8x32xf32>
    %cst_110 = arith.constant 1.000000e+00 : f32
    %293 = vector.broadcast %cst_110 : f32 to vector<8x32xf32>
    %294 = arith.addf %293, %292 : vector<8x32xf32>
    %295 = arith.divf %293, %294 : vector<8x32xf32>
    %296 = vector.extract_strided_slice %289 {offsets = [0, 32], sizes = [8, 32], strides = [1, 1]} : vector<8x128xf32> to vector<8x32xf32>
    %297 = arith.negf %296 : vector<8x32xf32>
    %298 = math.exp %297 : vector<8x32xf32>
    %cst_111 = arith.constant 1.000000e+00 : f32
    %299 = vector.broadcast %cst_111 : f32 to vector<8x32xf32>
    %300 = arith.addf %299, %298 : vector<8x32xf32>
    %301 = arith.divf %299, %300 : vector<8x32xf32>
    %302 = vector.extract_strided_slice %289 {offsets = [0, 64], sizes = [8, 32], strides = [1, 1]} : vector<8x128xf32> to vector<8x32xf32>
    %303 = arith.negf %302 : vector<8x32xf32>
    %304 = math.exp %303 : vector<8x32xf32>
    %cst_112 = arith.constant 1.000000e+00 : f32
    %305 = vector.broadcast %cst_112 : f32 to vector<8x32xf32>
    %306 = arith.addf %305, %304 : vector<8x32xf32>
    %307 = arith.divf %305, %306 : vector<8x32xf32>
    %308 = vector.extract_strided_slice %289 {offsets = [0, 96], sizes = [8, 32], strides = [1, 1]} : vector<8x128xf32> to vector<8x32xf32>
    %309 = math.tanh %308 : vector<8x32xf32>
    %310 = arith.mulf %301, %274 : vector<8x32xf32>
    %311 = arith.mulf %295, %309 : vector<8x32xf32>
    %312 = arith.addf %310, %311 : vector<8x32xf32>
    %313 = math.tanh %312 : vector<8x32xf32>
    %314 = arith.mulf %307, %313 : vector<8x32xf32>
    %c0_113 = arith.constant 0 : index
    %c7_114 = arith.constant 7 : index
    %c0_115 = arith.constant 0 : index
    %315 = vector.load %arg14[%c0_113, %c7_114, %c0_115] : memref<8x8x32xf32, #tpu.memory_space<vmem>>, vector<8x1x32xf32>
    %316 = vector.shape_cast %315 : vector<8x1x32xf32> to vector<8x32xf32>
    %317 = vector.shape_cast %314 : vector<8x32xf32> to vector<8x1x32xf32>
    tpu.vector_store %arg14[%c0_113, %c7_114, %c0_115], %317 {strides = array<i32>} : memref<8x8x32xf32, #tpu.memory_space<vmem>>, vector<8x1x32xf32>,
    %c0_116 = arith.constant 0 : index
    %c0_117 = arith.constant 0 : index
    %318 = vector.load %arg12[%c0_116, %c0_117] : memref<8x32xf32, #tpu.memory_space<vmem>>, vector<8x32xf32>
    tpu.vector_store %arg12[%c0_116, %c0_117], %314 {strides = array<i32>} : memref<8x32xf32, #tpu.memory_space<vmem>>, vector<8x32xf32>,
    %c0_118 = arith.constant 0 : index
    %c0_119 = arith.constant 0 : index
    %319 = vector.load %arg13[%c0_118, %c0_119] : memref<8x32xf32, #tpu.memory_space<vmem>>, vector<8x32xf32>
    tpu.vector_store %arg13[%c0_118, %c0_119], %312 {strides = array<i32>} : memref<8x32xf32, #tpu.memory_space<vmem>>, vector<8x32xf32>,
    %c0_120 = arith.constant 0 : index
    %c0_121 = arith.constant 0 : index
    %c0_122 = arith.constant 0 : index
    %320 = vector.load %arg14[%c0_120, %c0_121, %c0_122] : memref<8x8x32xf32, #tpu.memory_space<vmem>>, vector<8x8x32xf32>
    %321 = vector.shape_cast %320 : vector<8x8x32xf32> to vector<64x32xf32>
    %c0_123 = arith.constant 0 : index
    %c0_124 = arith.constant 0 : index
    %322 = vector.load %arg9[%c0_123, %c0_124] : memref<32x128xf32, #tpu.memory_space<vmem>>, vector<32x128xf32>
    %cst_125 = arith.constant dense<0.000000e+00> : vector<64x128xf32>
    %323 = tpu.matmul %321, %322, %cst_125 {dimension_numbers = #tpu.dot_dimension_numbers<[1], [0], [0], [1], [0, 0, 1, 1], [], []>} : vector<64x32xf32>, vector<32x128xf32>, vector<64x128xf32> -> vector<64x128xf32>
    %c0_126 = arith.constant 0 : index
    %c0_127 = arith.constant 0 : index
    %324 = vector.load %arg10[%c0_126, %c0_127] : memref<1x128xf32, #tpu.memory_space<vmem>>, vector<1x128xf32>
    %325 = vector.broadcast %324 : vector<1x128xf32> to vector<64x128xf32>
    %326 = arith.addf %323, %325 : vector<64x128xf32>
    %cst_128 = arith.constant dense<0xFF800000> : vector<64xf32>
    %327 = vector.multi_reduction <maximumf>, %326, %cst_128 [1] : vector<64x128xf32> to vector<64xf32>
    %328 = vector.shape_cast %327 : vector<64xf32> to vector<64x1xf32>
    %329 = vector.broadcast %328 : vector<64x1xf32> to vector<64x128xf32>
    %330 = arith.subf %326, %329 : vector<64x128xf32>
    %331 = math.exp %330 : vector<64x128xf32>
    %cst_129 = arith.constant dense<0.000000e+00> : vector<64xf32>
    %332 = vector.multi_reduction <add>, %331, %cst_129 [1] : vector<64x128xf32> to vector<64xf32>
    %333 = vector.shape_cast %332 : vector<64xf32> to vector<64x1xf32>
    %334 = math.log %333 : vector<64x1xf32>
    %335 = vector.broadcast %334 : vector<64x1xf32> to vector<64x128xf32>
    %336 = arith.subf %330, %335 : vector<64x128xf32>
    %337 = vector.shape_cast %336 : vector<64x128xf32> to vector<8x8x128xf32>
    %c0_130 = arith.constant 0 : index
    %c0_131 = arith.constant 0 : index
    %c0_132 = arith.constant 0 : index
    %338 = vector.load %arg11[%c0_130, %c0_131, %c0_132] : memref<8x8x128xf32, #tpu.memory_space<vmem>>, vector<8x8x128xf32>
    tpu.vector_store %arg11[%c0_130, %c0_131, %c0_132], %337 {strides = array<i32>} : memref<8x8x128xf32, #tpu.memory_space<vmem>>, vector<8x8x128xf32>,
    return
  }
  func.func @transform_0(%arg0: i32, %arg1: i32) -> (i32, i32, i32) {
    %c0_i32 = arith.constant 0 : i32
    %c0_i32_0 = arith.constant 0 : i32
    return %arg0, %arg1, %c0_i32 : i32, i32, i32
  }
  func.func @transform_1(%arg0: i32, %arg1: i32) -> (i32, i32) {
    %c0_i32 = arith.constant 0 : i32
    %c0_i32_0 = arith.constant 0 : i32
    return %arg0, %c0_i32 : i32, i32
  }
  func.func @transform_2(%arg0: i32, %arg1: i32) -> (i32, i32) {
    %c0_i32 = arith.constant 0 : i32
    %c0_i32_0 = arith.constant 0 : i32
    return %arg0, %c0_i32 : i32, i32
  }
  func.func @transform_3(%arg0: i32, %arg1: i32) -> (i32, i32) {
    %c0_i32 = arith.constant 0 : i32
    %c0_i32_0 = arith.constant 0 : i32
    return %arg0, %c0_i32 : i32, i32
  }
  func.func @transform_4(%arg0: i32, %arg1: i32) -> (i32, i32) {
    %c0_i32 = arith.constant 0 : i32
    %c0_i32_0 = arith.constant 0 : i32
    %c0_i32_1 = arith.constant 0 : i32
    return %c0_i32, %c0_i32_0 : i32, i32
  }
  func.func @transform_5(%arg0: i32, %arg1: i32) -> (i32, i32, i32) {
    %c0_i32 = arith.constant 0 : i32
    %c0_i32_0 = arith.constant 0 : i32
    %c0_i32_1 = arith.constant 0 : i32
    %c0_i32_2 = arith.constant 0 : i32
    return %c0_i32, %c0_i32_0, %c0_i32_1 : i32, i32, i32
  }
  func.func @transform_6(%arg0: i32, %arg1: i32) -> (i32, i32) {
    %c0_i32 = arith.constant 0 : i32
    %c0_i32_0 = arith.constant 0 : i32
    %c0_i32_1 = arith.constant 0 : i32
    return %c0_i32, %c0_i32_0 : i32, i32
  }
  func.func @transform_7(%arg0: i32, %arg1: i32) -> (i32, i32) {
    %c0_i32 = arith.constant 0 : i32
    %c0_i32_0 = arith.constant 0 : i32
    %c0_i32_1 = arith.constant 0 : i32
    return %c0_i32, %c0_i32_0 : i32, i32
  }
  func.func @transform_8(%arg0: i32, %arg1: i32) -> (i32, i32) {
    %c0_i32 = arith.constant 0 : i32
    %c0_i32_0 = arith.constant 0 : i32
    %c0_i32_1 = arith.constant 0 : i32
    return %c0_i32, %c0_i32_0 : i32, i32
  }
  func.func @transform_9(%arg0: i32, %arg1: i32) -> (i32, i32, i32) {
    %c0_i32 = arith.constant 0 : i32
    %c0_i32_0 = arith.constant 0 : i32
    return %arg0, %arg1, %c0_i32 : i32, i32, i32
  }
}

module attributes {stable_mosaic.version = 11 : i64} {
  func.func @semantic_lstm_kernel(%arg0: i32, %arg1: i32, %arg2: memref<8x8x16xf32, #tpu.memory_space<vmem>>, %arg3: memref<8x128xf32, #tpu.memory_space<vmem>>, %arg4: memref<8x128xf32, #tpu.memory_space<vmem>>, %arg5: memref<8x128xf32, #tpu.memory_space<vmem>>, %arg6: memref<16x128xf32, #tpu.memory_space<vmem>>, %arg7: memref<2x128x128xf32, #tpu.memory_space<vmem>>, %arg8: memref<32x128xf32, #tpu.memory_space<vmem>>, %arg9: memref<32x128xf32, #tpu.memory_space<vmem>>, %arg10: memref<1x128xf32, #tpu.memory_space<vmem>>, %arg11: memref<8x8x128xf32, #tpu.memory_space<vmem>>, %arg12: memref<8x32xf32, #tpu.memory_space<vmem>>, %arg13: memref<8x32xf32, #tpu.memory_space<vmem>>, %arg14: memref<8x8x32xf32, #tpu.memory_space<vmem>>) attributes {dimension_semantics = [#tpu.dimension_semantics<parallel>, #tpu.dimension_semantics<arbitrary>], iteration_bounds = array<i64: 1, 1>, scalar_prefetch = 0 : i64, scratch_operands = 3 : i64, tpu.core_type = #tpu.core_type<tc>, window_params = [{transform_indices = @transform_0, window_bounds = array<i64: 8, 8, 16>}, {transform_indices = @transform_1, window_bounds = array<i64: 8, 128>}, {transform_indices = @transform_2, window_bounds = array<i64: 8, 128>}, {transform_indices = @transform_3, window_bounds = array<i64: 8, 128>}, {pipeline_mode = #tpu.pipeline_mode<synchronous>, transform_indices = @transform_4, window_bounds = array<i64: 16, 128>}, {pipeline_mode = #tpu.pipeline_mode<synchronous>, transform_indices = @transform_5, window_bounds = array<i64: 2, 128, 128>}, {pipeline_mode = #tpu.pipeline_mode<synchronous>, transform_indices = @transform_6, window_bounds = array<i64: 32, 128>}, {pipeline_mode = #tpu.pipeline_mode<synchronous>, transform_indices = @transform_7, window_bounds = array<i64: 32, 128>}, {pipeline_mode = #tpu.pipeline_mode<synchronous>, transform_indices = @transform_8, window_bounds = array<i64: 1, 128>}, {transform_indices = @transform_9, window_bounds = array<i64: 8, 8, 128>}]} {
    %c0_i32 = arith.constant 0 : i32
    %0 = arith.cmpi eq, %arg1, %c0_i32 : i32
    %1 = arith.extui %0 : i1 to i32
    %c0_i32_0 = arith.constant 0 : i32
    %2 = arith.cmpi ne, %1, %c0_i32_0 : i32
    scf.if %2 {
      %cst_133 = arith.constant 0.000000e+00 : f32
      %339 = vector.broadcast %cst_133 : f32 to vector<8x32xf32>
      %c0_134 = arith.constant 0 : index
      %c0_135 = arith.constant 0 : index
      %340 = vector.load %arg12[%c0_134, %c0_135] : memref<8x32xf32, #tpu.memory_space<vmem>>, vector<8x32xf32>
      tpu.vector_store %arg12[%c0_134, %c0_135], %339 {strides = array<i32>} : memref<8x32xf32, #tpu.memory_space<vmem>>, vector<8x32xf32>,
      %cst_136 = arith.constant 0.000000e+00 : f32
      %341 = vector.broadcast %cst_136 : f32 to vector<8x32xf32>
      %c0_137 = arith.constant 0 : index
      %c0_138 = arith.constant 0 : index
      %342 = vector.load %arg13[%c0_137, %c0_138] : memref<8x32xf32, #tpu.memory_space<vmem>>, vector<8x32xf32>
      tpu.vector_store %arg13[%c0_137, %c0_138], %341 {strides = array<i32>} : memref<8x32xf32, #tpu.memory_space<vmem>>, vector<8x32xf32>,
    } else {
    }
    %c0 = arith.constant 0 : index
    %c0_1 = arith.constant 0 : index
    %3 = vector.load %arg3[%c0, %c0_1] : memref<8x128xf32, #tpu.memory_space<vmem>>, vector<8x128xf32>
    %c0_2 = arith.constant 0 : index
    %c0_3 = arith.constant 0 : index
    %4 = vector.load %arg4[%c0_2, %c0_3] : memref<8x128xf32, #tpu.memory_space<vmem>>, vector<8x128xf32>
    %c0_4 = arith.constant 0 : index
    %c0_5 = arith.constant 0 : index
    %5 = vector.load %arg5[%c0_4, %c0_5] : memref<8x128xf32, #tpu.memory_space<vmem>>, vector<8x128xf32>
    %c0_6 = arith.constant 0 : index
    %c0_7 = arith.constant 0 : index
    %6 = vector.load %arg6[%c0_6, %c0_7] : memref<16x128xf32, #tpu.memory_space<vmem>>, vector<16x128xf32>
    %c0_8 = arith.constant 0 : index
    %c0_9 = arith.constant 0 : index
    %7 = vector.load %arg8[%c0_8, %c0_9] : memref<32x128xf32, #tpu.memory_space<vmem>>, vector<32x128xf32>
    %c0_10 = arith.constant 0 : index
    %c0_11 = arith.constant 0 : index
    %c0_12 = arith.constant 0 : index
    %8 = vector.load %arg7[%c0_10, %c0_11, %c0_12] : memref<2x128x128xf32, #tpu.memory_space<vmem>>, vector<1x128x128xf32>
    %9 = vector.shape_cast %8 : vector<1x128x128xf32> to vector<128x128xf32>
    %c1 = arith.constant 1 : index
    %c0_13 = arith.constant 0 : index
    %c0_14 = arith.constant 0 : index
    %10 = vector.load %arg7[%c1, %c0_13, %c0_14] : memref<2x128x128xf32, #tpu.memory_space<vmem>>, vector<1x128x128xf32>
    %11 = vector.shape_cast %10 : vector<1x128x128xf32> to vector<128x128xf32>
    %c0_15 = arith.constant 0 : index
    %c0_16 = arith.constant 0 : index
    %12 = vector.load %arg12[%c0_15, %c0_16] : memref<8x32xf32, #tpu.memory_space<vmem>>, vector<8x32xf32>
    %c0_17 = arith.constant 0 : index
    %c0_18 = arith.constant 0 : index
    %13 = vector.load %arg13[%c0_17, %c0_18] : memref<8x32xf32, #tpu.memory_space<vmem>>, vector<8x32xf32>
    %c0_19 = arith.constant 0 : index
    %c0_20 = arith.constant 0 : index
    %c0_21 = arith.constant 0 : index
    %14 = vector.load %arg2[%c0_19, %c0_20, %c0_21] : memref<8x8x16xf32, #tpu.memory_space<vmem>>, vector<8x1x16xf32>
    %15 = vector.shape_cast %14 : vector<8x1x16xf32> to vector<8x16xf32>
    %cst = arith.constant dense<0.000000e+00> : vector<8x128xf32>
    %16 = tpu.matmul %15, %6, %cst {dimension_numbers = #tpu.dot_dimension_numbers<[1], [0], [0], [1], [0, 0, 1, 1], [], []>} : vector<8x16xf32>, vector<16x128xf32>, vector<8x128xf32> -> vector<8x128xf32>
    %17 = arith.mulf %16, %3 : vector<8x128xf32>
    %cst_22 = arith.constant dense<0.000000e+00> : vector<8x128xf32>
    %18 = tpu.matmul %12, %7, %cst_22 {dimension_numbers = #tpu.dot_dimension_numbers<[1], [0], [0], [1], [0, 0, 1, 1], [], []>} : vector<8x32xf32>, vector<32x128xf32>, vector<8x128xf32> -> vector<8x128xf32>
    %19 = arith.mulf %18, %5 : vector<8x128xf32>
    %cst_23 = arith.constant dense<0.000000e+00> : vector<8x128xf32>
    %20 = tpu.matmul %17, %9, %cst_23 {dimension_numbers = #tpu.dot_dimension_numbers<[1], [0], [0], [1], [0, 0, 1, 1], [], []>} : vector<8x128xf32>, vector<128x128xf32>, vector<8x128xf32> -> vector<8x128xf32>
    %cst_24 = arith.constant dense<0.000000e+00> : vector<8x128xf32>
    %21 = tpu.matmul %19, %11, %cst_24 {dimension_numbers = #tpu.dot_dimension_numbers<[1], [0], [0], [1], [0, 0, 1, 1], [], []>} : vector<8x128xf32>, vector<128x128xf32>, vector<8x128xf32> -> vector<8x128xf32>
    %22 = arith.addf %20, %21 : vector<8x128xf32>
    %23 = arith.addf %22, %4 : vector<8x128xf32>
    %24 = vector.extract_strided_slice %23 {offsets = [0, 0], sizes = [8, 32], strides = [1, 1]} : vector<8x128xf32> to vector<8x32xf32>
    %25 = arith.negf %24 : vector<8x32xf32>
    %26 = math.exp %25 : vector<8x32xf32>
    %cst_25 = arith.constant 1.000000e+00 : f32
    %27 = vector.broadcast %cst_25 : f32 to vector<8x32xf32>
    %28 = arith.addf %27, %26 : vector<8x32xf32>
    %29 = arith.divf %27, %28 : vector<8x32xf32>
    %30 = vector.extract_strided_slice %23 {offsets = [0, 32], sizes = [8, 32], strides = [1, 1]} : vector<8x128xf32> to vector<8x32xf32>
    %31 = arith.negf %30 : vector<8x32xf32>
    %32 = math.exp %31 : vector<8x32xf32>
    %cst_26 = arith.constant 1.000000e+00 : f32
    %33 = vector.broadcast %cst_26 : f32 to vector<8x32xf32>
    %34 = arith.addf %33, %32 : vector<8x32xf32>
    %35 = arith.divf %33, %34 : vector<8x32xf32>
    %36 = vector.extract_strided_slice %23 {offsets = [0, 64], sizes = [8, 32], strides = [1, 1]} : vector<8x128xf32> to vector<8x32xf32>
    %37 = arith.negf %36 : vector<8x32xf32>
    %38 = math.exp %37 : vector<8x32xf32>
    %cst_27 = arith.constant 1.000000e+00 : f32
    %39 = vector.broadcast %cst_27 : f32 to vector<8x32xf32>
    %40 = arith.addf %39, %38 : vector<8x32xf32>
    %41 = arith.divf %39, %40 : vector<8x32xf32>
    %42 = vector.extract_strided_slice %23 {offsets = [0, 96], sizes = [8, 32], strides = [1, 1]} : vector<8x128xf32> to vector<8x32xf32>
    %43 = math.tanh %42 : vector<8x32xf32>
    %44 = arith.mulf %35, %13 : vector<8x32xf32>
    %45 = arith.mulf %29, %43 : vector<8x32xf32>
    %46 = arith.addf %44, %45 : vector<8x32xf32>
    %47 = math.tanh %46 : vector<8x32xf32>
    %48 = arith.mulf %41, %47 : vector<8x32xf32>
    %c0_28 = arith.constant 0 : index
    %c0_29 = arith.constant 0 : index
    %c0_30 = arith.constant 0 : index
    %49 = vector.load %arg14[%c0_28, %c0_29, %c0_30] : memref<8x8x32xf32, #tpu.memory_space<vmem>>, vector<8x1x32xf32>
    %50 = vector.shape_cast %49 : vector<8x1x32xf32> to vector<8x32xf32>
    %51 = vector.shape_cast %48 : vector<8x32xf32> to vector<8x1x32xf32>
    tpu.vector_store %arg14[%c0_28, %c0_29, %c0_30], %51 {strides = array<i32>} : memref<8x8x32xf32, #tpu.memory_space<vmem>>, vector<8x1x32xf32>,
    %c0_31 = arith.constant 0 : index
    %c1_32 = arith.constant 1 : index
    %c0_33 = arith.constant 0 : index
    %52 = vector.load %arg2[%c0_31, %c1_32, %c0_33] : memref<8x8x16xf32, #tpu.memory_space<vmem>>, vector<8x1x16xf32>
    %53 = vector.shape_cast %52 : vector<8x1x16xf32> to vector<8x16xf32>
    %cst_34 = arith.constant dense<0.000000e+00> : vector<8x128xf32>
    %54 = tpu.matmul %53, %6, %cst_34 {dimension_numbers = #tpu.dot_dimension_numbers<[1], [0], [0], [1], [0, 0, 1, 1], [], []>} : vector<8x16xf32>, vector<16x128xf32>, vector<8x128xf32> -> vector<8x128xf32>
    %55 = arith.mulf %54, %3 : vector<8x128xf32>
    %cst_35 = arith.constant dense<0.000000e+00> : vector<8x128xf32>
    %56 = tpu.matmul %48, %7, %cst_35 {dimension_numbers = #tpu.dot_dimension_numbers<[1], [0], [0], [1], [0, 0, 1, 1], [], []>} : vector<8x32xf32>, vector<32x128xf32>, vector<8x128xf32> -> vector<8x128xf32>
    %57 = arith.mulf %56, %5 : vector<8x128xf32>
    %cst_36 = arith.constant dense<0.000000e+00> : vector<8x128xf32>
    %58 = tpu.matmul %55, %9, %cst_36 {dimension_numbers = #tpu.dot_dimension_numbers<[1], [0], [0], [1], [0, 0, 1, 1], [], []>} : vector<8x128xf32>, vector<128x128xf32>, vector<8x128xf32> -> vector<8x128xf32>
    %cst_37 = arith.constant dense<0.000000e+00> : vector<8x128xf32>
    %59 = tpu.matmul %57, %11, %cst_37 {dimension_numbers = #tpu.dot_dimension_numbers<[1], [0], [0], [1], [0, 0, 1, 1], [], []>} : vector<8x128xf32>, vector<128x128xf32>, vector<8x128xf32> -> vector<8x128xf32>
    %60 = arith.addf %58, %59 : vector<8x128xf32>
    %61 = arith.addf %60, %4 : vector<8x128xf32>
    %62 = vector.extract_strided_slice %61 {offsets = [0, 0], sizes = [8, 32], strides = [1, 1]} : vector<8x128xf32> to vector<8x32xf32>
    %63 = arith.negf %62 : vector<8x32xf32>
    %64 = math.exp %63 : vector<8x32xf32>
    %cst_38 = arith.constant 1.000000e+00 : f32
    %65 = vector.broadcast %cst_38 : f32 to vector<8x32xf32>
    %66 = arith.addf %65, %64 : vector<8x32xf32>
    %67 = arith.divf %65, %66 : vector<8x32xf32>
    %68 = vector.extract_strided_slice %61 {offsets = [0, 32], sizes = [8, 32], strides = [1, 1]} : vector<8x128xf32> to vector<8x32xf32>
    %69 = arith.negf %68 : vector<8x32xf32>
    %70 = math.exp %69 : vector<8x32xf32>
    %cst_39 = arith.constant 1.000000e+00 : f32
    %71 = vector.broadcast %cst_39 : f32 to vector<8x32xf32>
    %72 = arith.addf %71, %70 : vector<8x32xf32>
    %73 = arith.divf %71, %72 : vector<8x32xf32>
    %74 = vector.extract_strided_slice %61 {offsets = [0, 64], sizes = [8, 32], strides = [1, 1]} : vector<8x128xf32> to vector<8x32xf32>
    %75 = arith.negf %74 : vector<8x32xf32>
    %76 = math.exp %75 : vector<8x32xf32>
    %cst_40 = arith.constant 1.000000e+00 : f32
    %77 = vector.broadcast %cst_40 : f32 to vector<8x32xf32>
    %78 = arith.addf %77, %76 : vector<8x32xf32>
    %79 = arith.divf %77, %78 : vector<8x32xf32>
    %80 = vector.extract_strided_slice %61 {offsets = [0, 96], sizes = [8, 32], strides = [1, 1]} : vector<8x128xf32> to vector<8x32xf32>
    %81 = math.tanh %80 : vector<8x32xf32>
    %82 = arith.mulf %73, %46 : vector<8x32xf32>
    %83 = arith.mulf %67, %81 : vector<8x32xf32>
    %84 = arith.addf %82, %83 : vector<8x32xf32>
    %85 = math.tanh %84 : vector<8x32xf32>
    %86 = arith.mulf %79, %85 : vector<8x32xf32>
    %c0_41 = arith.constant 0 : index
    %c1_42 = arith.constant 1 : index
    %c0_43 = arith.constant 0 : index
    %87 = vector.load %arg14[%c0_41, %c1_42, %c0_43] : memref<8x8x32xf32, #tpu.memory_space<vmem>>, vector<8x1x32xf32>
    %88 = vector.shape_cast %87 : vector<8x1x32xf32> to vector<8x32xf32>
    %89 = vector.shape_cast %86 : vector<8x32xf32> to vector<8x1x32xf32>
    tpu.vector_store %arg14[%c0_41, %c1_42, %c0_43], %89 {strides = array<i32>} : memref<8x8x32xf32, #tpu.memory_space<vmem>>, vector<8x1x32xf32>,
    %c0_44 = arith.constant 0 : index
    %c2 = arith.constant 2 : index
    %c0_45 = arith.constant 0 : index
    %90 = vector.load %arg2[%c0_44, %c2, %c0_45] : memref<8x8x16xf32, #tpu.memory_space<vmem>>, vector<8x1x16xf32>
    %91 = vector.shape_cast %90 : vector<8x1x16xf32> to vector<8x16xf32>
    %cst_46 = arith.constant dense<0.000000e+00> : vector<8x128xf32>
    %92 = tpu.matmul %91, %6, %cst_46 {dimension_numbers = #tpu.dot_dimension_numbers<[1], [0], [0], [1], [0, 0, 1, 1], [], []>} : vector<8x16xf32>, vector<16x128xf32>, vector<8x128xf32> -> vector<8x128xf32>
    %93 = arith.mulf %92, %3 : vector<8x128xf32>
    %cst_47 = arith.constant dense<0.000000e+00> : vector<8x128xf32>
    %94 = tpu.matmul %86, %7, %cst_47 {dimension_numbers = #tpu.dot_dimension_numbers<[1], [0], [0], [1], [0, 0, 1, 1], [], []>} : vector<8x32xf32>, vector<32x128xf32>, vector<8x128xf32> -> vector<8x128xf32>
    %95 = arith.mulf %94, %5 : vector<8x128xf32>
    %cst_48 = arith.constant dense<0.000000e+00> : vector<8x128xf32>
    %96 = tpu.matmul %93, %9, %cst_48 {dimension_numbers = #tpu.dot_dimension_numbers<[1], [0], [0], [1], [0, 0, 1, 1], [], []>} : vector<8x128xf32>, vector<128x128xf32>, vector<8x128xf32> -> vector<8x128xf32>
    %cst_49 = arith.constant dense<0.000000e+00> : vector<8x128xf32>
    %97 = tpu.matmul %95, %11, %cst_49 {dimension_numbers = #tpu.dot_dimension_numbers<[1], [0], [0], [1], [0, 0, 1, 1], [], []>} : vector<8x128xf32>, vector<128x128xf32>, vector<8x128xf32> -> vector<8x128xf32>
    %98 = arith.addf %96, %97 : vector<8x128xf32>
    %99 = arith.addf %98, %4 : vector<8x128xf32>
    %100 = vector.extract_strided_slice %99 {offsets = [0, 0], sizes = [8, 32], strides = [1, 1]} : vector<8x128xf32> to vector<8x32xf32>
    %101 = arith.negf %100 : vector<8x32xf32>
    %102 = math.exp %101 : vector<8x32xf32>
    %cst_50 = arith.constant 1.000000e+00 : f32
    %103 = vector.broadcast %cst_50 : f32 to vector<8x32xf32>
    %104 = arith.addf %103, %102 : vector<8x32xf32>
    %105 = arith.divf %103, %104 : vector<8x32xf32>
    %106 = vector.extract_strided_slice %99 {offsets = [0, 32], sizes = [8, 32], strides = [1, 1]} : vector<8x128xf32> to vector<8x32xf32>
    %107 = arith.negf %106 : vector<8x32xf32>
    %108 = math.exp %107 : vector<8x32xf32>
    %cst_51 = arith.constant 1.000000e+00 : f32
    %109 = vector.broadcast %cst_51 : f32 to vector<8x32xf32>
    %110 = arith.addf %109, %108 : vector<8x32xf32>
    %111 = arith.divf %109, %110 : vector<8x32xf32>
    %112 = vector.extract_strided_slice %99 {offsets = [0, 64], sizes = [8, 32], strides = [1, 1]} : vector<8x128xf32> to vector<8x32xf32>
    %113 = arith.negf %112 : vector<8x32xf32>
    %114 = math.exp %113 : vector<8x32xf32>
    %cst_52 = arith.constant 1.000000e+00 : f32
    %115 = vector.broadcast %cst_52 : f32 to vector<8x32xf32>
    %116 = arith.addf %115, %114 : vector<8x32xf32>
    %117 = arith.divf %115, %116 : vector<8x32xf32>
    %118 = vector.extract_strided_slice %99 {offsets = [0, 96], sizes = [8, 32], strides = [1, 1]} : vector<8x128xf32> to vector<8x32xf32>
    %119 = math.tanh %118 : vector<8x32xf32>
    %120 = arith.mulf %111, %84 : vector<8x32xf32>
    %121 = arith.mulf %105, %119 : vector<8x32xf32>
    %122 = arith.addf %120, %121 : vector<8x32xf32>
    %123 = math.tanh %122 : vector<8x32xf32>
    %124 = arith.mulf %117, %123 : vector<8x32xf32>
    %c0_53 = arith.constant 0 : index
    %c2_54 = arith.constant 2 : index
    %c0_55 = arith.constant 0 : index
    %125 = vector.load %arg14[%c0_53, %c2_54, %c0_55] : memref<8x8x32xf32, #tpu.memory_space<vmem>>, vector<8x1x32xf32>
    %126 = vector.shape_cast %125 : vector<8x1x32xf32> to vector<8x32xf32>
    %127 = vector.shape_cast %124 : vector<8x32xf32> to vector<8x1x32xf32>
    tpu.vector_store %arg14[%c0_53, %c2_54, %c0_55], %127 {strides = array<i32>} : memref<8x8x32xf32, #tpu.memory_space<vmem>>, vector<8x1x32xf32>,
    %c0_56 = arith.constant 0 : index
    %c3 = arith.constant 3 : index
    %c0_57 = arith.constant 0 : index
    %128 = vector.load %arg2[%c0_56, %c3, %c0_57] : memref<8x8x16xf32, #tpu.memory_space<vmem>>, vector<8x1x16xf32>
    %129 = vector.shape_cast %128 : vector<8x1x16xf32> to vector<8x16xf32>
    %cst_58 = arith.constant dense<0.000000e+00> : vector<8x128xf32>
    %130 = tpu.matmul %129, %6, %cst_58 {dimension_numbers = #tpu.dot_dimension_numbers<[1], [0], [0], [1], [0, 0, 1, 1], [], []>} : vector<8x16xf32>, vector<16x128xf32>, vector<8x128xf32> -> vector<8x128xf32>
    %131 = arith.mulf %130, %3 : vector<8x128xf32>
    %cst_59 = arith.constant dense<0.000000e+00> : vector<8x128xf32>
    %132 = tpu.matmul %124, %7, %cst_59 {dimension_numbers = #tpu.dot_dimension_numbers<[1], [0], [0], [1], [0, 0, 1, 1], [], []>} : vector<8x32xf32>, vector<32x128xf32>, vector<8x128xf32> -> vector<8x128xf32>
    %133 = arith.mulf %132, %5 : vector<8x128xf32>
    %cst_60 = arith.constant dense<0.000000e+00> : vector<8x128xf32>
    %134 = tpu.matmul %131, %9, %cst_60 {dimension_numbers = #tpu.dot_dimension_numbers<[1], [0], [0], [1], [0, 0, 1, 1], [], []>} : vector<8x128xf32>, vector<128x128xf32>, vector<8x128xf32> -> vector<8x128xf32>
    %cst_61 = arith.constant dense<0.000000e+00> : vector<8x128xf32>
    %135 = tpu.matmul %133, %11, %cst_61 {dimension_numbers = #tpu.dot_dimension_numbers<[1], [0], [0], [1], [0, 0, 1, 1], [], []>} : vector<8x128xf32>, vector<128x128xf32>, vector<8x128xf32> -> vector<8x128xf32>
    %136 = arith.addf %134, %135 : vector<8x128xf32>
    %137 = arith.addf %136, %4 : vector<8x128xf32>
    %138 = vector.extract_strided_slice %137 {offsets = [0, 0], sizes = [8, 32], strides = [1, 1]} : vector<8x128xf32> to vector<8x32xf32>
    %139 = arith.negf %138 : vector<8x32xf32>
    %140 = math.exp %139 : vector<8x32xf32>
    %cst_62 = arith.constant 1.000000e+00 : f32
    %141 = vector.broadcast %cst_62 : f32 to vector<8x32xf32>
    %142 = arith.addf %141, %140 : vector<8x32xf32>
    %143 = arith.divf %141, %142 : vector<8x32xf32>
    %144 = vector.extract_strided_slice %137 {offsets = [0, 32], sizes = [8, 32], strides = [1, 1]} : vector<8x128xf32> to vector<8x32xf32>
    %145 = arith.negf %144 : vector<8x32xf32>
    %146 = math.exp %145 : vector<8x32xf32>
    %cst_63 = arith.constant 1.000000e+00 : f32
    %147 = vector.broadcast %cst_63 : f32 to vector<8x32xf32>
    %148 = arith.addf %147, %146 : vector<8x32xf32>
    %149 = arith.divf %147, %148 : vector<8x32xf32>
    %150 = vector.extract_strided_slice %137 {offsets = [0, 64], sizes = [8, 32], strides = [1, 1]} : vector<8x128xf32> to vector<8x32xf32>
    %151 = arith.negf %150 : vector<8x32xf32>
    %152 = math.exp %151 : vector<8x32xf32>
    %cst_64 = arith.constant 1.000000e+00 : f32
    %153 = vector.broadcast %cst_64 : f32 to vector<8x32xf32>
    %154 = arith.addf %153, %152 : vector<8x32xf32>
    %155 = arith.divf %153, %154 : vector<8x32xf32>
    %156 = vector.extract_strided_slice %137 {offsets = [0, 96], sizes = [8, 32], strides = [1, 1]} : vector<8x128xf32> to vector<8x32xf32>
    %157 = math.tanh %156 : vector<8x32xf32>
    %158 = arith.mulf %149, %122 : vector<8x32xf32>
    %159 = arith.mulf %143, %157 : vector<8x32xf32>
    %160 = arith.addf %158, %159 : vector<8x32xf32>
    %161 = math.tanh %160 : vector<8x32xf32>
    %162 = arith.mulf %155, %161 : vector<8x32xf32>
    %c0_65 = arith.constant 0 : index
    %c3_66 = arith.constant 3 : index
    %c0_67 = arith.constant 0 : index
    %163 = vector.load %arg14[%c0_65, %c3_66, %c0_67] : memref<8x8x32xf32, #tpu.memory_space<vmem>>, vector<8x1x32xf32>
    %164 = vector.shape_cast %163 : vector<8x1x32xf32> to vector<8x32xf32>
    %165 = vector.shape_cast %162 : vector<8x32xf32> to vector<8x1x32xf32>
    tpu.vector_store %arg14[%c0_65, %c3_66, %c0_67], %165 {strides = array<i32>} : memref<8x8x32xf32, #tpu.memory_space<vmem>>, vector<8x1x32xf32>,
    %c0_68 = arith.constant 0 : index
    %c4 = arith.constant 4 : index
    %c0_69 = arith.constant 0 : index
    %166 = vector.load %arg2[%c0_68, %c4, %c0_69] : memref<8x8x16xf32, #tpu.memory_space<vmem>>, vector<8x1x16xf32>
    %167 = vector.shape_cast %166 : vector<8x1x16xf32> to vector<8x16xf32>
    %cst_70 = arith.constant dense<0.000000e+00> : vector<8x128xf32>
    %168 = tpu.matmul %167, %6, %cst_70 {dimension_numbers = #tpu.dot_dimension_numbers<[1], [0], [0], [1], [0, 0, 1, 1], [], []>} : vector<8x16xf32>, vector<16x128xf32>, vector<8x128xf32> -> vector<8x128xf32>
    %169 = arith.mulf %168, %3 : vector<8x128xf32>
    %cst_71 = arith.constant dense<0.000000e+00> : vector<8x128xf32>
    %170 = tpu.matmul %162, %7, %cst_71 {dimension_numbers = #tpu.dot_dimension_numbers<[1], [0], [0], [1], [0, 0, 1, 1], [], []>} : vector<8x32xf32>, vector<32x128xf32>, vector<8x128xf32> -> vector<8x128xf32>
    %171 = arith.mulf %170, %5 : vector<8x128xf32>
    %cst_72 = arith.constant dense<0.000000e+00> : vector<8x128xf32>
    %172 = tpu.matmul %169, %9, %cst_72 {dimension_numbers = #tpu.dot_dimension_numbers<[1], [0], [0], [1], [0, 0, 1, 1], [], []>} : vector<8x128xf32>, vector<128x128xf32>, vector<8x128xf32> -> vector<8x128xf32>
    %cst_73 = arith.constant dense<0.000000e+00> : vector<8x128xf32>
    %173 = tpu.matmul %171, %11, %cst_73 {dimension_numbers = #tpu.dot_dimension_numbers<[1], [0], [0], [1], [0, 0, 1, 1], [], []>} : vector<8x128xf32>, vector<128x128xf32>, vector<8x128xf32> -> vector<8x128xf32>
    %174 = arith.addf %172, %173 : vector<8x128xf32>
    %175 = arith.addf %174, %4 : vector<8x128xf32>
    %176 = vector.extract_strided_slice %175 {offsets = [0, 0], sizes = [8, 32], strides = [1, 1]} : vector<8x128xf32> to vector<8x32xf32>
    %177 = arith.negf %176 : vector<8x32xf32>
    %178 = math.exp %177 : vector<8x32xf32>
    %cst_74 = arith.constant 1.000000e+00 : f32
    %179 = vector.broadcast %cst_74 : f32 to vector<8x32xf32>
    %180 = arith.addf %179, %178 : vector<8x32xf32>
    %181 = arith.divf %179, %180 : vector<8x32xf32>
    %182 = vector.extract_strided_slice %175 {offsets = [0, 32], sizes = [8, 32], strides = [1, 1]} : vector<8x128xf32> to vector<8x32xf32>
    %183 = arith.negf %182 : vector<8x32xf32>
    %184 = math.exp %183 : vector<8x32xf32>
    %cst_75 = arith.constant 1.000000e+00 : f32
    %185 = vector.broadcast %cst_75 : f32 to vector<8x32xf32>
    %186 = arith.addf %185, %184 : vector<8x32xf32>
    %187 = arith.divf %185, %186 : vector<8x32xf32>
    %188 = vector.extract_strided_slice %175 {offsets = [0, 64], sizes = [8, 32], strides = [1, 1]} : vector<8x128xf32> to vector<8x32xf32>
    %189 = arith.negf %188 : vector<8x32xf32>
    %190 = math.exp %189 : vector<8x32xf32>
    %cst_76 = arith.constant 1.000000e+00 : f32
    %191 = vector.broadcast %cst_76 : f32 to vector<8x32xf32>
    %192 = arith.addf %191, %190 : vector<8x32xf32>
    %193 = arith.divf %191, %192 : vector<8x32xf32>
    %194 = vector.extract_strided_slice %175 {offsets = [0, 96], sizes = [8, 32], strides = [1, 1]} : vector<8x128xf32> to vector<8x32xf32>
    %195 = math.tanh %194 : vector<8x32xf32>
    %196 = arith.mulf %187, %160 : vector<8x32xf32>
    %197 = arith.mulf %181, %195 : vector<8x32xf32>
    %198 = arith.addf %196, %197 : vector<8x32xf32>
    %199 = math.tanh %198 : vector<8x32xf32>
    %200 = arith.mulf %193, %199 : vector<8x32xf32>
    %c0_77 = arith.constant 0 : index
    %c4_78 = arith.constant 4 : index
    %c0_79 = arith.constant 0 : index
    %201 = vector.load %arg14[%c0_77, %c4_78, %c0_79] : memref<8x8x32xf32, #tpu.memory_space<vmem>>, vector<8x1x32xf32>
    %202 = vector.shape_cast %201 : vector<8x1x32xf32> to vector<8x32xf32>
    %203 = vector.shape_cast %200 : vector<8x32xf32> to vector<8x1x32xf32>
    tpu.vector_store %arg14[%c0_77, %c4_78, %c0_79], %203 {strides = array<i32>} : memref<8x8x32xf32, #tpu.memory_space<vmem>>, vector<8x1x32xf32>,
    %c0_80 = arith.constant 0 : index
    %c5 = arith.constant 5 : index
    %c0_81 = arith.constant 0 : index
    %204 = vector.load %arg2[%c0_80, %c5, %c0_81] : memref<8x8x16xf32, #tpu.memory_space<vmem>>, vector<8x1x16xf32>
    %205 = vector.shape_cast %204 : vector<8x1x16xf32> to vector<8x16xf32>
    %cst_82 = arith.constant dense<0.000000e+00> : vector<8x128xf32>
    %206 = tpu.matmul %205, %6, %cst_82 {dimension_numbers = #tpu.dot_dimension_numbers<[1], [0], [0], [1], [0, 0, 1, 1], [], []>} : vector<8x16xf32>, vector<16x128xf32>, vector<8x128xf32> -> vector<8x128xf32>
    %207 = arith.mulf %206, %3 : vector<8x128xf32>
    %cst_83 = arith.constant dense<0.000000e+00> : vector<8x128xf32>
    %208 = tpu.matmul %200, %7, %cst_83 {dimension_numbers = #tpu.dot_dimension_numbers<[1], [0], [0], [1], [0, 0, 1, 1], [], []>} : vector<8x32xf32>, vector<32x128xf32>, vector<8x128xf32> -> vector<8x128xf32>
    %209 = arith.mulf %208, %5 : vector<8x128xf32>
    %cst_84 = arith.constant dense<0.000000e+00> : vector<8x128xf32>
    %210 = tpu.matmul %207, %9, %cst_84 {dimension_numbers = #tpu.dot_dimension_numbers<[1], [0], [0], [1], [0, 0, 1, 1], [], []>} : vector<8x128xf32>, vector<128x128xf32>, vector<8x128xf32> -> vector<8x128xf32>
    %cst_85 = arith.constant dense<0.000000e+00> : vector<8x128xf32>
    %211 = tpu.matmul %209, %11, %cst_85 {dimension_numbers = #tpu.dot_dimension_numbers<[1], [0], [0], [1], [0, 0, 1, 1], [], []>} : vector<8x128xf32>, vector<128x128xf32>, vector<8x128xf32> -> vector<8x128xf32>
    %212 = arith.addf %210, %211 : vector<8x128xf32>
    %213 = arith.addf %212, %4 : vector<8x128xf32>
    %214 = vector.extract_strided_slice %213 {offsets = [0, 0], sizes = [8, 32], strides = [1, 1]} : vector<8x128xf32> to vector<8x32xf32>
    %215 = arith.negf %214 : vector<8x32xf32>
    %216 = math.exp %215 : vector<8x32xf32>
    %cst_86 = arith.constant 1.000000e+00 : f32
    %217 = vector.broadcast %cst_86 : f32 to vector<8x32xf32>
    %218 = arith.addf %217, %216 : vector<8x32xf32>
    %219 = arith.divf %217, %218 : vector<8x32xf32>
    %220 = vector.extract_strided_slice %213 {offsets = [0, 32], sizes = [8, 32], strides = [1, 1]} : vector<8x128xf32> to vector<8x32xf32>
    %221 = arith.negf %220 : vector<8x32xf32>
    %222 = math.exp %221 : vector<8x32xf32>
    %cst_87 = arith.constant 1.000000e+00 : f32
    %223 = vector.broadcast %cst_87 : f32 to vector<8x32xf32>
    %224 = arith.addf %223, %222 : vector<8x32xf32>
    %225 = arith.divf %223, %224 : vector<8x32xf32>
    %226 = vector.extract_strided_slice %213 {offsets = [0, 64], sizes = [8, 32], strides = [1, 1]} : vector<8x128xf32> to vector<8x32xf32>
    %227 = arith.negf %226 : vector<8x32xf32>
    %228 = math.exp %227 : vector<8x32xf32>
    %cst_88 = arith.constant 1.000000e+00 : f32
    %229 = vector.broadcast %cst_88 : f32 to vector<8x32xf32>
    %230 = arith.addf %229, %228 : vector<8x32xf32>
    %231 = arith.divf %229, %230 : vector<8x32xf32>
    %232 = vector.extract_strided_slice %213 {offsets = [0, 96], sizes = [8, 32], strides = [1, 1]} : vector<8x128xf32> to vector<8x32xf32>
    %233 = math.tanh %232 : vector<8x32xf32>
    %234 = arith.mulf %225, %198 : vector<8x32xf32>
    %235 = arith.mulf %219, %233 : vector<8x32xf32>
    %236 = arith.addf %234, %235 : vector<8x32xf32>
    %237 = math.tanh %236 : vector<8x32xf32>
    %238 = arith.mulf %231, %237 : vector<8x32xf32>
    %c0_89 = arith.constant 0 : index
    %c5_90 = arith.constant 5 : index
    %c0_91 = arith.constant 0 : index
    %239 = vector.load %arg14[%c0_89, %c5_90, %c0_91] : memref<8x8x32xf32, #tpu.memory_space<vmem>>, vector<8x1x32xf32>
    %240 = vector.shape_cast %239 : vector<8x1x32xf32> to vector<8x32xf32>
    %241 = vector.shape_cast %238 : vector<8x32xf32> to vector<8x1x32xf32>
    tpu.vector_store %arg14[%c0_89, %c5_90, %c0_91], %241 {strides = array<i32>} : memref<8x8x32xf32, #tpu.memory_space<vmem>>, vector<8x1x32xf32>,
    %c0_92 = arith.constant 0 : index
    %c6 = arith.constant 6 : index
    %c0_93 = arith.constant 0 : index
    %242 = vector.load %arg2[%c0_92, %c6, %c0_93] : memref<8x8x16xf32, #tpu.memory_space<vmem>>, vector<8x1x16xf32>
    %243 = vector.shape_cast %242 : vector<8x1x16xf32> to vector<8x16xf32>
    %cst_94 = arith.constant dense<0.000000e+00> : vector<8x128xf32>
    %244 = tpu.matmul %243, %6, %cst_94 {dimension_numbers = #tpu.dot_dimension_numbers<[1], [0], [0], [1], [0, 0, 1, 1], [], []>} : vector<8x16xf32>, vector<16x128xf32>, vector<8x128xf32> -> vector<8x128xf32>
    %245 = arith.mulf %244, %3 : vector<8x128xf32>
    %cst_95 = arith.constant dense<0.000000e+00> : vector<8x128xf32>
    %246 = tpu.matmul %238, %7, %cst_95 {dimension_numbers = #tpu.dot_dimension_numbers<[1], [0], [0], [1], [0, 0, 1, 1], [], []>} : vector<8x32xf32>, vector<32x128xf32>, vector<8x128xf32> -> vector<8x128xf32>
    %247 = arith.mulf %246, %5 : vector<8x128xf32>
    %cst_96 = arith.constant dense<0.000000e+00> : vector<8x128xf32>
    %248 = tpu.matmul %245, %9, %cst_96 {dimension_numbers = #tpu.dot_dimension_numbers<[1], [0], [0], [1], [0, 0, 1, 1], [], []>} : vector<8x128xf32>, vector<128x128xf32>, vector<8x128xf32> -> vector<8x128xf32>
    %cst_97 = arith.constant dense<0.000000e+00> : vector<8x128xf32>
    %249 = tpu.matmul %247, %11, %cst_97 {dimension_numbers = #tpu.dot_dimension_numbers<[1], [0], [0], [1], [0, 0, 1, 1], [], []>} : vector<8x128xf32>, vector<128x128xf32>, vector<8x128xf32> -> vector<8x128xf32>
    %250 = arith.addf %248, %249 : vector<8x128xf32>
    %251 = arith.addf %250, %4 : vector<8x128xf32>
    %252 = vector.extract_strided_slice %251 {offsets = [0, 0], sizes = [8, 32], strides = [1, 1]} : vector<8x128xf32> to vector<8x32xf32>
    %253 = arith.negf %252 : vector<8x32xf32>
    %254 = math.exp %253 : vector<8x32xf32>
    %cst_98 = arith.constant 1.000000e+00 : f32
    %255 = vector.broadcast %cst_98 : f32 to vector<8x32xf32>
    %256 = arith.addf %255, %254 : vector<8x32xf32>
    %257 = arith.divf %255, %256 : vector<8x32xf32>
    %258 = vector.extract_strided_slice %251 {offsets = [0, 32], sizes = [8, 32], strides = [1, 1]} : vector<8x128xf32> to vector<8x32xf32>
    %259 = arith.negf %258 : vector<8x32xf32>
    %260 = math.exp %259 : vector<8x32xf32>
    %cst_99 = arith.constant 1.000000e+00 : f32
    %261 = vector.broadcast %cst_99 : f32 to vector<8x32xf32>
    %262 = arith.addf %261, %260 : vector<8x32xf32>
    %263 = arith.divf %261, %262 : vector<8x32xf32>
    %264 = vector.extract_strided_slice %251 {offsets = [0, 64], sizes = [8, 32], strides = [1, 1]} : vector<8x128xf32> to vector<8x32xf32>
    %265 = arith.negf %264 : vector<8x32xf32>
    %266 = math.exp %265 : vector<8x32xf32>
    %cst_100 = arith.constant 1.000000e+00 : f32
    %267 = vector.broadcast %cst_100 : f32 to vector<8x32xf32>
    %268 = arith.addf %267, %266 : vector<8x32xf32>
    %269 = arith.divf %267, %268 : vector<8x32xf32>
    %270 = vector.extract_strided_slice %251 {offsets = [0, 96], sizes = [8, 32], strides = [1, 1]} : vector<8x128xf32> to vector<8x32xf32>
    %271 = math.tanh %270 : vector<8x32xf32>
    %272 = arith.mulf %263, %236 : vector<8x32xf32>
    %273 = arith.mulf %257, %271 : vector<8x32xf32>
    %274 = arith.addf %272, %273 : vector<8x32xf32>
    %275 = math.tanh %274 : vector<8x32xf32>
    %276 = arith.mulf %269, %275 : vector<8x32xf32>
    %c0_101 = arith.constant 0 : index
    %c6_102 = arith.constant 6 : index
    %c0_103 = arith.constant 0 : index
    %277 = vector.load %arg14[%c0_101, %c6_102, %c0_103] : memref<8x8x32xf32, #tpu.memory_space<vmem>>, vector<8x1x32xf32>
    %278 = vector.shape_cast %277 : vector<8x1x32xf32> to vector<8x32xf32>
    %279 = vector.shape_cast %276 : vector<8x32xf32> to vector<8x1x32xf32>
    tpu.vector_store %arg14[%c0_101, %c6_102, %c0_103], %279 {strides = array<i32>} : memref<8x8x32xf32, #tpu.memory_space<vmem>>, vector<8x1x32xf32>,
    %c0_104 = arith.constant 0 : index
    %c7 = arith.constant 7 : index
    %c0_105 = arith.constant 0 : index
    %280 = vector.load %arg2[%c0_104, %c7, %c0_105] : memref<8x8x16xf32, #tpu.memory_space<vmem>>, vector<8x1x16xf32>
    %281 = vector.shape_cast %280 : vector<8x1x16xf32> to vector<8x16xf32>
    %cst_106 = arith.constant dense<0.000000e+00> : vector<8x128xf32>
    %282 = tpu.matmul %281, %6, %cst_106 {dimension_numbers = #tpu.dot_dimension_numbers<[1], [0], [0], [1], [0, 0, 1, 1], [], []>} : vector<8x16xf32>, vector<16x128xf32>, vector<8x128xf32> -> vector<8x128xf32>
    %283 = arith.mulf %282, %3 : vector<8x128xf32>
    %cst_107 = arith.constant dense<0.000000e+00> : vector<8x128xf32>
    %284 = tpu.matmul %276, %7, %cst_107 {dimension_numbers = #tpu.dot_dimension_numbers<[1], [0], [0], [1], [0, 0, 1, 1], [], []>} : vector<8x32xf32>, vector<32x128xf32>, vector<8x128xf32> -> vector<8x128xf32>
    %285 = arith.mulf %284, %5 : vector<8x128xf32>
    %cst_108 = arith.constant dense<0.000000e+00> : vector<8x128xf32>
    %286 = tpu.matmul %283, %9, %cst_108 {dimension_numbers = #tpu.dot_dimension_numbers<[1], [0], [0], [1], [0, 0, 1, 1], [], []>} : vector<8x128xf32>, vector<128x128xf32>, vector<8x128xf32> -> vector<8x128xf32>
    %cst_109 = arith.constant dense<0.000000e+00> : vector<8x128xf32>
    %287 = tpu.matmul %285, %11, %cst_109 {dimension_numbers = #tpu.dot_dimension_numbers<[1], [0], [0], [1], [0, 0, 1, 1], [], []>} : vector<8x128xf32>, vector<128x128xf32>, vector<8x128xf32> -> vector<8x128xf32>
    %288 = arith.addf %286, %287 : vector<8x128xf32>
    %289 = arith.addf %288, %4 : vector<8x128xf32>
    %290 = vector.extract_strided_slice %289 {offsets = [0, 0], sizes = [8, 32], strides = [1, 1]} : vector<8x128xf32> to vector<8x32xf32>
    %291 = arith.negf %290 : vector<8x32xf32>
    %292 = math.exp %291 : vector<8x32xf32>
    %cst_110 = arith.constant 1.000000e+00 : f32
    %293 = vector.broadcast %cst_110 : f32 to vector<8x32xf32>
    %294 = arith.addf %293, %292 : vector<8x32xf32>
    %295 = arith.divf %293, %294 : vector<8x32xf32>
    %296 = vector.extract_strided_slice %289 {offsets = [0, 32], sizes = [8, 32], strides = [1, 1]} : vector<8x128xf32> to vector<8x32xf32>
    %297 = arith.negf %296 : vector<8x32xf32>
    %298 = math.exp %297 : vector<8x32xf32>
    %cst_111 = arith.constant 1.000000e+00 : f32
    %299 = vector.broadcast %cst_111 : f32 to vector<8x32xf32>
    %300 = arith.addf %299, %298 : vector<8x32xf32>
    %301 = arith.divf %299, %300 : vector<8x32xf32>
    %302 = vector.extract_strided_slice %289 {offsets = [0, 64], sizes = [8, 32], strides = [1, 1]} : vector<8x128xf32> to vector<8x32xf32>
    %303 = arith.negf %302 : vector<8x32xf32>
    %304 = math.exp %303 : vector<8x32xf32>
    %cst_112 = arith.constant 1.000000e+00 : f32
    %305 = vector.broadcast %cst_112 : f32 to vector<8x32xf32>
    %306 = arith.addf %305, %304 : vector<8x32xf32>
    %307 = arith.divf %305, %306 : vector<8x32xf32>
    %308 = vector.extract_strided_slice %289 {offsets = [0, 96], sizes = [8, 32], strides = [1, 1]} : vector<8x128xf32> to vector<8x32xf32>
    %309 = math.tanh %308 : vector<8x32xf32>
    %310 = arith.mulf %301, %274 : vector<8x32xf32>
    %311 = arith.mulf %295, %309 : vector<8x32xf32>
    %312 = arith.addf %310, %311 : vector<8x32xf32>
    %313 = math.tanh %312 : vector<8x32xf32>
    %314 = arith.mulf %307, %313 : vector<8x32xf32>
    %c0_113 = arith.constant 0 : index
    %c7_114 = arith.constant 7 : index
    %c0_115 = arith.constant 0 : index
    %315 = vector.load %arg14[%c0_113, %c7_114, %c0_115] : memref<8x8x32xf32, #tpu.memory_space<vmem>>, vector<8x1x32xf32>
    %316 = vector.shape_cast %315 : vector<8x1x32xf32> to vector<8x32xf32>
    %317 = vector.shape_cast %314 : vector<8x32xf32> to vector<8x1x32xf32>
    tpu.vector_store %arg14[%c0_113, %c7_114, %c0_115], %317 {strides = array<i32>} : memref<8x8x32xf32, #tpu.memory_space<vmem>>, vector<8x1x32xf32>,
    %c0_116 = arith.constant 0 : index
    %c0_117 = arith.constant 0 : index
    %318 = vector.load %arg12[%c0_116, %c0_117] : memref<8x32xf32, #tpu.memory_space<vmem>>, vector<8x32xf32>
    tpu.vector_store %arg12[%c0_116, %c0_117], %314 {strides = array<i32>} : memref<8x32xf32, #tpu.memory_space<vmem>>, vector<8x32xf32>,
    %c0_118 = arith.constant 0 : index
    %c0_119 = arith.constant 0 : index
    %319 = vector.load %arg13[%c0_118, %c0_119] : memref<8x32xf32, #tpu.memory_space<vmem>>, vector<8x32xf32>
    tpu.vector_store %arg13[%c0_118, %c0_119], %312 {strides = array<i32>} : memref<8x32xf32, #tpu.memory_space<vmem>>, vector<8x32xf32>,
    %c0_120 = arith.constant 0 : index
    %c0_121 = arith.constant 0 : index
    %c0_122 = arith.constant 0 : index
    %320 = vector.load %arg14[%c0_120, %c0_121, %c0_122] : memref<8x8x32xf32, #tpu.memory_space<vmem>>, vector<8x8x32xf32>
    %321 = vector.shape_cast %320 : vector<8x8x32xf32> to vector<64x32xf32>
    %c0_123 = arith.constant 0 : index
    %c0_124 = arith.constant 0 : index
    %322 = vector.load %arg9[%c0_123, %c0_124] : memref<32x128xf32, #tpu.memory_space<vmem>>, vector<32x128xf32>
    %cst_125 = arith.constant dense<0.000000e+00> : vector<64x128xf32>
    %323 = tpu.matmul %321, %322, %cst_125 {dimension_numbers = #tpu.dot_dimension_numbers<[1], [0], [0], [1], [0, 0, 1, 1], [], []>} : vector<64x32xf32>, vector<32x128xf32>, vector<64x128xf32> -> vector<64x128xf32>
    %c0_126 = arith.constant 0 : index
    %c0_127 = arith.constant 0 : index
    %324 = vector.load %arg10[%c0_126, %c0_127] : memref<1x128xf32, #tpu.memory_space<vmem>>, vector<1x128xf32>
    %325 = vector.broadcast %324 : vector<1x128xf32> to vector<64x128xf32>
    %326 = arith.addf %323, %325 : vector<64x128xf32>
    %cst_128 = arith.constant dense<0xFF800000> : vector<64xf32>
    %327 = vector.multi_reduction <maximumf>, %326, %cst_128 [1] : vector<64x128xf32> to vector<64xf32>
    %328 = vector.shape_cast %327 : vector<64xf32> to vector<64x1xf32>
    %329 = vector.broadcast %328 : vector<64x1xf32> to vector<64x128xf32>
    %330 = arith.subf %326, %329 : vector<64x128xf32>
    %331 = math.exp %330 : vector<64x128xf32>
    %cst_129 = arith.constant dense<0.000000e+00> : vector<64xf32>
    %332 = vector.multi_reduction <add>, %331, %cst_129 [1] : vector<64x128xf32> to vector<64xf32>
    %333 = vector.shape_cast %332 : vector<64xf32> to vector<64x1xf32>
    %334 = math.log %333 : vector<64x1xf32>
    %335 = vector.broadcast %334 : vector<64x1xf32> to vector<64x128xf32>
    %336 = arith.subf %330, %335 : vector<64x128xf32>
    %337 = vector.shape_cast %336 : vector<64x128xf32> to vector<8x8x128xf32>
    %c0_130 = arith.constant 0 : index
    %c0_131 = arith.constant 0 : index
    %c0_132 = arith.constant 0 : index
    %338 = vector.load %arg11[%c0_130, %c0_131, %c0_132] : memref<8x8x128xf32, #tpu.memory_space<vmem>>, vector<8x8x128xf32>
    tpu.vector_store %arg11[%c0_130, %c0_131, %c0_132], %337 {strides = array<i32>} : memref<8x8x128xf32, #tpu.memory_space<vmem>>, vector<8x8x128xf32>,
    return
  }
  func.func @transform_0(%arg0: i32, %arg1: i32) -> (i32, i32, i32) {
    %c0_i32 = arith.constant 0 : i32
    %c0_i32_0 = arith.constant 0 : i32
    return %arg0, %arg1, %c0_i32 : i32, i32, i32
  }
  func.func @transform_1(%arg0: i32, %arg1: i32) -> (i32, i32) {
    %c0_i32 = arith.constant 0 : i32
    %c0_i32_0 = arith.constant 0 : i32
    return %arg0, %c0_i32 : i32, i32
  }
  func.func @transform_2(%arg0: i32, %arg1: i32) -> (i32, i32) {
    %c0_i32 = arith.constant 0 : i32
    %c0_i32_0 = arith.constant 0 : i32
    return %arg0, %c0_i32 : i32, i32
  }
  func.func @transform_3(%arg0: i32, %arg1: i32) -> (i32, i32) {
    %c0_i32 = arith.constant 0 : i32
    %c0_i32_0 = arith.constant 0 : i32
    return %arg0, %c0_i32 : i32, i32
  }
  func.func @transform_4(%arg0: i32, %arg1: i32) -> (i32, i32) {
    %c0_i32 = arith.constant 0 : i32
    %c0_i32_0 = arith.constant 0 : i32
    %c0_i32_1 = arith.constant 0 : i32
    return %c0_i32, %c0_i32_0 : i32, i32
  }
  func.func @transform_5(%arg0: i32, %arg1: i32) -> (i32, i32, i32) {
    %c0_i32 = arith.constant 0 : i32
    %c0_i32_0 = arith.constant 0 : i32
    %c0_i32_1 = arith.constant 0 : i32
    %c0_i32_2 = arith.constant 0 : i32
    return %c0_i32, %c0_i32_0, %c0_i32_1 : i32, i32, i32
  }
  func.func @transform_6(%arg0: i32, %arg1: i32) -> (i32, i32) {
    %c0_i32 = arith.constant 0 : i32
    %c0_i32_0 = arith.constant 0 : i32
    %c0_i32_1 = arith.constant 0 : i32
    return %c0_i32, %c0_i32_0 : i32, i32
  }
  func.func @transform_7(%arg0: i32, %arg1: i32) -> (i32, i32) {
    %c0_i32 = arith.constant 0 : i32
    %c0_i32_0 = arith.constant 0 : i32
    %c0_i32_1 = arith.constant 0 : i32
    return %c0_i32, %c0_i32_0 : i32, i32
  }
  func.func @transform_8(%arg0: i32, %arg1: i32) -> (i32, i32) {
    %c0_i32 = arith.constant 0 : i32
    %c0_i32_0 = arith.constant 0 : i32
    %c0_i32_1 = arith.constant 0 : i32
    return %c0_i32, %c0_i32_0 : i32, i32
  }
  func.func @transform_9(%arg0: i32, %arg1: i32) -> (i32, i32, i32) {
    %c0_i32 = arith.constant 0 : i32
    %c0_i32_0 = arith.constant 0 : i32
    return %arg0, %arg1, %c0_i32 : i32, i32, i32
  }
}

</mosaic_0001>

<llo_original>
// kernel: tpu_custom_call.1
$region0: #{tpu_custom_call.1}
  #allocation0 [shape = 'u32[]', space=smem, size = 0x4, offset = 0x4, fixed_abs, tag = 'smem constant byte address 0x4 - core index']
  #allocation1 [shape = 'u32[72,128]{1,0:T(1,128)}', space=vmem, size = 0x9000, scoped, tag = 'internal scratch']
  #allocation2 [shape = 'f32[8,32]{1,0:T(8,128)}', space=vmem, size = 0x1000, scoped, tag = 'scratch operand']
  #allocation3 [shape = 'f32[8,32]{1,0:T(8,128)}', space=vmem, size = 0x1000, scoped, tag = 'scratch operand']
  #allocation4 [shape = 'f32[8,8,32]{2,1,0:T(8,128)}', space=vmem, size = 0x8000, scoped, tag = 'scratch operand']
  %s0 = inlined_call_operand.hbm [shape: f32[8,8,16], index: 0, kind: input, shape index: {}]
  %s1 = inlined_call_operand.hbm [shape: f32[8,128], index: 1, kind: input, shape index: {}]
  %s2 = inlined_call_operand.hbm [shape: f32[8,128], index: 2, kind: input, shape index: {}]
  %s3 = inlined_call_operand.hbm [shape: f32[8,128], index: 3, kind: input, shape index: {}]
  %s4 = inlined_call_operand.hbm [shape: f32[16,128], index: 4, kind: input, shape index: {}]
  %s5 = inlined_call_operand.hbm [shape: f32[2,128,128], index: 5, kind: input, shape index: {}]
  %s6 = inlined_call_operand.hbm [shape: f32[32,128], index: 6, kind: input, shape index: {}]
  %s7 = inlined_call_operand.hbm [shape: f32[32,128], index: 7, kind: input, shape index: {}]
  %s8 = inlined_call_operand.vmem [shape: f32[1,128], index: 8, kind: input, shape index: {}]
  %s9 = inlined_call_operand.hbm [shape: f32[8,8,128], index: 9, kind: output, shape index: {}]
  %s10 = sld [smem:[#allocation0]]
  $region82: #{tpu_custom_call.1} parent=0
    _
  %s12 = ssub.s32 1, %s10
  %s13 = scalar_select 0, %s12, %s10
  $region1: #{tpu_custom_call.1} parent=0
    #allocation5 [shape = 'u8[32768]{0}', space=vmem, size = 0x8000, scoped, tag = 'input window, operand 0, single buffered']
    #allocation6 [shape = 's32[1]{0}', space=sflag, size = 0x4, scoped, tag = 'scoped memory for tpu_custom_call.1']
    #allocation7 [shape = 's32[1]{0}', space=sflag, size = 0x4, scoped, tag = 'scoped memory for tpu_custom_call.1']
    #allocation8 [shape = 'u8[4096]{0}', space=vmem, size = 0x1000, scoped, tag = 'input window, operand 1, single buffered']
    #allocation9 [shape = 's32[1]{0}', space=sflag, size = 0x4, scoped, tag = 'scoped memory for tpu_custom_call.1']
    #allocation10 [shape = 'u8[4096]{0}', space=vmem, size = 0x1000, scoped, tag = 'input window, operand 2, single buffered']
    #allocation11 [shape = 'u8[4096]{0}', space=vmem, size = 0x1000, scoped, tag = 'input window, operand 3, single buffered']
    #allocation12 [shape = 's32[1]{0}', space=sflag, size = 0x4, scoped, tag = 'scoped memory for tpu_custom_call.1']
    #allocation13 [shape = 'u8[8192]{0}', space=vmem, size = 0x2000, scoped, tag = 'input window, operand 4, single buffered']
    #allocation14 [shape = 'u8[131072]{0}', space=vmem, size = 0x20000, scoped, tag = 'input window, operand 5, single buffered']
    #allocation15 [shape = 's32[1]{0}', space=sflag, size = 0x4, scoped, tag = 'scoped memory for tpu_custom_call.1']
    #allocation16 [shape = 'u8[16384]{0}', space=vmem, size = 0x4000, scoped, tag = 'input window, operand 6, single buffered']
    #allocation17 [shape = 'u8[16384]{0}', space=vmem, size = 0x4000, scoped, tag = 'input window, operand 7, single buffered']
    #allocation18 [shape = 's32[1]{0}', space=sflag, size = 0x4, scoped, tag = 'scoped memory for tpu_custom_call.1']
    #allocation19 [shape = 'u8[32768]{0}', space=vmem, size = 0x8000, scoped, tag = 'output window, operand 0, single buffered']
    %14 = vsyncpa [#allocation6], 0
    %15 = vsyncpa [#allocation9], 0
    %16 = vsyncpa [#allocation12], 0
    %17 = vsyncpa [#allocation15], 0
    %18 = vsyncpa [#allocation18], 0
    %19 = vsyncpa [#allocation7], 0
    // Predicated region
    $region2: #{tpu_custom_call.1} parent=1 // pred_check
      _
    $region3: #{tpu_custom_call.1} parent=1 // pred_check_branch
      %21 = sbr.rel (0) target = $region5
    $region4: #{tpu_custom_call.1} parent=1 // pred_region
      %23 = vsyncadd [#allocation6], 0
      %s24 = sshll.u32 %s0, 4
      %s25 = int_to_ptr.hbm [resolvable:$true] %s24
      %s26 = sshll.u32 [#allocation5], 4
      %s27 = int_to_ptr.vmem [resolvable:$true] %s26
      %32 = dma.hbm_to_vmem [thread:$0]  %s25, 1024, %s27, [#allocation6], 128, 128, 8
    $region5: #{tpu_custom_call.1} parent=1 // pred_fallthru
      _
    // Predicated region
    $region6: #{tpu_custom_call.1} parent=1 // pred_check
      _
    $region7: #{tpu_custom_call.1} parent=1 // pred_check_branch
      %34 = sbr.rel (0) target = $region9
    $region8: #{tpu_custom_call.1} parent=1 // pred_region
      %36 = vsyncadd [#allocation9], 0
      %s38 = sshll.u32 %s1, 4
      %s39 = int_to_ptr.hbm [resolvable:$true] %s38
      %s40 = sshll.u32 [#allocation8], 4
      %s41 = int_to_ptr.vmem [resolvable:$true] %s40
      %43 = dma.hbm_to_vmem [thread:$0]  %s39, 128, %s41, [#allocation9]
    $region9: #{tpu_custom_call.1} parent=1 // pred_fallthru
      _
    // Predicated region
    $region10: #{tpu_custom_call.1} parent=1 // pred_check
      _
    $region11: #{tpu_custom_call.1} parent=1 // pred_check_branch
      %45 = sbr.rel (0) target = $region13
    $region12: #{tpu_custom_call.1} parent=1 // pred_region
      %47 = vsyncadd [#allocation9], 0
      %s49 = sshll.u32 %s2, 4
      %s50 = int_to_ptr.hbm [resolvable:$true] %s49
      %s51 = sshll.u32 [#allocation10], 4
      %s52 = int_to_ptr.vmem [resolvable:$true] %s51
      %54 = dma.hbm_to_vmem [thread:$0]  %s50, 128, %s52, [#allocation9]
    $region13: #{tpu_custom_call.1} parent=1 // pred_fallthru
      _
    // Predicated region
    $region14: #{tpu_custom_call.1} parent=1 // pred_check
      _
    $region15: #{tpu_custom_call.1} parent=1 // pred_check_branch
      %56 = sbr.rel (0) target = $region17
    $region16: #{tpu_custom_call.1} parent=1 // pred_region
      %58 = vsyncadd [#allocation12], 0
      %s60 = sshll.u32 %s3, 4
      %s61 = int_to_ptr.hbm [resolvable:$true] %s60
      %s62 = sshll.u32 [#allocation11], 4
      %s63 = int_to_ptr.vmem [resolvable:$true] %s62
      %65 = dma.hbm_to_vmem [thread:$0]  %s61, 128, %s63, [#allocation12]
    $region17: #{tpu_custom_call.1} parent=1 // pred_fallthru
      _
    // Predicated region
    $region18: #{tpu_custom_call.1} parent=1 // pred_check
      _
    $region19: #{tpu_custom_call.1} parent=1 // pred_check_branch
      %67 = sbr.rel (0) target = $region21
    $region20: #{tpu_custom_call.1} parent=1 // pred_region
      %69 = vsyncadd [#allocation12], 0
      %s70 = sshll.u32 %s4, 4
      %s71 = int_to_ptr.hbm [resolvable:$true] %s70
      %s72 = sshll.u32 [#allocation13], 4
      %s73 = int_to_ptr.vmem [resolvable:$true] %s72
      %78 = dma.hbm_to_vmem [thread:$0]  %s71, 256, %s73, [#allocation12], 128, 128, 8
    $region21: #{tpu_custom_call.1} parent=1 // pred_fallthru
      _
    // Predicated region
    $region22: #{tpu_custom_call.1} parent=1 // pred_check
      _
    $region23: #{tpu_custom_call.1} parent=1 // pred_check_branch
      %80 = sbr.rel (0) target = $region25
    $region24: #{tpu_custom_call.1} parent=1 // pred_region
      %82 = vsyncadd [#allocation15], 0
      %s83 = sshll.u32 %s5, 4
      %s84 = int_to_ptr.hbm [resolvable:$true] %s83
      %s85 = sshll.u32 [#allocation14], 4
      %s86 = int_to_ptr.vmem [resolvable:$true] %s85
      %91 = dma.hbm_to_vmem [thread:$0]  %s84, 4096, %s86, [#allocation15], 128, 128, 8
    $region25: #{tpu_custom_call.1} parent=1 // pred_fallthru
      _
    // Predicated region
    $region26: #{tpu_custom_call.1} parent=1 // pred_check
      _
    $region27: #{tpu_custom_call.1} parent=1 // pred_check_branch
      %93 = sbr.rel (0) target = $region29
    $region28: #{tpu_custom_call.1} parent=1 // pred_region
      %95 = vsyncadd [#allocation15], 0
      %s96 = sshll.u32 %s6, 4
      %s97 = int_to_ptr.hbm [resolvable:$true] %s96
      %s98 = sshll.u32 [#allocation16], 4
      %s99 = int_to_ptr.vmem [resolvable:$true] %s98
      %104 = dma.hbm_to_vmem [thread:$0]  %s97, 512, %s99, [#allocation15], 128, 128, 8
    $region29: #{tpu_custom_call.1} parent=1 // pred_fallthru
      _
    // Predicated region
    $region30: #{tpu_custom_call.1} parent=1 // pred_check
      _
    $region31: #{tpu_custom_call.1} parent=1 // pred_check_branch
      %106 = sbr.rel (0) target = $region33
    $region32: #{tpu_custom_call.1} parent=1 // pred_region
      %108 = vsyncadd [#allocation18], 0
      %s109 = sshll.u32 %s7, 4
      %s110 = int_to_ptr.hbm [resolvable:$true] %s109
      %s111 = sshll.u32 [#allocation17], 4
      %s112 = int_to_ptr.vmem [resolvable:$true] %s111
      %117 = dma.hbm_to_vmem [thread:$0]  %s110, 512, %s112, [#allocation18], 128, 128, 8
    $region33: #{tpu_custom_call.1} parent=1 // pred_fallthru
      _
    // Predicated region
    $region34: #{tpu_custom_call.1} parent=1 // pred_check
      _
    $region35: #{tpu_custom_call.1} parent=1 // pred_check_branch
      %119 = sbr.rel (0) target = $region37
    $region36: #{tpu_custom_call.1} parent=1 // pred_region
      _
    $region37: #{tpu_custom_call.1} parent=1 // pred_fallthru
      _
    // Predicated region
    $region38: #{tpu_custom_call.1} parent=1 // pred_check
      _
    $region39: #{tpu_custom_call.1} parent=1 // pred_check_branch
      %121 = sbr.rel (0) target = $region41
    $region40: #{tpu_custom_call.1} parent=1 // pred_region
      %123 = dma.done [#allocation6], 1024
    $region41: #{tpu_custom_call.1} parent=1 // pred_fallthru
      _
    // Predicated region
    $region42: #{tpu_custom_call.1} parent=1 // pred_check
      _
    $region43: #{tpu_custom_call.1} parent=1 // pred_check_branch
      %125 = sbr.rel (0) target = $region45
    $region44: #{tpu_custom_call.1} parent=1 // pred_region
      %127 = dma.done [#allocation9], 128
    $region45: #{tpu_custom_call.1} parent=1 // pred_fallthru
      _
    // Predicated region
    $region46: #{tpu_custom_call.1} parent=1 // pred_check
      _
    $region47: #{tpu_custom_call.1} parent=1 // pred_check_branch
      %129 = sbr.rel (0) target = $region49
    $region48: #{tpu_custom_call.1} parent=1 // pred_region
      %131 = dma.done [#allocation9], 128
    $region49: #{tpu_custom_call.1} parent=1 // pred_fallthru
      _
    // Predicated region
    $region50: #{tpu_custom_call.1} parent=1 // pred_check
      _
    $region51: #{tpu_custom_call.1} parent=1 // pred_check_branch
      %133 = sbr.rel (0) target = $region53
    $region52: #{tpu_custom_call.1} parent=1 // pred_region
      %135 = dma.done [#allocation12], 128
    $region53: #{tpu_custom_call.1} parent=1 // pred_fallthru
      _
    // Predicated region
    $region54: #{tpu_custom_call.1} parent=1 // pred_check
      _
    $region55: #{tpu_custom_call.1} parent=1 // pred_check_branch
      %137 = sbr.rel (0) target = $region57
    $region56: #{tpu_custom_call.1} parent=1 // pred_region
      %139 = dma.done [#allocation12], 256
    $region57: #{tpu_custom_call.1} parent=1 // pred_fallthru
      _
    // Predicated region
    $region58: #{tpu_custom_call.1} parent=1 // pred_check
      _
    $region59: #{tpu_custom_call.1} parent=1 // pred_check_branch
      %141 = sbr.rel (0) target = $region61
    $region60: #{tpu_custom_call.1} parent=1 // pred_region
      %143 = dma.done [#allocation15], 4096
    $region61: #{tpu_custom_call.1} parent=1 // pred_fallthru
      _
    // Predicated region
    $region62: #{tpu_custom_call.1} parent=1 // pred_check
      _
    $region63: #{tpu_custom_call.1} parent=1 // pred_check_branch
      %145 = sbr.rel (0) target = $region65
    $region64: #{tpu_custom_call.1} parent=1 // pred_region
      %147 = dma.done [#allocation15], 512
    $region65: #{tpu_custom_call.1} parent=1 // pred_fallthru
      _
    // Predicated region
    $region66: #{tpu_custom_call.1} parent=1 // pred_check
      _
    $region67: #{tpu_custom_call.1} parent=1 // pred_check_branch
      %149 = sbr.rel (0) target = $region69
    $region68: #{tpu_custom_call.1} parent=1 // pred_region
      %151 = dma.done [#allocation18], 512
    $region69: #{tpu_custom_call.1} parent=1 // pred_fallthru
      _
    %p152 = scmp.eq.s32.totalorder 0, 0
    // Predicated region
    $region70: #{tpu_custom_call.1} parent=1 // pred_check
      %p153 = pneg %p152
    $region71: #{tpu_custom_call.1} parent=1 // pred_check_branch
      %155 = sbr.rel (%p153) target = $region73
    $region72: #{tpu_custom_call.1} parent=1 // pred_region
      %vm156 = vcmask 261120
      %157 = vst.msk [vmem:[#allocation2] sm:$0xff] %vm156, 0.0
      %158 = vst.msk [vmem:[#allocation3] sm:$0xff] %vm156, 0.0
    $region73: #{tpu_custom_call.1} parent=1 // pred_fallthru
      _
    %v159 = vld [vmem:[#allocation8] sm:$0xff]
    %v160 = vld [vmem:[#allocation10] sm:$0xff]
    %v161 = vld [vmem:[#allocation11] sm:$0xff]
    %v162 = vld [vmem:[#allocation13] sm:$0xff]
    %v163 = vld [vmem:[#allocation13 + $0x8] sm:$0xff]
    %v164 = vld [vmem:[#allocation16] sm:$0xff]
    %v165 = vld [vmem:[#allocation16 + $0x8] sm:$0xff]
    %v166 = vld [vmem:[#allocation16 + $0x10] sm:$0xff]
    %v167 = vld [vmem:[#allocation16 + $0x18] sm:$0xff]
    %v168 = vld [vmem:[#allocation14] sm:$0xff]
    %v169 = vld [vmem:[#allocation14 + $0x8] sm:$0xff]
    %v170 = vld [vmem:[#allocation14 + $0x10] sm:$0xff]
    %v171 = vld [vmem:[#allocation14 + $0x18] sm:$0xff]
    %v172 = vld [vmem:[#allocation14 + $0x20] sm:$0xff]
    %v173 = vld [vmem:[#allocation14 + $0x28] sm:$0xff]
    %v174 = vld [vmem:[#allocation14 + $0x30] sm:$0xff]
    %v175 = vld [vmem:[#allocation14 + $0x38] sm:$0xff]
    %v176 = vld [vmem:[#allocation14 + $0x40] sm:$0xff]
    %v177 = vld [vmem:[#allocation14 + $0x48] sm:$0xff]
    %v178 = vld [vmem:[#allocation14 + $0x50] sm:$0xff]
    %v179 = vld [vmem:[#allocation14 + $0x58] sm:$0xff]
    %v180 = vld [vmem:[#allocation14 + $0x60] sm:$0xff]
    %v181 = vld [vmem:[#allocation14 + $0x68] sm:$0xff]
    %v182 = vld [vmem:[#allocation14 + $0x70] sm:$0xff]
    %v183 = vld [vmem:[#allocation14 + $0x78] sm:$0xff]
    %s184 = scalar_lea.vmem [#allocation14], 128
    %v185 = vld [vmem:[%s184] sm:$0xff]
    %v186 = vld [vmem:[%s184 + $0x8] sm:$0xff]
    %v187 = vld [vmem:[%s184 + $0x10] sm:$0xff]
    %v188 = vld [vmem:[%s184 + $0x18] sm:$0xff]
    %v189 = vld [vmem:[%s184 + $0x20] sm:$0xff]
    %v190 = vld [vmem:[%s184 + $0x28] sm:$0xff]
    %v191 = vld [vmem:[%s184 + $0x30] sm:$0xff]
    %v192 = vld [vmem:[%s184 + $0x38] sm:$0xff]
    %v193 = vld [vmem:[%s184 + $0x40] sm:$0xff]
    %v194 = vld [vmem:[%s184 + $0x48] sm:$0xff]
    %v195 = vld [vmem:[%s184 + $0x50] sm:$0xff]
    %v196 = vld [vmem:[%s184 + $0x58] sm:$0xff]
    %v197 = vld [vmem:[%s184 + $0x60] sm:$0xff]
    %v198 = vld [vmem:[%s184 + $0x68] sm:$0xff]
    %v199 = vld [vmem:[%s184 + $0x70] sm:$0xff]
    %v200 = vld [vmem:[%s184 + $0x78] sm:$0xff]
    %v201 = vld [vmem:[#allocation2] sm:$0xff]
    %v202 = vld [vmem:[#allocation3] sm:$0xff]
    %v203 = vld [vmem:[#allocation5] sm:$0x1]
    %v204 = vld [vmem:[#allocation5 + $0x8] sm:$0x1]
    %v205 = vld [vmem:[#allocation5 + $0x10] sm:$0x1]
    %v206 = vld [vmem:[#allocation5 + $0x18] sm:$0x1]
    %v207 = vld [vmem:[#allocation5 + $0x20] sm:$0x1]
    %v208 = vld [vmem:[#allocation5 + $0x28] sm:$0x1]
    %v209 = vld [vmem:[#allocation5 + $0x30] sm:$0x1]
    %v210 = vld [vmem:[#allocation5 + $0x38] sm:$0x1]
    %v219 = vrot.slane %v204, 7
    %vm220 = vcmask 1041409
    %v221 = vsel %vm220, %v219, %v203
    %v222 = vrot.slane %v205, 6
    %vm223 = vcmask 1042434
    %v224 = vsel %vm223, %v222, %v221
    %v225 = vrot.slane %v206, 5
    %vm226 = vcmask 1043459
    %v227 = vsel %vm226, %v225, %v224
    %v228 = vrot.slane %v207, 4
    %vm229 = vcmask 1044484
    %v230 = vsel %vm229, %v228, %v227
    %v231 = vrot.slane %v208, 3
    %vm232 = vcmask 1045509
    %v233 = vsel %vm232, %v231, %v230
    %v234 = vrot.slane %v209, 2
    %vm235 = vcmask 1046534
    %v236 = vsel %vm235, %v234, %v233
    %v237 = vrot.slane %v210, 1
    %vm238 = vcmask 1047559
    %v239 = vsel %vm238, %v237, %v236
    %vm240 = vcmask 130048
    %v241 = vsel %vm240, %v239, 0
    %243 = vmatpush.msra.mxu0 0.0
    %244 = vmatpush.msra.mxu0 0.0
    %245 = vmatpush.msra.mxu0 0.0
    %246 = vmatpush.msra.mxu0 0.0
    %247 = vmatpush.msra.mxu0 0.0
    %248 = vmatpush.msra.mxu0 0.0
    %249 = vmatpush.msra.mxu0 0.0
    %250 = vmatpush.msra.mxu0 0.0
    %251 = vmatpush.msra.mxu0 0.0
    %252 = vmatpush.msra.mxu0 0.0
    %253 = vmatpush.msra.mxu0 0.0
    %254 = vmatpush.msra.mxu0 0.0
    %255 = vmatpush.msra.mxu0 0.0
    %256 = vmatpush.msra.mxu0 0.0
    %257 = vmatpush.msra.mxu0 %v163
    %258 = vmatpush.msra.mxu0 %v162
    %259 = vmatmul.f32.gmra.mxu0 %v241
    %v260 = vpop.f32.mrf.mxu0
    %v261 = vadd.f32 0.0, %v260
    %262 = vdwg.mxu0
    %v263 = vmul.f32 %v261, %v159
    %vm264 = vcmask 261120
    %v266 = vsel %vm264, %v201, 0
    %268 = vmatpush.msra.mxu0 0.0
    %269 = vmatpush.msra.mxu0 0.0
    %270 = vmatpush.msra.mxu0 0.0
    %271 = vmatpush.msra.mxu0 0.0
    %272 = vmatpush.msra.mxu0 0.0
    %273 = vmatpush.msra.mxu0 0.0
    %274 = vmatpush.msra.mxu0 0.0
    %275 = vmatpush.msra.mxu0 0.0
    %276 = vmatpush.msra.mxu0 0.0
    %277 = vmatpush.msra.mxu0 0.0
    %278 = vmatpush.msra.mxu0 0.0
    %279 = vmatpush.msra.mxu0 0.0
    %280 = vmatpush.msra.mxu0 %v167
    %281 = vmatpush.msra.mxu0 %v166
    %282 = vmatpush.msra.mxu0 %v165
    %283 = vmatpush.msra.mxu0 %v164
    %284 = vmatmul.f32.gmra.mxu0 %v266
    %v285 = vpop.f32.mrf.mxu0
    %v286 = vadd.f32 0.0, %v285
    %287 = vdwg.mxu0
    %v288 = vmul.f32 %v286, %v161
    %289 = vmatpush.msra.mxu0 %v200
    %290 = vmatpush.msra.mxu0 %v199
    %291 = vmatpush.msra.mxu0 %v198
    %292 = vmatpush.msra.mxu0 %v197
    %293 = vmatpush.msra.mxu0 %v196
    %294 = vmatpush.msra.mxu0 %v195
    %295 = vmatpush.msra.mxu0 %v194
    %296 = vmatpush.msra.mxu0 %v193
    %297 = vmatpush.msra.mxu0 %v192
    %298 = vmatpush.msra.mxu0 %v191
    %299 = vmatpush.msra.mxu0 %v190
    %300 = vmatpush.msra.mxu0 %v189
    %301 = vmatpush.msra.mxu0 %v188
    %302 = vmatpush.msra.mxu0 %v187
    %303 = vmatpush.msra.mxu0 %v186
    %304 = vmatpush.msra.mxu0 %v185
    %305 = vmatmul.f32.gmra.mxu0 %v288
    %v306 = vpop.f32.mrf.mxu0
    %v307 = vadd.f32 0.0, %v306
    %308 = vdwg.mxu0
    %309 = vmatpush.msra.mxu0 %v183
    %310 = vmatpush.msra.mxu0 %v182
    %311 = vmatpush.msra.mxu0 %v181
    %312 = vmatpush.msra.mxu0 %v180
    %313 = vmatpush.msra.mxu0 %v179
    %314 = vmatpush.msra.mxu0 %v178
    %315 = vmatpush.msra.mxu0 %v177
    %316 = vmatpush.msra.mxu0 %v176
    %317 = vmatpush.msra.mxu0 %v175
    %318 = vmatpush.msra.mxu0 %v174
    %319 = vmatpush.msra.mxu0 %v173
    %320 = vmatpush.msra.mxu0 %v172
    %321 = vmatpush.msra.mxu0 %v171
    %322 = vmatpush.msra.mxu0 %v170
    %323 = vmatpush.msra.mxu0 %v169
    %324 = vmatpush.msra.mxu0 %v168
    %325 = vmatmul.f32.gmra.mxu0 %v263
    %v326 = vpop.f32.mrf.mxu0
    %v327 = vadd.f32 %v307, %v326
    %328 = vdwg.mxu0
    %v329 = vadd.f32 %v327, %v160
    %v330 = vxor.u32 %v329, 2147483648
    %v331 = vmul.f32 %v330, 1.442695
    %v332 = vpow.pop %v331
    %v333 = vadd.f32 %v332, 1.0
    %v334 = vrcp.pop %v333
    %v335 = vmul.f32 %v333, %v334
    %v336 = vsub.f32 1.0, %v335
    %v337 = vmul.f32 %v334, %v336
    %v338 = vadd.f32 %v334, %v337
    %vm339 = vweird.f32 %v333
    %vm340 = vweird.f32 %v334
    %vm341 = vmor %vm339, %vm340
    %v342 = vsel %vm341, %v334, %v338
    %v343 = vand.u32 2147483647, %v333
    %vm344 = vcmp.eq.f32.partialorder %v343, 8.507059e+37
    %v345 = vand.u32 %v333, 2147483648
    %v346 = vor.u32 1.1754944e-38, %v345
    %v347 = vsel %vm344, %v346, %v342
    %v348 = vmul.f32 1.0, %v347
    %v349 = vtanh.pop %v329
    %351 = vrot.lane.b32.xlu0 %v202, 32
    %v352 = vpop.permute.xlu0 %351
    %v354 = vmul.f32 %v348, %v352
    %356 = vrot.lane.b32.xlu0 %v349, 32
    %v357 = vpop.permute.xlu0 %356
    %v359 = vmul.f32 %v348, %v357
    %361 = vrot.lane.b32.xlu0 %v359, 32
    %v362 = vpop.permute.xlu0 %361
    %v364 = vadd.f32 %v354, %v362
    %v365 = vtanh.pop %v364
    %367 = vrot.lane.b32.xlu0 %v365, 32
    %v368 = vpop.permute.xlu0 %367
    %v370 = vmul.f32 %v348, %v368
    %v372 = vrot.slane %v370, 1
    %v373 = vrot.slane %v370, 2
    %v374 = vrot.slane %v370, 3
    %v375 = vrot.slane %v370, 4
    %v376 = vrot.slane %v370, 5
    %v377 = vrot.slane %v370, 6
    %v378 = vrot.slane %v370, 7
    %v379 = vperm.slane %v370, 0
    %v380 = vperm.slane %v372, 0
    %v381 = vperm.slane %v373, 0
    %v382 = vperm.slane %v374, 0
    %v383 = vperm.slane %v375, 0
    %v384 = vperm.slane %v376, 0
    %v385 = vperm.slane %v377, 0
    %v386 = vperm.slane %v378, 0
    %387 = vrot.lane.b32.xlu0 %v379, 64
    %v388 = vpop.permute.xlu0 %387
    %389 = vrot.lane.b32.xlu0 %v380, 64
    %v390 = vpop.permute.xlu0 %389
    %391 = vrot.lane.b32.xlu0 %v381, 64
    %v392 = vpop.permute.xlu0 %391
    %393 = vrot.lane.b32.xlu0 %v382, 64
    %v394 = vpop.permute.xlu0 %393
    %395 = vrot.lane.b32.xlu0 %v383, 64
    %v396 = vpop.permute.xlu0 %395
    %397 = vrot.lane.b32.xlu0 %v384, 64
    %v398 = vpop.permute.xlu0 %397
    %399 = vrot.lane.b32.xlu0 %v385, 64
    %v400 = vpop.permute.xlu0 %399
    %401 = vrot.lane.b32.xlu0 %v386, 64
    %v402 = vpop.permute.xlu0 %401
    %vm411 = vcmask 253952
    %412 = vst.msk [vmem:[#allocation4] sm:$0x1] %vm411, %v388
    %413 = vst.msk [vmem:[#allocation4 + $0x8] sm:$0x1] %vm411, %v390
    %414 = vst.msk [vmem:[#allocation4 + $0x10] sm:$0x1] %vm411, %v392
    %415 = vst.msk [vmem:[#allocation4 + $0x18] sm:$0x1] %vm411, %v394
    %416 = vst.msk [vmem:[#allocation4 + $0x20] sm:$0x1] %vm411, %v396
    %417 = vst.msk [vmem:[#allocation4 + $0x28] sm:$0x1] %vm411, %v398
    %418 = vst.msk [vmem:[#allocation4 + $0x30] sm:$0x1] %vm411, %v400
    %419 = vst.msk [vmem:[#allocation4 + $0x38] sm:$0x1] %vm411, %v402
    %v420 = vld [vmem:[#allocation5 + $0x1] sm:$0x1]
    %v421 = vld [vmem:[#allocation5 + $0x9] sm:$0x1]
    %v422 = vld [vmem:[#allocation5 + $0x11] sm:$0x1]
    %v423 = vld [vmem:[#allocation5 + $0x19] sm:$0x1]
    %v424 = vld [vmem:[#allocation5 + $0x21] sm:$0x1]
    %v425 = vld [vmem:[#allocation5 + $0x29] sm:$0x1]
    %v426 = vld [vmem:[#allocation5 + $0x31] sm:$0x1]
    %v427 = vld [vmem:[#allocation5 + $0x39] sm:$0x1]
    %v436 = vrot.slane %v421, 7
    %v437 = vsel %vm220, %v436, %v420
    %v438 = vrot.slane %v422, 6
    %v439 = vsel %vm223, %v438, %v437
    %v440 = vrot.slane %v423, 5
    %v441 = vsel %vm226, %v440, %v439
    %v442 = vrot.slane %v424, 4
    %v443 = vsel %vm229, %v442, %v441
    %v444 = vrot.slane %v425, 3
    %v445 = vsel %vm232, %v444, %v443
    %v446 = vrot.slane %v426, 2
    %v447 = vsel %vm235, %v446, %v445
    %v448 = vrot.slane %v427, 1
    %v449 = vsel %vm238, %v448, %v447
    %v450 = vsel %vm240, %v449, 0
    %452 = vmatpush.msra.mxu0 0.0
    %453 = vmatpush.msra.mxu0 0.0
    %454 = vmatpush.msra.mxu0 0.0
    %455 = vmatpush.msra.mxu0 0.0
    %456 = vmatpush.msra.mxu0 0.0
    %457 = vmatpush.msra.mxu0 0.0
    %458 = vmatpush.msra.mxu0 0.0
    %459 = vmatpush.msra.mxu0 0.0
    %460 = vmatpush.msra.mxu0 0.0
    %461 = vmatpush.msra.mxu0 0.0
    %462 = vmatpush.msra.mxu0 0.0
    %463 = vmatpush.msra.mxu0 0.0
    %464 = vmatpush.msra.mxu0 0.0
    %465 = vmatpush.msra.mxu0 0.0
    %466 = vmatpush.msra.mxu0 %v163
    %467 = vmatpush.msra.mxu0 %v162
    %468 = vmatmul.f32.gmra.mxu0 %v450
    %v469 = vpop.f32.mrf.mxu0
    %v470 = vadd.f32 0.0, %v469
    %471 = vdwg.mxu0
    %v472 = vmul.f32 %v470, %v159
    %473 = vrot.lane.b32.xlu0 %v370, 64
    %v474 = vpop.permute.xlu0 %473
    %v475 = vsel %vm264, %v474, 0
    %477 = vmatpush.msra.mxu0 0.0
    %478 = vmatpush.msra.mxu0 0.0
    %479 = vmatpush.msra.mxu0 0.0
    %480 = vmatpush.msra.mxu0 0.0
    %481 = vmatpush.msra.mxu0 0.0
    %482 = vmatpush.msra.mxu0 0.0
    %483 = vmatpush.msra.mxu0 0.0
    %484 = vmatpush.msra.mxu0 0.0
    %485 = vmatpush.msra.mxu0 0.0
    %486 = vmatpush.msra.mxu0 0.0
    %487 = vmatpush.msra.mxu0 0.0
    %488 = vmatpush.msra.mxu0 0.0
    %489 = vmatpush.msra.mxu0 %v167
    %490 = vmatpush.msra.mxu0 %v166
    %491 = vmatpush.msra.mxu0 %v165
    %492 = vmatpush.msra.mxu0 %v164
    %493 = vmatmul.f32.gmra.mxu0 %v475
    %v494 = vpop.f32.mrf.mxu0
    %v495 = vadd.f32 0.0, %v494
    %496 = vdwg.mxu0
    %v497 = vmul.f32 %v495, %v161
    %498 = vmatpush.msra.mxu0 %v200
    %499 = vmatpush.msra.mxu0 %v199
    %500 = vmatpush.msra.mxu0 %v198
    %501 = vmatpush.msra.mxu0 %v197
    %502 = vmatpush.msra.mxu0 %v196
    %503 = vmatpush.msra.mxu0 %v195
    %504 = vmatpush.msra.mxu0 %v194
    %505 = vmatpush.msra.mxu0 %v193
    %506 = vmatpush.msra.mxu0 %v192
    %507 = vmatpush.msra.mxu0 %v191
    %508 = vmatpush.msra.mxu0 %v190
    %509 = vmatpush.msra.mxu0 %v189
    %510 = vmatpush.msra.mxu0 %v188
    %511 = vmatpush.msra.mxu0 %v187
    %512 = vmatpush.msra.mxu0 %v186
    %513 = vmatpush.msra.mxu0 %v185
    %514 = vmatmul.f32.gmra.mxu0 %v497
    %v515 = vpop.f32.mrf.mxu0
    %v516 = vadd.f32 0.0, %v515
    %517 = vdwg.mxu0
    %518 = vmatpush.msra.mxu0 %v183
    %519 = vmatpush.msra.mxu0 %v182
    %520 = vmatpush.msra.mxu0 %v181
    %521 = vmatpush.msra.mxu0 %v180
    %522 = vmatpush.msra.mxu0 %v179
    %523 = vmatpush.msra.mxu0 %v178
    %524 = vmatpush.msra.mxu0 %v177
    %525 = vmatpush.msra.mxu0 %v176
    %526 = vmatpush.msra.mxu0 %v175
    %527 = vmatpush.msra.mxu0 %v174
    %528 = vmatpush.msra.mxu0 %v173
    %529 = vmatpush.msra.mxu0 %v172
    %530 = vmatpush.msra.mxu0 %v171
    %531 = vmatpush.msra.mxu0 %v170
    %532 = vmatpush.msra.mxu0 %v169
    %533 = vmatpush.msra.mxu0 %v168
    %534 = vmatmul.f32.gmra.mxu0 %v472
    %v535 = vpop.f32.mrf.mxu0
    %v536 = vadd.f32 %v516, %v535
    %537 = vdwg.mxu0
    %v538 = vadd.f32 %v536, %v160
    %v539 = vxor.u32 %v538, 2147483648
    %v540 = vmul.f32 %v539, 1.442695
    %v541 = vpow.pop %v540
    %v542 = vadd.f32 %v541, 1.0
    %v543 = vrcp.pop %v542
    %v544 = vmul.f32 %v542, %v543
    %v545 = vsub.f32 1.0, %v544
    %v546 = vmul.f32 %v543, %v545
    %v547 = vadd.f32 %v543, %v546
    %vm548 = vweird.f32 %v542
    %vm549 = vweird.f32 %v543
    %vm550 = vmor %vm548, %vm549
    %v551 = vsel %vm550, %v543, %v547
    %v552 = vand.u32 2147483647, %v542
    %vm553 = vcmp.eq.f32.partialorder %v552, 8.507059e+37
    %v554 = vand.u32 %v542, 2147483648
    %v555 = vor.u32 1.1754944e-38, %v554
    %v556 = vsel %vm553, %v555, %v551
    %v557 = vmul.f32 1.0, %v556
    %v558 = vtanh.pop %v538
    %v559 = vmul.f32 %v557, %v364
    %561 = vrot.lane.b32.xlu0 %v558, 32
    %v562 = vpop.permute.xlu0 %561
    %v564 = vmul.f32 %v557, %v562
    %566 = vrot.lane.b32.xlu0 %v564, 32
    %v567 = vpop.permute.xlu0 %566
    %v569 = vadd.f32 %v559, %v567
    %v570 = vtanh.pop %v569
    %572 = vrot.lane.b32.xlu0 %v570, 32
    %v573 = vpop.permute.xlu0 %572
    %v575 = vmul.f32 %v557, %v573
    %v577 = vrot.slane %v575, 1
    %v578 = vrot.slane %v575, 2
    %v579 = vrot.slane %v575, 3
    %v580 = vrot.slane %v575, 4
    %v581 = vrot.slane %v575, 5
    %v582 = vrot.slane %v575, 6
    %v583 = vrot.slane %v575, 7
    %v584 = vperm.slane %v575, 0
    %v585 = vperm.slane %v577, 0
    %v586 = vperm.slane %v578, 0
    %v587 = vperm.slane %v579, 0
    %v588 = vperm.slane %v580, 0
    %v589 = vperm.slane %v581, 0
    %v590 = vperm.slane %v582, 0
    %v591 = vperm.slane %v583, 0
    %592 = vrot.lane.b32.xlu0 %v584, 64
    %v593 = vpop.permute.xlu0 %592
    %594 = vrot.lane.b32.xlu0 %v585, 64
    %v595 = vpop.permute.xlu0 %594
    %596 = vrot.lane.b32.xlu0 %v586, 64
    %v597 = vpop.permute.xlu0 %596
    %598 = vrot.lane.b32.xlu0 %v587, 64
    %v599 = vpop.permute.xlu0 %598
    %600 = vrot.lane.b32.xlu0 %v588, 64
    %v601 = vpop.permute.xlu0 %600
    %602 = vrot.lane.b32.xlu0 %v589, 64
    %v603 = vpop.permute.xlu0 %602
    %604 = vrot.lane.b32.xlu0 %v590, 64
    %v605 = vpop.permute.xlu0 %604
    %606 = vrot.lane.b32.xlu0 %v591, 64
    %v607 = vpop.permute.xlu0 %606
    %616 = vst.msk [vmem:[#allocation4 + $0x1] sm:$0x1] %vm411, %v593
    %617 = vst.msk [vmem:[#allocation4 + $0x9] sm:$0x1] %vm411, %v595
    %618 = vst.msk [vmem:[#allocation4 + $0x11] sm:$0x1] %vm411, %v597
    %619 = vst.msk [vmem:[#allocation4 + $0x19] sm:$0x1] %vm411, %v599
    %620 = vst.msk [vmem:[#allocation4 + $0x21] sm:$0x1] %vm411, %v601
    %621 = vst.msk [vmem:[#allocation4 + $0x29] sm:$0x1] %vm411, %v603
    %622 = vst.msk [vmem:[#allocation4 + $0x31] sm:$0x1] %vm411, %v605
    %623 = vst.msk [vmem:[#allocation4 + $0x39] sm:$0x1] %vm411, %v607
    %v624 = vld [vmem:[#allocation5 + $0x2] sm:$0x1]
    %v625 = vld [vmem:[#allocation5 + $0xa] sm:$0x1]
    %v626 = vld [vmem:[#allocation5 + $0x12] sm:$0x1]
    %v627 = vld [vmem:[#allocation5 + $0x1a] sm:$0x1]
    %v628 = vld [vmem:[#allocation5 + $0x22] sm:$0x1]
    %v629 = vld [vmem:[#allocation5 + $0x2a] sm:$0x1]
    %v630 = vld [vmem:[#allocation5 + $0x32] sm:$0x1]
    %v631 = vld [vmem:[#allocation5 + $0x3a] sm:$0x1]
    %v640 = vrot.slane %v625, 7
    %v641 = vsel %vm220, %v640, %v624
    %v642 = vrot.slane %v626, 6
    %v643 = vsel %vm223, %v642, %v641
    %v644 = vrot.slane %v627, 5
    %v645 = vsel %vm226, %v644, %v643
    %v646 = vrot.slane %v628, 4
    %v647 = vsel %vm229, %v646, %v645
    %v648 = vrot.slane %v629, 3
    %v649 = vsel %vm232, %v648, %v647
    %v650 = vrot.slane %v630, 2
    %v651 = vsel %vm235, %v650, %v649
    %v652 = vrot.slane %v631, 1
    %v653 = vsel %vm238, %v652, %v651
    %v654 = vsel %vm240, %v653, 0
    %656 = vmatpush.msra.mxu0 0.0
    %657 = vmatpush.msra.mxu0 0.0
    %658 = vmatpush.msra.mxu0 0.0
    %659 = vmatpush.msra.mxu0 0.0
    %660 = vmatpush.msra.mxu0 0.0
    %661 = vmatpush.msra.mxu0 0.0
    %662 = vmatpush.msra.mxu0 0.0
    %663 = vmatpush.msra.mxu0 0.0
    %664 = vmatpush.msra.mxu0 0.0
    %665 = vmatpush.msra.mxu0 0.0
    %666 = vmatpush.msra.mxu0 0.0
    %667 = vmatpush.msra.mxu0 0.0
    %668 = vmatpush.msra.mxu0 0.0
    %669 = vmatpush.msra.mxu0 0.0
    %670 = vmatpush.msra.mxu0 %v163
    %671 = vmatpush.msra.mxu0 %v162
    %672 = vmatmul.f32.gmra.mxu0 %v654
    %v673 = vpop.f32.mrf.mxu0
    %v674 = vadd.f32 0.0, %v673
    %675 = vdwg.mxu0
    %v676 = vmul.f32 %v674, %v159
    %677 = vrot.lane.b32.xlu0 %v575, 64
    %v678 = vpop.permute.xlu0 %677
    %v679 = vsel %vm264, %v678, 0
    %681 = vmatpush.msra.mxu0 0.0
    %682 = vmatpush.msra.mxu0 0.0
    %683 = vmatpush.msra.mxu0 0.0
    %684 = vmatpush.msra.mxu0 0.0
    %685 = vmatpush.msra.mxu0 0.0
    %686 = vmatpush.msra.mxu0 0.0
    %687 = vmatpush.msra.mxu0 0.0
    %688 = vmatpush.msra.mxu0 0.0
    %689 = vmatpush.msra.mxu0 0.0
    %690 = vmatpush.msra.mxu0 0.0
    %691 = vmatpush.msra.mxu0 0.0
    %692 = vmatpush.msra.mxu0 0.0
    %693 = vmatpush.msra.mxu0 %v167
    %694 = vmatpush.msra.mxu0 %v166
    %695 = vmatpush.msra.mxu0 %v165
    %696 = vmatpush.msra.mxu0 %v164
    %697 = vmatmul.f32.gmra.mxu0 %v679
    %v698 = vpop.f32.mrf.mxu0
    %v699 = vadd.f32 0.0, %v698
    %700 = vdwg.mxu0
    %v701 = vmul.f32 %v699, %v161
    %702 = vmatpush.msra.mxu0 %v200
    %703 = vmatpush.msra.mxu0 %v199
    %704 = vmatpush.msra.mxu0 %v198
    %705 = vmatpush.msra.mxu0 %v197
    %706 = vmatpush.msra.mxu0 %v196
    %707 = vmatpush.msra.mxu0 %v195
    %708 = vmatpush.msra.mxu0 %v194
    %709 = vmatpush.msra.mxu0 %v193
    %710 = vmatpush.msra.mxu0 %v192
    %711 = vmatpush.msra.mxu0 %v191
    %712 = vmatpush.msra.mxu0 %v190
    %713 = vmatpush.msra.mxu0 %v189
    %714 = vmatpush.msra.mxu0 %v188
    %715 = vmatpush.msra.mxu0 %v187
    %716 = vmatpush.msra.mxu0 %v186
    %717 = vmatpush.msra.mxu0 %v185
    %718 = vmatmul.f32.gmra.mxu0 %v701
    %v719 = vpop.f32.mrf.mxu0
    %v720 = vadd.f32 0.0, %v719
    %721 = vdwg.mxu0
    %722 = vmatpush.msra.mxu0 %v183
    %723 = vmatpush.msra.mxu0 %v182
    %724 = vmatpush.msra.mxu0 %v181
    %725 = vmatpush.msra.mxu0 %v180
    %726 = vmatpush.msra.mxu0 %v179
    %727 = vmatpush.msra.mxu0 %v178
    %728 = vmatpush.msra.mxu0 %v177
    %729 = vmatpush.msra.mxu0 %v176
    %730 = vmatpush.msra.mxu0 %v175
    %731 = vmatpush.msra.mxu0 %v174
    %732 = vmatpush.msra.mxu0 %v173
    %733 = vmatpush.msra.mxu0 %v172
    %734 = vmatpush.msra.mxu0 %v171
    %735 = vmatpush.msra.mxu0 %v170
    %736 = vmatpush.msra.mxu0 %v169
    %737 = vmatpush.msra.mxu0 %v168
    %738 = vmatmul.f32.gmra.mxu0 %v676
    %v739 = vpop.f32.mrf.mxu0
    %v740 = vadd.f32 %v720, %v739
    %741 = vdwg.mxu0
    %v742 = vadd.f32 %v740, %v160
    %v743 = vxor.u32 %v742, 2147483648
    %v744 = vmul.f32 %v743, 1.442695
    %v745 = vpow.pop %v744
    %v746 = vadd.f32 %v745, 1.0
    %v747 = vrcp.pop %v746
    %v748 = vmul.f32 %v746, %v747
    %v749 = vsub.f32 1.0, %v748
    %v750 = vmul.f32 %v747, %v749
    %v751 = vadd.f32 %v747, %v750
    %vm752 = vweird.f32 %v746
    %vm753 = vweird.f32 %v747
    %vm754 = vmor %vm752, %vm753
    %v755 = vsel %vm754, %v747, %v751
    %v756 = vand.u32 2147483647, %v746
    %vm757 = vcmp.eq.f32.partialorder %v756, 8.507059e+37
    %v758 = vand.u32 %v746, 2147483648
    %v759 = vor.u32 1.1754944e-38, %v758
    %v760 = vsel %vm757, %v759, %v755
    %v761 = vmul.f32 1.0, %v760
    %v762 = vtanh.pop %v742
    %v763 = vmul.f32 %v761, %v569
    %765 = vrot.lane.b32.xlu0 %v762, 32
    %v766 = vpop.permute.xlu0 %765
    %v768 = vmul.f32 %v761, %v766
    %770 = vrot.lane.b32.xlu0 %v768, 32
    %v771 = vpop.permute.xlu0 %770
    %v773 = vadd.f32 %v763, %v771
    %v774 = vtanh.pop %v773
    %776 = vrot.lane.b32.xlu0 %v774, 32
    %v777 = vpop.permute.xlu0 %776
    %v779 = vmul.f32 %v761, %v777
    %v781 = vrot.slane %v779, 1
    %v782 = vrot.slane %v779, 2
    %v783 = vrot.slane %v779, 3
    %v784 = vrot.slane %v779, 4
    %v785 = vrot.slane %v779, 5
    %v786 = vrot.slane %v779, 6
    %v787 = vrot.slane %v779, 7
    %v788 = vperm.slane %v779, 0
    %v789 = vperm.slane %v781, 0
    %v790 = vperm.slane %v782, 0
    %v791 = vperm.slane %v783, 0
    %v792 = vperm.slane %v784, 0
    %v793 = vperm.slane %v785, 0
    %v794 = vperm.slane %v786, 0
    %v795 = vperm.slane %v787, 0
    %796 = vrot.lane.b32.xlu0 %v788, 64
    %v797 = vpop.permute.xlu0 %796
    %798 = vrot.lane.b32.xlu0 %v789, 64
    %v799 = vpop.permute.xlu0 %798
    %800 = vrot.lane.b32.xlu0 %v790, 64
    %v801 = vpop.permute.xlu0 %800
    %802 = vrot.lane.b32.xlu0 %v791, 64
    %v803 = vpop.permute.xlu0 %802
    %804 = vrot.lane.b32.xlu0 %v792, 64
    %v805 = vpop.permute.xlu0 %804
    %806 = vrot.lane.b32.xlu0 %v793, 64
    %v807 = vpop.permute.xlu0 %806
    %808 = vrot.lane.b32.xlu0 %v794, 64
    %v809 = vpop.permute.xlu0 %808
    %810 = vrot.lane.b32.xlu0 %v795, 64
    %v811 = vpop.permute.xlu0 %810
    %820 = vst.msk [vmem:[#allocation4 + $0x2] sm:$0x1] %vm411, %v797
    %821 = vst.msk [vmem:[#allocation4 + $0xa] sm:$0x1] %vm411, %v799
    %822 = vst.msk [vmem:[#allocation4 + $0x12] sm:$0x1] %vm411, %v801
    %823 = vst.msk [vmem:[#allocation4 + $0x1a] sm:$0x1] %vm411, %v803
    %824 = vst.msk [vmem:[#allocation4 + $0x22] sm:$0x1] %vm411, %v805
    %825 = vst.msk [vmem:[#allocation4 + $0x2a] sm:$0x1] %vm411, %v807
    %826 = vst.msk [vmem:[#allocation4 + $0x32] sm:$0x1] %vm411, %v809
    %827 = vst.msk [vmem:[#allocation4 + $0x3a] sm:$0x1] %vm411, %v811
    %v828 = vld [vmem:[#allocation5 + $0x3] sm:$0x1]
    %v829 = vld [vmem:[#allocation5 + $0xb] sm:$0x1]
    %v830 = vld [vmem:[#allocation5 + $0x13] sm:$0x1]
    %v831 = vld [vmem:[#allocation5 + $0x1b] sm:$0x1]
    %v832 = vld [vmem:[#allocation5 + $0x23] sm:$0x1]
    %v833 = vld [vmem:[#allocation5 + $0x2b] sm:$0x1]
    %v834 = vld [vmem:[#allocation5 + $0x33] sm:$0x1]
    %v835 = vld [vmem:[#allocation5 + $0x3b] sm:$0x1]
    %v844 = vrot.slane %v829, 7
    %v845 = vsel %vm220, %v844, %v828
    %v846 = vrot.slane %v830, 6
    %v847 = vsel %vm223, %v846, %v845
    %v848 = vrot.slane %v831, 5
    %v849 = vsel %vm226, %v848, %v847
    %v850 = vrot.slane %v832, 4
    %v851 = vsel %vm229, %v850, %v849
    %v852 = vrot.slane %v833, 3
    %v853 = vsel %vm232, %v852, %v851
    %v854 = vrot.slane %v834, 2
    %v855 = vsel %vm235, %v854, %v853
    %v856 = vrot.slane %v835, 1
    %v857 = vsel %vm238, %v856, %v855
    %v858 = vsel %vm240, %v857, 0
    %860 = vmatpush.msra.mxu0 0.0
    %861 = vmatpush.msra.mxu0 0.0
    %862 = vmatpush.msra.mxu0 0.0
    %863 = vmatpush.msra.mxu0 0.0
    %864 = vmatpush.msra.mxu0 0.0
    %865 = vmatpush.msra.mxu0 0.0
    %866 = vmatpush.msra.mxu0 0.0
    %867 = vmatpush.msra.mxu0 0.0
    %868 = vmatpush.msra.mxu0 0.0
    %869 = vmatpush.msra.mxu0 0.0
    %870 = vmatpush.msra.mxu0 0.0
    %871 = vmatpush.msra.mxu0 0.0
    %872 = vmatpush.msra.mxu0 0.0
    %873 = vmatpush.msra.mxu0 0.0
    %874 = vmatpush.msra.mxu0 %v163
    %875 = vmatpush.msra.mxu0 %v162
    %876 = vmatmul.f32.gmra.mxu0 %v858
    %v877 = vpop.f32.mrf.mxu0
    %v878 = vadd.f32 0.0, %v877
    %879 = vdwg.mxu0
    %v880 = vmul.f32 %v878, %v159
    %881 = vrot.lane.b32.xlu0 %v779, 64
    %v882 = vpop.permute.xlu0 %881
    %v883 = vsel %vm264, %v882, 0
    %885 = vmatpush.msra.mxu0 0.0
    %886 = vmatpush.msra.mxu0 0.0
    %887 = vmatpush.msra.mxu0 0.0
    %888 = vmatpush.msra.mxu0 0.0
    %889 = vmatpush.msra.mxu0 0.0
    %890 = vmatpush.msra.mxu0 0.0
    %891 = vmatpush.msra.mxu0 0.0
    %892 = vmatpush.msra.mxu0 0.0
    %893 = vmatpush.msra.mxu0 0.0
    %894 = vmatpush.msra.mxu0 0.0
    %895 = vmatpush.msra.mxu0 0.0
    %896 = vmatpush.msra.mxu0 0.0
    %897 = vmatpush.msra.mxu0 %v167
    %898 = vmatpush.msra.mxu0 %v166
    %899 = vmatpush.msra.mxu0 %v165
    %900 = vmatpush.msra.mxu0 %v164
    %901 = vmatmul.f32.gmra.mxu0 %v883
    %v902 = vpop.f32.mrf.mxu0
    %v903 = vadd.f32 0.0, %v902
    %904 = vdwg.mxu0
    %v905 = vmul.f32 %v903, %v161
    %906 = vmatpush.msra.mxu0 %v200
    %907 = vmatpush.msra.mxu0 %v199
    %908 = vmatpush.msra.mxu0 %v198
    %909 = vmatpush.msra.mxu0 %v197
    %910 = vmatpush.msra.mxu0 %v196
    %911 = vmatpush.msra.mxu0 %v195
    %912 = vmatpush.msra.mxu0 %v194
    %913 = vmatpush.msra.mxu0 %v193
    %914 = vmatpush.msra.mxu0 %v192
    %915 = vmatpush.msra.mxu0 %v191
    %916 = vmatpush.msra.mxu0 %v190
    %917 = vmatpush.msra.mxu0 %v189
    %918 = vmatpush.msra.mxu0 %v188
    %919 = vmatpush.msra.mxu0 %v187
    %920 = vmatpush.msra.mxu0 %v186
    %921 = vmatpush.msra.mxu0 %v185
    %922 = vmatmul.f32.gmra.mxu0 %v905
    %v923 = vpop.f32.mrf.mxu0
    %v924 = vadd.f32 0.0, %v923
    %925 = vdwg.mxu0
    %926 = vmatpush.msra.mxu0 %v183
    %927 = vmatpush.msra.mxu0 %v182
    %928 = vmatpush.msra.mxu0 %v181
    %929 = vmatpush.msra.mxu0 %v180
    %930 = vmatpush.msra.mxu0 %v179
    %931 = vmatpush.msra.mxu0 %v178
    %932 = vmatpush.msra.mxu0 %v177
    %933 = vmatpush.msra.mxu0 %v176
    %934 = vmatpush.msra.mxu0 %v175
    %935 = vmatpush.msra.mxu0 %v174
    %936 = vmatpush.msra.mxu0 %v173
    %937 = vmatpush.msra.mxu0 %v172
    %938 = vmatpush.msra.mxu0 %v171
    %939 = vmatpush.msra.mxu0 %v170
    %940 = vmatpush.msra.mxu0 %v169
    %941 = vmatpush.msra.mxu0 %v168
    %942 = vmatmul.f32.gmra.mxu0 %v880
    %v943 = vpop.f32.mrf.mxu0
    %v944 = vadd.f32 %v924, %v943
    %945 = vdwg.mxu0
    %v946 = vadd.f32 %v944, %v160
    %v947 = vxor.u32 %v946, 2147483648
    %v948 = vmul.f32 %v947, 1.442695
    %v949 = vpow.pop %v948
    %v950 = vadd.f32 %v949, 1.0
    %v951 = vrcp.pop %v950
    %v952 = vmul.f32 %v950, %v951
    %v953 = vsub.f32 1.0, %v952
    %v954 = vmul.f32 %v951, %v953
    %v955 = vadd.f32 %v951, %v954
    %vm956 = vweird.f32 %v950
    %vm957 = vweird.f32 %v951
    %vm958 = vmor %vm956, %vm957
    %v959 = vsel %vm958, %v951, %v955
    %v960 = vand.u32 2147483647, %v950
    %vm961 = vcmp.eq.f32.partialorder %v960, 8.507059e+37
    %v962 = vand.u32 %v950, 2147483648
    %v963 = vor.u32 1.1754944e-38, %v962
    %v964 = vsel %vm961, %v963, %v959
    %v965 = vmul.f32 1.0, %v964
    %v966 = vtanh.pop %v946
    %v967 = vmul.f32 %v965, %v773
    %969 = vrot.lane.b32.xlu0 %v966, 32
    %v970 = vpop.permute.xlu0 %969
    %v972 = vmul.f32 %v965, %v970
    %974 = vrot.lane.b32.xlu0 %v972, 32
    %v975 = vpop.permute.xlu0 %974
    %v977 = vadd.f32 %v967, %v975
    %v978 = vtanh.pop %v977
    %980 = vrot.lane.b32.xlu0 %v978, 32
    %v981 = vpop.permute.xlu0 %980
    %v983 = vmul.f32 %v965, %v981
    %v985 = vrot.slane %v983, 1
    %v986 = vrot.slane %v983, 2
    %v987 = vrot.slane %v983, 3
    %v988 = vrot.slane %v983, 4
    %v989 = vrot.slane %v983, 5
    %v990 = vrot.slane %v983, 6
    %v991 = vrot.slane %v983, 7
    %v992 = vperm.slane %v983, 0
    %v993 = vperm.slane %v985, 0
    %v994 = vperm.slane %v986, 0
    %v995 = vperm.slane %v987, 0
    %v996 = vperm.slane %v988, 0
    %v997 = vperm.slane %v989, 0
    %v998 = vperm.slane %v990, 0
    %v999 = vperm.slane %v991, 0
    %1000 = vrot.lane.b32.xlu0 %v992, 64
    %v1001 = vpop.permute.xlu0 %1000
    %1002 = vrot.lane.b32.xlu0 %v993, 64
    %v1003 = vpop.permute.xlu0 %1002
    %1004 = vrot.lane.b32.xlu0 %v994, 64
    %v1005 = vpop.permute.xlu0 %1004
    %1006 = vrot.lane.b32.xlu0 %v995, 64
    %v1007 = vpop.permute.xlu0 %1006
    %1008 = vrot.lane.b32.xlu0 %v996, 64
    %v1009 = vpop.permute.xlu0 %1008
    %1010 = vrot.lane.b32.xlu0 %v997, 64
    %v1011 = vpop.permute.xlu0 %1010
    %1012 = vrot.lane.b32.xlu0 %v998, 64
    %v1013 = vpop.permute.xlu0 %1012
    %1014 = vrot.lane.b32.xlu0 %v999, 64
    %v1015 = vpop.permute.xlu0 %1014
    %1024 = vst.msk [vmem:[#allocation4 + $0x3] sm:$0x1] %vm411, %v1001
    %1025 = vst.msk [vmem:[#allocation4 + $0xb] sm:$0x1] %vm411, %v1003
    %1026 = vst.msk [vmem:[#allocation4 + $0x13] sm:$0x1] %vm411, %v1005
    %1027 = vst.msk [vmem:[#allocation4 + $0x1b] sm:$0x1] %vm411, %v1007
    %1028 = vst.msk [vmem:[#allocation4 + $0x23] sm:$0x1] %vm411, %v1009
    %1029 = vst.msk [vmem:[#allocation4 + $0x2b] sm:$0x1] %vm411, %v1011
    %1030 = vst.msk [vmem:[#allocation4 + $0x33] sm:$0x1] %vm411, %v1013
    %1031 = vst.msk [vmem:[#allocation4 + $0x3b] sm:$0x1] %vm411, %v1015
    %v1032 = vld [vmem:[#allocation5 + $0x4] sm:$0x1]
    %v1033 = vld [vmem:[#allocation5 + $0xc] sm:$0x1]
    %v1034 = vld [vmem:[#allocation5 + $0x14] sm:$0x1]
    %v1035 = vld [vmem:[#allocation5 + $0x1c] sm:$0x1]
    %v1036 = vld [vmem:[#allocation5 + $0x24] sm:$0x1]
    %v1037 = vld [vmem:[#allocation5 + $0x2c] sm:$0x1]
    %v1038 = vld [vmem:[#allocation5 + $0x34] sm:$0x1]
    %v1039 = vld [vmem:[#allocation5 + $0x3c] sm:$0x1]
    %v1048 = vrot.slane %v1033, 7
    %v1049 = vsel %vm220, %v1048, %v1032
    %v1050 = vrot.slane %v1034, 6
    %v1051 = vsel %vm223, %v1050, %v1049
    %v1052 = vrot.slane %v1035, 5
    %v1053 = vsel %vm226, %v1052, %v1051
    %v1054 = vrot.slane %v1036, 4
    %v1055 = vsel %vm229, %v1054, %v1053
    %v1056 = vrot.slane %v1037, 3
    %v1057 = vsel %vm232, %v1056, %v1055
    %v1058 = vrot.slane %v1038, 2
    %v1059 = vsel %vm235, %v1058, %v1057
    %v1060 = vrot.slane %v1039, 1
    %v1061 = vsel %vm238, %v1060, %v1059
    %v1062 = vsel %vm240, %v1061, 0
    %1064 = vmatpush.msra.mxu0 0.0
    %1065 = vmatpush.msra.mxu0 0.0
    %1066 = vmatpush.msra.mxu0 0.0
    %1067 = vmatpush.msra.mxu0 0.0
    %1068 = vmatpush.msra.mxu0 0.0
    %1069 = vmatpush.msra.mxu0 0.0
    %1070 = vmatpush.msra.mxu0 0.0
    %1071 = vmatpush.msra.mxu0 0.0
    %1072 = vmatpush.msra.mxu0 0.0
    %1073 = vmatpush.msra.mxu0 0.0
    %1074 = vmatpush.msra.mxu0 0.0
    %1075 = vmatpush.msra.mxu0 0.0
    %1076 = vmatpush.msra.mxu0 0.0
    %1077 = vmatpush.msra.mxu0 0.0
    %1078 = vmatpush.msra.mxu0 %v163
    %1079 = vmatpush.msra.mxu0 %v162
    %1080 = vmatmul.f32.gmra.mxu0 %v1062
    %v1081 = vpop.f32.mrf.mxu0
    %v1082 = vadd.f32 0.0, %v1081
    %1083 = vdwg.mxu0
    %v1084 = vmul.f32 %v1082, %v159
    %1085 = vrot.lane.b32.xlu0 %v983, 64
    %v1086 = vpop.permute.xlu0 %1085
    %v1087 = vsel %vm264, %v1086, 0
    %1089 = vmatpush.msra.mxu0 0.0
    %1090 = vmatpush.msra.mxu0 0.0
    %1091 = vmatpush.msra.mxu0 0.0
    %1092 = vmatpush.msra.mxu0 0.0
    %1093 = vmatpush.msra.mxu0 0.0
    %1094 = vmatpush.msra.mxu0 0.0
    %1095 = vmatpush.msra.mxu0 0.0
    %1096 = vmatpush.msra.mxu0 0.0
    %1097 = vmatpush.msra.mxu0 0.0
    %1098 = vmatpush.msra.mxu0 0.0
    %1099 = vmatpush.msra.mxu0 0.0
    %1100 = vmatpush.msra.mxu0 0.0
    %1101 = vmatpush.msra.mxu0 %v167
    %1102 = vmatpush.msra.mxu0 %v166
    %1103 = vmatpush.msra.mxu0 %v165
    %1104 = vmatpush.msra.mxu0 %v164
    %1105 = vmatmul.f32.gmra.mxu0 %v1087
    %v1106 = vpop.f32.mrf.mxu0
    %v1107 = vadd.f32 0.0, %v1106
    %1108 = vdwg.mxu0
    %v1109 = vmul.f32 %v1107, %v161
    %1110 = vmatpush.msra.mxu0 %v200
    %1111 = vmatpush.msra.mxu0 %v199
    %1112 = vmatpush.msra.mxu0 %v198
    %1113 = vmatpush.msra.mxu0 %v197
    %1114 = vmatpush.msra.mxu0 %v196
    %1115 = vmatpush.msra.mxu0 %v195
    %1116 = vmatpush.msra.mxu0 %v194
    %1117 = vmatpush.msra.mxu0 %v193
    %1118 = vmatpush.msra.mxu0 %v192
    %1119 = vmatpush.msra.mxu0 %v191
    %1120 = vmatpush.msra.mxu0 %v190
    %1121 = vmatpush.msra.mxu0 %v189
    %1122 = vmatpush.msra.mxu0 %v188
    %1123 = vmatpush.msra.mxu0 %v187
    %1124 = vmatpush.msra.mxu0 %v186
    %1125 = vmatpush.msra.mxu0 %v185
    %1126 = vmatmul.f32.gmra.mxu0 %v1109
    %v1127 = vpop.f32.mrf.mxu0
    %v1128 = vadd.f32 0.0, %v1127
    %1129 = vdwg.mxu0
    %1130 = vmatpush.msra.mxu0 %v183
    %1131 = vmatpush.msra.mxu0 %v182
    %1132 = vmatpush.msra.mxu0 %v181
    %1133 = vmatpush.msra.mxu0 %v180
    %1134 = vmatpush.msra.mxu0 %v179
    %1135 = vmatpush.msra.mxu0 %v178
    %1136 = vmatpush.msra.mxu0 %v177
    %1137 = vmatpush.msra.mxu0 %v176
    %1138 = vmatpush.msra.mxu0 %v175
    %1139 = vmatpush.msra.mxu0 %v174
    %1140 = vmatpush.msra.mxu0 %v173
    %1141 = vmatpush.msra.mxu0 %v172
    %1142 = vmatpush.msra.mxu0 %v171
    %1143 = vmatpush.msra.mxu0 %v170
    %1144 = vmatpush.msra.mxu0 %v169
    %1145 = vmatpush.msra.mxu0 %v168
    %1146 = vmatmul.f32.gmra.mxu0 %v1084
    %v1147 = vpop.f32.mrf.mxu0
    %v1148 = vadd.f32 %v1128, %v1147
    %1149 = vdwg.mxu0
    %v1150 = vadd.f32 %v1148, %v160
    %v1151 = vxor.u32 %v1150, 2147483648
    %v1152 = vmul.f32 %v1151, 1.442695
    %v1153 = vpow.pop %v1152
    %v1154 = vadd.f32 %v1153, 1.0
    %v1155 = vrcp.pop %v1154
    %v1156 = vmul.f32 %v1154, %v1155
    %v1157 = vsub.f32 1.0, %v1156
    %v1158 = vmul.f32 %v1155, %v1157
    %v1159 = vadd.f32 %v1155, %v1158
    %vm1160 = vweird.f32 %v1154
    %vm1161 = vweird.f32 %v1155
    %vm1162 = vmor %vm1160, %vm1161
    %v1163 = vsel %vm1162, %v1155, %v1159
    %v1164 = vand.u32 2147483647, %v1154
    %vm1165 = vcmp.eq.f32.partialorder %v1164, 8.507059e+37
    %v1166 = vand.u32 %v1154, 2147483648
    %v1167 = vor.u32 1.1754944e-38, %v1166
    %v1168 = vsel %vm1165, %v1167, %v1163
    %v1169 = vmul.f32 1.0, %v1168
    %v1170 = vtanh.pop %v1150
    %v1171 = vmul.f32 %v1169, %v977
    %1173 = vrot.lane.b32.xlu0 %v1170, 32
    %v1174 = vpop.permute.xlu0 %1173
    %v1176 = vmul.f32 %v1169, %v1174
    %1178 = vrot.lane.b32.xlu0 %v1176, 32
    %v1179 = vpop.permute.xlu0 %1178
    %v1181 = vadd.f32 %v1171, %v1179
    %v1182 = vtanh.pop %v1181
    %1184 = vrot.lane.b32.xlu0 %v1182, 32
    %v1185 = vpop.permute.xlu0 %1184
    %v1187 = vmul.f32 %v1169, %v1185
    %v1189 = vrot.slane %v1187, 1
    %v1190 = vrot.slane %v1187, 2
    %v1191 = vrot.slane %v1187, 3
    %v1192 = vrot.slane %v1187, 4
    %v1193 = vrot.slane %v1187, 5
    %v1194 = vrot.slane %v1187, 6
    %v1195 = vrot.slane %v1187, 7
    %v1196 = vperm.slane %v1187, 0
    %v1197 = vperm.slane %v1189, 0
    %v1198 = vperm.slane %v1190, 0
    %v1199 = vperm.slane %v1191, 0
    %v1200 = vperm.slane %v1192, 0
    %v1201 = vperm.slane %v1193, 0
    %v1202 = vperm.slane %v1194, 0
    %v1203 = vperm.slane %v1195, 0
    %1204 = vrot.lane.b32.xlu0 %v1196, 64
    %v1205 = vpop.permute.xlu0 %1204
    %1206 = vrot.lane.b32.xlu0 %v1197, 64
    %v1207 = vpop.permute.xlu0 %1206
    %1208 = vrot.lane.b32.xlu0 %v1198, 64
    %v1209 = vpop.permute.xlu0 %1208
    %1210 = vrot.lane.b32.xlu0 %v1199, 64
    %v1211 = vpop.permute.xlu0 %1210
    %1212 = vrot.lane.b32.xlu0 %v1200, 64
    %v1213 = vpop.permute.xlu0 %1212
    %1214 = vrot.lane.b32.xlu0 %v1201, 64
    %v1215 = vpop.permute.xlu0 %1214
    %1216 = vrot.lane.b32.xlu0 %v1202, 64
    %v1217 = vpop.permute.xlu0 %1216
    %1218 = vrot.lane.b32.xlu0 %v1203, 64
    %v1219 = vpop.permute.xlu0 %1218
    %1228 = vst.msk [vmem:[#allocation4 + $0x4] sm:$0x1] %vm411, %v1205
    %1229 = vst.msk [vmem:[#allocation4 + $0xc] sm:$0x1] %vm411, %v1207
    %1230 = vst.msk [vmem:[#allocation4 + $0x14] sm:$0x1] %vm411, %v1209
    %1231 = vst.msk [vmem:[#allocation4 + $0x1c] sm:$0x1] %vm411, %v1211
    %1232 = vst.msk [vmem:[#allocation4 + $0x24] sm:$0x1] %vm411, %v1213
    %1233 = vst.msk [vmem:[#allocation4 + $0x2c] sm:$0x1] %vm411, %v1215
    %1234 = vst.msk [vmem:[#allocation4 + $0x34] sm:$0x1] %vm411, %v1217
    %1235 = vst.msk [vmem:[#allocation4 + $0x3c] sm:$0x1] %vm411, %v1219
    %v1236 = vld [vmem:[#allocation5 + $0x5] sm:$0x1]
    %v1237 = vld [vmem:[#allocation5 + $0xd] sm:$0x1]
    %v1238 = vld [vmem:[#allocation5 + $0x15] sm:$0x1]
    %v1239 = vld [vmem:[#allocation5 + $0x1d] sm:$0x1]
    %v1240 = vld [vmem:[#allocation5 + $0x25] sm:$0x1]
    %v1241 = vld [vmem:[#allocation5 + $0x2d] sm:$0x1]
    %v1242 = vld [vmem:[#allocation5 + $0x35] sm:$0x1]
    %v1243 = vld [vmem:[#allocation5 + $0x3d] sm:$0x1]
    %v1252 = vrot.slane %v1237, 7
    %v1253 = vsel %vm220, %v1252, %v1236
    %v1254 = vrot.slane %v1238, 6
    %v1255 = vsel %vm223, %v1254, %v1253
    %v1256 = vrot.slane %v1239, 5
    %v1257 = vsel %vm226, %v1256, %v1255
    %v1258 = vrot.slane %v1240, 4
    %v1259 = vsel %vm229, %v1258, %v1257
    %v1260 = vrot.slane %v1241, 3
    %v1261 = vsel %vm232, %v1260, %v1259
    %v1262 = vrot.slane %v1242, 2
    %v1263 = vsel %vm235, %v1262, %v1261
    %v1264 = vrot.slane %v1243, 1
    %v1265 = vsel %vm238, %v1264, %v1263
    %v1266 = vsel %vm240, %v1265, 0
    %1268 = vmatpush.msra.mxu0 0.0
    %1269 = vmatpush.msra.mxu0 0.0
    %1270 = vmatpush.msra.mxu0 0.0
    %1271 = vmatpush.msra.mxu0 0.0
    %1272 = vmatpush.msra.mxu0 0.0
    %1273 = vmatpush.msra.mxu0 0.0
    %1274 = vmatpush.msra.mxu0 0.0
    %1275 = vmatpush.msra.mxu0 0.0
    %1276 = vmatpush.msra.mxu0 0.0
    %1277 = vmatpush.msra.mxu0 0.0
    %1278 = vmatpush.msra.mxu0 0.0
    %1279 = vmatpush.msra.mxu0 0.0
    %1280 = vmatpush.msra.mxu0 0.0
    %1281 = vmatpush.msra.mxu0 0.0
    %1282 = vmatpush.msra.mxu0 %v163
    %1283 = vmatpush.msra.mxu0 %v162
    %1284 = vmatmul.f32.gmra.mxu0 %v1266
    %v1285 = vpop.f32.mrf.mxu0
    %v1286 = vadd.f32 0.0, %v1285
    %1287 = vdwg.mxu0
    %v1288 = vmul.f32 %v1286, %v159
    %1289 = vrot.lane.b32.xlu0 %v1187, 64
    %v1290 = vpop.permute.xlu0 %1289
    %v1291 = vsel %vm264, %v1290, 0
    %1293 = vmatpush.msra.mxu0 0.0
    %1294 = vmatpush.msra.mxu0 0.0
    %1295 = vmatpush.msra.mxu0 0.0
    %1296 = vmatpush.msra.mxu0 0.0
    %1297 = vmatpush.msra.mxu0 0.0
    %1298 = vmatpush.msra.mxu0 0.0
    %1299 = vmatpush.msra.mxu0 0.0
    %1300 = vmatpush.msra.mxu0 0.0
    %1301 = vmatpush.msra.mxu0 0.0
    %1302 = vmatpush.msra.mxu0 0.0
    %1303 = vmatpush.msra.mxu0 0.0
    %1304 = vmatpush.msra.mxu0 0.0
    %1305 = vmatpush.msra.mxu0 %v167
    %1306 = vmatpush.msra.mxu0 %v166
    %1307 = vmatpush.msra.mxu0 %v165
    %1308 = vmatpush.msra.mxu0 %v164
    %1309 = vmatmul.f32.gmra.mxu0 %v1291
    %v1310 = vpop.f32.mrf.mxu0
    %v1311 = vadd.f32 0.0, %v1310
    %1312 = vdwg.mxu0
    %v1313 = vmul.f32 %v1311, %v161
    %1314 = vmatpush.msra.mxu0 %v200
    %1315 = vmatpush.msra.mxu0 %v199
    %1316 = vmatpush.msra.mxu0 %v198
    %1317 = vmatpush.msra.mxu0 %v197
    %1318 = vmatpush.msra.mxu0 %v196
    %1319 = vmatpush.msra.mxu0 %v195
    %1320 = vmatpush.msra.mxu0 %v194
    %1321 = vmatpush.msra.mxu0 %v193
    %1322 = vmatpush.msra.mxu0 %v192
    %1323 = vmatpush.msra.mxu0 %v191
    %1324 = vmatpush.msra.mxu0 %v190
    %1325 = vmatpush.msra.mxu0 %v189
    %1326 = vmatpush.msra.mxu0 %v188
    %1327 = vmatpush.msra.mxu0 %v187
    %1328 = vmatpush.msra.mxu0 %v186
    %1329 = vmatpush.msra.mxu0 %v185
    %1330 = vmatmul.f32.gmra.mxu0 %v1313
    %v1331 = vpop.f32.mrf.mxu0
    %v1332 = vadd.f32 0.0, %v1331
    %1333 = vdwg.mxu0
    %1334 = vmatpush.msra.mxu0 %v183
    %1335 = vmatpush.msra.mxu0 %v182
    %1336 = vmatpush.msra.mxu0 %v181
    %1337 = vmatpush.msra.mxu0 %v180
    %1338 = vmatpush.msra.mxu0 %v179
    %1339 = vmatpush.msra.mxu0 %v178
    %1340 = vmatpush.msra.mxu0 %v177
    %1341 = vmatpush.msra.mxu0 %v176
    %1342 = vmatpush.msra.mxu0 %v175
    %1343 = vmatpush.msra.mxu0 %v174
    %1344 = vmatpush.msra.mxu0 %v173
    %1345 = vmatpush.msra.mxu0 %v172
    %1346 = vmatpush.msra.mxu0 %v171
    %1347 = vmatpush.msra.mxu0 %v170
    %1348 = vmatpush.msra.mxu0 %v169
    %1349 = vmatpush.msra.mxu0 %v168
    %1350 = vmatmul.f32.gmra.mxu0 %v1288
    %v1351 = vpop.f32.mrf.mxu0
    %v1352 = vadd.f32 %v1332, %v1351
    %1353 = vdwg.mxu0
    %v1354 = vadd.f32 %v1352, %v160
    %v1355 = vxor.u32 %v1354, 2147483648
    %v1356 = vmul.f32 %v1355, 1.442695
    %v1357 = vpow.pop %v1356
    %v1358 = vadd.f32 %v1357, 1.0
    %v1359 = vrcp.pop %v1358
    %v1360 = vmul.f32 %v1358, %v1359
    %v1361 = vsub.f32 1.0, %v1360
    %v1362 = vmul.f32 %v1359, %v1361
    %v1363 = vadd.f32 %v1359, %v1362
    %vm1364 = vweird.f32 %v1358
    %vm1365 = vweird.f32 %v1359
    %vm1366 = vmor %vm1364, %vm1365
    %v1367 = vsel %vm1366, %v1359, %v1363
    %v1368 = vand.u32 2147483647, %v1358
    %vm1369 = vcmp.eq.f32.partialorder %v1368, 8.507059e+37
    %v1370 = vand.u32 %v1358, 2147483648
    %v1371 = vor.u32 1.1754944e-38, %v1370
    %v1372 = vsel %vm1369, %v1371, %v1367
    %v1373 = vmul.f32 1.0, %v1372
    %v1374 = vtanh.pop %v1354
    %v1375 = vmul.f32 %v1373, %v1181
    %1377 = vrot.lane.b32.xlu0 %v1374, 32
    %v1378 = vpop.permute.xlu0 %1377
    %v1380 = vmul.f32 %v1373, %v1378
    %1382 = vrot.lane.b32.xlu0 %v1380, 32
    %v1383 = vpop.permute.xlu0 %1382
    %v1385 = vadd.f32 %v1375, %v1383
    %v1386 = vtanh.pop %v1385
    %1388 = vrot.lane.b32.xlu0 %v1386, 32
    %v1389 = vpop.permute.xlu0 %1388
    %v1391 = vmul.f32 %v1373, %v1389
    %v1393 = vrot.slane %v1391, 1
    %v1394 = vrot.slane %v1391, 2
    %v1395 = vrot.slane %v1391, 3
    %v1396 = vrot.slane %v1391, 4
    %v1397 = vrot.slane %v1391, 5
    %v1398 = vrot.slane %v1391, 6
    %v1399 = vrot.slane %v1391, 7
    %v1400 = vperm.slane %v1391, 0
    %v1401 = vperm.slane %v1393, 0
    %v1402 = vperm.slane %v1394, 0
    %v1403 = vperm.slane %v1395, 0
    %v1404 = vperm.slane %v1396, 0
    %v1405 = vperm.slane %v1397, 0
    %v1406 = vperm.slane %v1398, 0
    %v1407 = vperm.slane %v1399, 0
    %1408 = vrot.lane.b32.xlu0 %v1400, 64
    %v1409 = vpop.permute.xlu0 %1408
    %1410 = vrot.lane.b32.xlu0 %v1401, 64
    %v1411 = vpop.permute.xlu0 %1410
    %1412 = vrot.lane.b32.xlu0 %v1402, 64
    %v1413 = vpop.permute.xlu0 %1412
    %1414 = vrot.lane.b32.xlu0 %v1403, 64
    %v1415 = vpop.permute.xlu0 %1414
    %1416 = vrot.lane.b32.xlu0 %v1404, 64
    %v1417 = vpop.permute.xlu0 %1416
    %1418 = vrot.lane.b32.xlu0 %v1405, 64
    %v1419 = vpop.permute.xlu0 %1418
    %1420 = vrot.lane.b32.xlu0 %v1406, 64
    %v1421 = vpop.permute.xlu0 %1420
    %1422 = vrot.lane.b32.xlu0 %v1407, 64
    %v1423 = vpop.permute.xlu0 %1422
    %1432 = vst.msk [vmem:[#allocation4 + $0x5] sm:$0x1] %vm411, %v1409
    %1433 = vst.msk [vmem:[#allocation4 + $0xd] sm:$0x1] %vm411, %v1411
    %1434 = vst.msk [vmem:[#allocation4 + $0x15] sm:$0x1] %vm411, %v1413
    %1435 = vst.msk [vmem:[#allocation4 + $0x1d] sm:$0x1] %vm411, %v1415
    %1436 = vst.msk [vmem:[#allocation4 + $0x25] sm:$0x1] %vm411, %v1417
    %1437 = vst.msk [vmem:[#allocation4 + $0x2d] sm:$0x1] %vm411, %v1419
    %1438 = vst.msk [vmem:[#allocation4 + $0x35] sm:$0x1] %vm411, %v1421
    %1439 = vst.msk [vmem:[#allocation4 + $0x3d] sm:$0x1] %vm411, %v1423
    %v1440 = vld [vmem:[#allocation5 + $0x6] sm:$0x1]
    %v1441 = vld [vmem:[#allocation5 + $0xe] sm:$0x1]
    %v1442 = vld [vmem:[#allocation5 + $0x16] sm:$0x1]
    %v1443 = vld [vmem:[#allocation5 + $0x1e] sm:$0x1]
    %v1444 = vld [vmem:[#allocation5 + $0x26] sm:$0x1]
    %v1445 = vld [vmem:[#allocation5 + $0x2e] sm:$0x1]
    %v1446 = vld [vmem:[#allocation5 + $0x36] sm:$0x1]
    %v1447 = vld [vmem:[#allocation5 + $0x3e] sm:$0x1]
    %v1456 = vrot.slane %v1441, 7
    %v1457 = vsel %vm220, %v1456, %v1440
    %v1458 = vrot.slane %v1442, 6
    %v1459 = vsel %vm223, %v1458, %v1457
    %v1460 = vrot.slane %v1443, 5
    %v1461 = vsel %vm226, %v1460, %v1459
    %v1462 = vrot.slane %v1444, 4
    %v1463 = vsel %vm229, %v1462, %v1461
    %v1464 = vrot.slane %v1445, 3
    %v1465 = vsel %vm232, %v1464, %v1463
    %v1466 = vrot.slane %v1446, 2
    %v1467 = vsel %vm235, %v1466, %v1465
    %v1468 = vrot.slane %v1447, 1
    %v1469 = vsel %vm238, %v1468, %v1467
    %v1470 = vsel %vm240, %v1469, 0
    %1472 = vmatpush.msra.mxu0 0.0
    %1473 = vmatpush.msra.mxu0 0.0
    %1474 = vmatpush.msra.mxu0 0.0
    %1475 = vmatpush.msra.mxu0 0.0
    %1476 = vmatpush.msra.mxu0 0.0
    %1477 = vmatpush.msra.mxu0 0.0
    %1478 = vmatpush.msra.mxu0 0.0
    %1479 = vmatpush.msra.mxu0 0.0
    %1480 = vmatpush.msra.mxu0 0.0
    %1481 = vmatpush.msra.mxu0 0.0
    %1482 = vmatpush.msra.mxu0 0.0
    %1483 = vmatpush.msra.mxu0 0.0
    %1484 = vmatpush.msra.mxu0 0.0
    %1485 = vmatpush.msra.mxu0 0.0
    %1486 = vmatpush.msra.mxu0 %v163
    %1487 = vmatpush.msra.mxu0 %v162
    %1488 = vmatmul.f32.gmra.mxu0 %v1470
    %v1489 = vpop.f32.mrf.mxu0
    %v1490 = vadd.f32 0.0, %v1489
    %1491 = vdwg.mxu0
    %v1492 = vmul.f32 %v1490, %v159
    %1493 = vrot.lane.b32.xlu0 %v1391, 64
    %v1494 = vpop.permute.xlu0 %1493
    %v1495 = vsel %vm264, %v1494, 0
    %1497 = vmatpush.msra.mxu0 0.0
    %1498 = vmatpush.msra.mxu0 0.0
    %1499 = vmatpush.msra.mxu0 0.0
    %1500 = vmatpush.msra.mxu0 0.0
    %1501 = vmatpush.msra.mxu0 0.0
    %1502 = vmatpush.msra.mxu0 0.0
    %1503 = vmatpush.msra.mxu0 0.0
    %1504 = vmatpush.msra.mxu0 0.0
    %1505 = vmatpush.msra.mxu0 0.0
    %1506 = vmatpush.msra.mxu0 0.0
    %1507 = vmatpush.msra.mxu0 0.0
    %1508 = vmatpush.msra.mxu0 0.0
    %1509 = vmatpush.msra.mxu0 %v167
    %1510 = vmatpush.msra.mxu0 %v166
    %1511 = vmatpush.msra.mxu0 %v165
    %1512 = vmatpush.msra.mxu0 %v164
    %1513 = vmatmul.f32.gmra.mxu0 %v1495
    %v1514 = vpop.f32.mrf.mxu0
    %v1515 = vadd.f32 0.0, %v1514
    %1516 = vdwg.mxu0
    %v1517 = vmul.f32 %v1515, %v161
    %1518 = vmatpush.msra.mxu0 %v200
    %1519 = vmatpush.msra.mxu0 %v199
    %1520 = vmatpush.msra.mxu0 %v198
    %1521 = vmatpush.msra.mxu0 %v197
    %1522 = vmatpush.msra.mxu0 %v196
    %1523 = vmatpush.msra.mxu0 %v195
    %1524 = vmatpush.msra.mxu0 %v194
    %1525 = vmatpush.msra.mxu0 %v193
    %1526 = vmatpush.msra.mxu0 %v192
    %1527 = vmatpush.msra.mxu0 %v191
    %1528 = vmatpush.msra.mxu0 %v190
    %1529 = vmatpush.msra.mxu0 %v189
    %1530 = vmatpush.msra.mxu0 %v188
    %1531 = vmatpush.msra.mxu0 %v187
    %1532 = vmatpush.msra.mxu0 %v186
    %1533 = vmatpush.msra.mxu0 %v185
    %1534 = vmatmul.f32.gmra.mxu0 %v1517
    %v1535 = vpop.f32.mrf.mxu0
    %v1536 = vadd.f32 0.0, %v1535
    %1537 = vdwg.mxu0
    %1538 = vmatpush.msra.mxu0 %v183
    %1539 = vmatpush.msra.mxu0 %v182
    %1540 = vmatpush.msra.mxu0 %v181
    %1541 = vmatpush.msra.mxu0 %v180
    %1542 = vmatpush.msra.mxu0 %v179
    %1543 = vmatpush.msra.mxu0 %v178
    %1544 = vmatpush.msra.mxu0 %v177
    %1545 = vmatpush.msra.mxu0 %v176
    %1546 = vmatpush.msra.mxu0 %v175
    %1547 = vmatpush.msra.mxu0 %v174
    %1548 = vmatpush.msra.mxu0 %v173
    %1549 = vmatpush.msra.mxu0 %v172
    %1550 = vmatpush.msra.mxu0 %v171
    %1551 = vmatpush.msra.mxu0 %v170
    %1552 = vmatpush.msra.mxu0 %v169
    %1553 = vmatpush.msra.mxu0 %v168
    %1554 = vmatmul.f32.gmra.mxu0 %v1492
    %v1555 = vpop.f32.mrf.mxu0
    %v1556 = vadd.f32 %v1536, %v1555
    %1557 = vdwg.mxu0
    %v1558 = vadd.f32 %v1556, %v160
    %v1559 = vxor.u32 %v1558, 2147483648
    %v1560 = vmul.f32 %v1559, 1.442695
    %v1561 = vpow.pop %v1560
    %v1562 = vadd.f32 %v1561, 1.0
    %v1563 = vrcp.pop %v1562
    %v1564 = vmul.f32 %v1562, %v1563
    %v1565 = vsub.f32 1.0, %v1564
    %v1566 = vmul.f32 %v1563, %v1565
    %v1567 = vadd.f32 %v1563, %v1566
    %vm1568 = vweird.f32 %v1562
    %vm1569 = vweird.f32 %v1563
    %vm1570 = vmor %vm1568, %vm1569
    %v1571 = vsel %vm1570, %v1563, %v1567
    %v1572 = vand.u32 2147483647, %v1562
    %vm1573 = vcmp.eq.f32.partialorder %v1572, 8.507059e+37
    %v1574 = vand.u32 %v1562, 2147483648
    %v1575 = vor.u32 1.1754944e-38, %v1574
    %v1576 = vsel %vm1573, %v1575, %v1571
    %v1577 = vmul.f32 1.0, %v1576
    %v1578 = vtanh.pop %v1558
    %v1579 = vmul.f32 %v1577, %v1385
    %1581 = vrot.lane.b32.xlu0 %v1578, 32
    %v1582 = vpop.permute.xlu0 %1581
    %v1584 = vmul.f32 %v1577, %v1582
    %1586 = vrot.lane.b32.xlu0 %v1584, 32
    %v1587 = vpop.permute.xlu0 %1586
    %v1589 = vadd.f32 %v1579, %v1587
    %v1590 = vtanh.pop %v1589
    %1592 = vrot.lane.b32.xlu0 %v1590, 32
    %v1593 = vpop.permute.xlu0 %1592
    %v1595 = vmul.f32 %v1577, %v1593
    %v1597 = vrot.slane %v1595, 1
    %v1598 = vrot.slane %v1595, 2
    %v1599 = vrot.slane %v1595, 3
    %v1600 = vrot.slane %v1595, 4
    %v1601 = vrot.slane %v1595, 5
    %v1602 = vrot.slane %v1595, 6
    %v1603 = vrot.slane %v1595, 7
    %v1604 = vperm.slane %v1595, 0
    %v1605 = vperm.slane %v1597, 0
    %v1606 = vperm.slane %v1598, 0
    %v1607 = vperm.slane %v1599, 0
    %v1608 = vperm.slane %v1600, 0
    %v1609 = vperm.slane %v1601, 0
    %v1610 = vperm.slane %v1602, 0
    %v1611 = vperm.slane %v1603, 0
    %1612 = vrot.lane.b32.xlu0 %v1604, 64
    %v1613 = vpop.permute.xlu0 %1612
    %1614 = vrot.lane.b32.xlu0 %v1605, 64
    %v1615 = vpop.permute.xlu0 %1614
    %1616 = vrot.lane.b32.xlu0 %v1606, 64
    %v1617 = vpop.permute.xlu0 %1616
    %1618 = vrot.lane.b32.xlu0 %v1607, 64
    %v1619 = vpop.permute.xlu0 %1618
    %1620 = vrot.lane.b32.xlu0 %v1608, 64
    %v1621 = vpop.permute.xlu0 %1620
    %1622 = vrot.lane.b32.xlu0 %v1609, 64
    %v1623 = vpop.permute.xlu0 %1622
    %1624 = vrot.lane.b32.xlu0 %v1610, 64
    %v1625 = vpop.permute.xlu0 %1624
    %1626 = vrot.lane.b32.xlu0 %v1611, 64
    %v1627 = vpop.permute.xlu0 %1626
    %1636 = vst.msk [vmem:[#allocation4 + $0x6] sm:$0x1] %vm411, %v1613
    %1637 = vst.msk [vmem:[#allocation4 + $0xe] sm:$0x1] %vm411, %v1615
    %1638 = vst.msk [vmem:[#allocation4 + $0x16] sm:$0x1] %vm411, %v1617
    %1639 = vst.msk [vmem:[#allocation4 + $0x1e] sm:$0x1] %vm411, %v1619
    %1640 = vst.msk [vmem:[#allocation4 + $0x26] sm:$0x1] %vm411, %v1621
    %1641 = vst.msk [vmem:[#allocation4 + $0x2e] sm:$0x1] %vm411, %v1623
    %1642 = vst.msk [vmem:[#allocation4 + $0x36] sm:$0x1] %vm411, %v1625
    %1643 = vst.msk [vmem:[#allocation4 + $0x3e] sm:$0x1] %vm411, %v1627
    %v1644 = vld [vmem:[#allocation5 + $0x7] sm:$0x1]
    %v1645 = vld [vmem:[#allocation5 + $0xf] sm:$0x1]
    %v1646 = vld [vmem:[#allocation5 + $0x17] sm:$0x1]
    %v1647 = vld [vmem:[#allocation5 + $0x1f] sm:$0x1]
    %v1648 = vld [vmem:[#allocation5 + $0x27] sm:$0x1]
    %v1649 = vld [vmem:[#allocation5 + $0x2f] sm:$0x1]
    %v1650 = vld [vmem:[#allocation5 + $0x37] sm:$0x1]
    %v1651 = vld [vmem:[#allocation5 + $0x3f] sm:$0x1]
    %v1660 = vrot.slane %v1645, 7
    %v1661 = vsel %vm220, %v1660, %v1644
    %v1662 = vrot.slane %v1646, 6
    %v1663 = vsel %vm223, %v1662, %v1661
    %v1664 = vrot.slane %v1647, 5
    %v1665 = vsel %vm226, %v1664, %v1663
    %v1666 = vrot.slane %v1648, 4
    %v1667 = vsel %vm229, %v1666, %v1665
    %v1668 = vrot.slane %v1649, 3
    %v1669 = vsel %vm232, %v1668, %v1667
    %v1670 = vrot.slane %v1650, 2
    %v1671 = vsel %vm235, %v1670, %v1669
    %v1672 = vrot.slane %v1651, 1
    %v1673 = vsel %vm238, %v1672, %v1671
    %v1674 = vsel %vm240, %v1673, 0
    %1676 = vmatpush.msra.mxu0 0.0
    %1677 = vmatpush.msra.mxu0 0.0
    %1678 = vmatpush.msra.mxu0 0.0
    %1679 = vmatpush.msra.mxu0 0.0
    %1680 = vmatpush.msra.mxu0 0.0
    %1681 = vmatpush.msra.mxu0 0.0
    %1682 = vmatpush.msra.mxu0 0.0
    %1683 = vmatpush.msra.mxu0 0.0
    %1684 = vmatpush.msra.mxu0 0.0
    %1685 = vmatpush.msra.mxu0 0.0
    %1686 = vmatpush.msra.mxu0 0.0
    %1687 = vmatpush.msra.mxu0 0.0
    %1688 = vmatpush.msra.mxu0 0.0
    %1689 = vmatpush.msra.mxu0 0.0
    %1690 = vmatpush.msra.mxu0 %v163
    %1691 = vmatpush.msra.mxu0 %v162
    %1692 = vmatmul.f32.gmra.mxu0 %v1674
    %v1693 = vpop.f32.mrf.mxu0
    %v1694 = vadd.f32 0.0, %v1693
    %1695 = vdwg.mxu0
    %v1696 = vmul.f32 %v1694, %v159
    %1697 = vrot.lane.b32.xlu0 %v1595, 64
    %v1698 = vpop.permute.xlu0 %1697
    %v1699 = vsel %vm264, %v1698, 0
    %1701 = vmatpush.msra.mxu0 0.0
    %1702 = vmatpush.msra.mxu0 0.0
    %1703 = vmatpush.msra.mxu0 0.0
    %1704 = vmatpush.msra.mxu0 0.0
    %1705 = vmatpush.msra.mxu0 0.0
    %1706 = vmatpush.msra.mxu0 0.0
    %1707 = vmatpush.msra.mxu0 0.0
    %1708 = vmatpush.msra.mxu0 0.0
    %1709 = vmatpush.msra.mxu0 0.0
    %1710 = vmatpush.msra.mxu0 0.0
    %1711 = vmatpush.msra.mxu0 0.0
    %1712 = vmatpush.msra.mxu0 0.0
    %1713 = vmatpush.msra.mxu0 %v167
    %1714 = vmatpush.msra.mxu0 %v166
    %1715 = vmatpush.msra.mxu0 %v165
    %1716 = vmatpush.msra.mxu0 %v164
    %1717 = vmatmul.f32.gmra.mxu0 %v1699
    %v1718 = vpop.f32.mrf.mxu0
    %v1719 = vadd.f32 0.0, %v1718
    %1720 = vdwg.mxu0
    %v1721 = vmul.f32 %v1719, %v161
    %1722 = vmatpush.msra.mxu0 %v200
    %1723 = vmatpush.msra.mxu0 %v199
    %1724 = vmatpush.msra.mxu0 %v198
    %1725 = vmatpush.msra.mxu0 %v197
    %1726 = vmatpush.msra.mxu0 %v196
    %1727 = vmatpush.msra.mxu0 %v195
    %1728 = vmatpush.msra.mxu0 %v194
    %1729 = vmatpush.msra.mxu0 %v193
    %1730 = vmatpush.msra.mxu0 %v192
    %1731 = vmatpush.msra.mxu0 %v191
    %1732 = vmatpush.msra.mxu0 %v190
    %1733 = vmatpush.msra.mxu0 %v189
    %1734 = vmatpush.msra.mxu0 %v188
    %1735 = vmatpush.msra.mxu0 %v187
    %1736 = vmatpush.msra.mxu0 %v186
    %1737 = vmatpush.msra.mxu0 %v185
    %1738 = vmatmul.f32.gmra.mxu0 %v1721
    %v1739 = vpop.f32.mrf.mxu0
    %v1740 = vadd.f32 0.0, %v1739
    %1741 = vdwg.mxu0
    %1742 = vmatpush.msra.mxu0 %v183
    %1743 = vmatpush.msra.mxu0 %v182
    %1744 = vmatpush.msra.mxu0 %v181
    %1745 = vmatpush.msra.mxu0 %v180
    %1746 = vmatpush.msra.mxu0 %v179
    %1747 = vmatpush.msra.mxu0 %v178
    %1748 = vmatpush.msra.mxu0 %v177
    %1749 = vmatpush.msra.mxu0 %v176
    %1750 = vmatpush.msra.mxu0 %v175
    %1751 = vmatpush.msra.mxu0 %v174
    %1752 = vmatpush.msra.mxu0 %v173
    %1753 = vmatpush.msra.mxu0 %v172
    %1754 = vmatpush.msra.mxu0 %v171
    %1755 = vmatpush.msra.mxu0 %v170
    %1756 = vmatpush.msra.mxu0 %v169
    %1757 = vmatpush.msra.mxu0 %v168
    %1758 = vmatmul.f32.gmra.mxu0 %v1696
    %v1759 = vpop.f32.mrf.mxu0
    %v1760 = vadd.f32 %v1740, %v1759
    %1761 = vdwg.mxu0
    %v1762 = vadd.f32 %v1760, %v160
    %v1763 = vxor.u32 %v1762, 2147483648
    %v1764 = vmul.f32 %v1763, 1.442695
    %v1765 = vpow.pop %v1764
    %v1766 = vadd.f32 %v1765, 1.0
    %v1767 = vrcp.pop %v1766
    %v1768 = vmul.f32 %v1766, %v1767
    %v1769 = vsub.f32 1.0, %v1768
    %v1770 = vmul.f32 %v1767, %v1769
    %v1771 = vadd.f32 %v1767, %v1770
    %vm1772 = vweird.f32 %v1766
    %vm1773 = vweird.f32 %v1767
    %vm1774 = vmor %vm1772, %vm1773
    %v1775 = vsel %vm1774, %v1767, %v1771
    %v1776 = vand.u32 2147483647, %v1766
    %vm1777 = vcmp.eq.f32.partialorder %v1776, 8.507059e+37
    %v1778 = vand.u32 %v1766, 2147483648
    %v1779 = vor.u32 1.1754944e-38, %v1778
    %v1780 = vsel %vm1777, %v1779, %v1775
    %v1781 = vmul.f32 1.0, %v1780
    %v1782 = vtanh.pop %v1762
    %v1783 = vmul.f32 %v1781, %v1589
    %1785 = vrot.lane.b32.xlu0 %v1782, 32
    %v1786 = vpop.permute.xlu0 %1785
    %v1788 = vmul.f32 %v1781, %v1786
    %1790 = vrot.lane.b32.xlu0 %v1788, 32
    %v1791 = vpop.permute.xlu0 %1790
    %v1793 = vadd.f32 %v1783, %v1791
    %v1794 = vtanh.pop %v1793
    %1796 = vrot.lane.b32.xlu0 %v1794, 32
    %v1797 = vpop.permute.xlu0 %1796
    %v1799 = vmul.f32 %v1781, %v1797
    %v1801 = vrot.slane %v1799, 1
    %v1802 = vrot.slane %v1799, 2
    %v1803 = vrot.slane %v1799, 3
    %v1804 = vrot.slane %v1799, 4
    %v1805 = vrot.slane %v1799, 5
    %v1806 = vrot.slane %v1799, 6
    %v1807 = vrot.slane %v1799, 7
    %v1808 = vperm.slane %v1799, 0
    %v1809 = vperm.slane %v1801, 0
    %v1810 = vperm.slane %v1802, 0
    %v1811 = vperm.slane %v1803, 0
    %v1812 = vperm.slane %v1804, 0
    %v1813 = vperm.slane %v1805, 0
    %v1814 = vperm.slane %v1806, 0
    %v1815 = vperm.slane %v1807, 0
    %1816 = vrot.lane.b32.xlu0 %v1808, 64
    %v1817 = vpop.permute.xlu0 %1816
    %1818 = vrot.lane.b32.xlu0 %v1809, 64
    %v1819 = vpop.permute.xlu0 %1818
    %1820 = vrot.lane.b32.xlu0 %v1810, 64
    %v1821 = vpop.permute.xlu0 %1820
    %1822 = vrot.lane.b32.xlu0 %v1811, 64
    %v1823 = vpop.permute.xlu0 %1822
    %1824 = vrot.lane.b32.xlu0 %v1812, 64
    %v1825 = vpop.permute.xlu0 %1824
    %1826 = vrot.lane.b32.xlu0 %v1813, 64
    %v1827 = vpop.permute.xlu0 %1826
    %1828 = vrot.lane.b32.xlu0 %v1814, 64
    %v1829 = vpop.permute.xlu0 %1828
    %1830 = vrot.lane.b32.xlu0 %v1815, 64
    %v1831 = vpop.permute.xlu0 %1830
    %1840 = vst.msk [vmem:[#allocation4 + $0x7] sm:$0x1] %vm411, %v1817
    %1841 = vst.msk [vmem:[#allocation4 + $0xf] sm:$0x1] %vm411, %v1819
    %1842 = vst.msk [vmem:[#allocation4 + $0x17] sm:$0x1] %vm411, %v1821
    %1843 = vst.msk [vmem:[#allocation4 + $0x1f] sm:$0x1] %vm411, %v1823
    %1844 = vst.msk [vmem:[#allocation4 + $0x27] sm:$0x1] %vm411, %v1825
    %1845 = vst.msk [vmem:[#allocation4 + $0x2f] sm:$0x1] %vm411, %v1827
    %1846 = vst.msk [vmem:[#allocation4 + $0x37] sm:$0x1] %vm411, %v1829
    %1847 = vst.msk [vmem:[#allocation4 + $0x3f] sm:$0x1] %vm411, %v1831
    %1848 = vrot.lane.b32.xlu0 %v1799, 64
    %v1849 = vpop.permute.xlu0 %1848
    %1851 = vst.msk [vmem:[#allocation2] sm:$0xff] %vm264, %v1849
    %1853 = vrot.lane.b32.xlu0 %v1793, 96
    %v1854 = vpop.permute.xlu0 %1853
    %1856 = vst.msk [vmem:[#allocation3] sm:$0xff] %vm264, %v1854
    %v1857 = vld [vmem:[#allocation4] sm:$0xff]
    %v1858 = vld [vmem:[#allocation4 + $0x8] sm:$0xff]
    %v1859 = vld [vmem:[#allocation4 + $0x10] sm:$0xff]
    %v1860 = vld [vmem:[#allocation4 + $0x18] sm:$0xff]
    %v1861 = vld [vmem:[#allocation4 + $0x20] sm:$0xff]
    %v1862 = vld [vmem:[#allocation4 + $0x28] sm:$0xff]
    %v1863 = vld [vmem:[#allocation4 + $0x30] sm:$0xff]
    %v1864 = vld [vmem:[#allocation4 + $0x38] sm:$0xff]
    %v1865 = vld [vmem:[#allocation17] sm:$0xff]
    %v1866 = vld [vmem:[#allocation17 + $0x8] sm:$0xff]
    %v1867 = vld [vmem:[#allocation17 + $0x10] sm:$0xff]
    %v1868 = vld [vmem:[#allocation17 + $0x18] sm:$0xff]
    %v1869 = vld [vmem:[%s8] sm:$0x1]
    %v1871 = vperm.slane %v1869, 0
    %v1874 = vsel %vm264, %v1857, 0
    %v1877 = vsel %vm264, %v1858, 0
    %v1880 = vsel %vm264, %v1859, 0
    %v1883 = vsel %vm264, %v1860, 0
    %v1886 = vsel %vm264, %v1861, 0
    %v1889 = vsel %vm264, %v1862, 0
    %v1892 = vsel %vm264, %v1863, 0
    %v1895 = vsel %vm264, %v1864, 0
    %1897 = vmatpush.msra.mxu0 0.0
    %1898 = vmatpush.msra.mxu0 0.0
    %1899 = vmatpush.msra.mxu0 0.0
    %1900 = vmatpush.msra.mxu0 0.0
    %1901 = vmatpush.msra.mxu0 0.0
    %1902 = vmatpush.msra.mxu0 0.0
    %1903 = vmatpush.msra.mxu0 0.0
    %1904 = vmatpush.msra.mxu0 0.0
    %1905 = vmatpush.msra.mxu0 0.0
    %1906 = vmatpush.msra.mxu0 0.0
    %1907 = vmatpush.msra.mxu0 0.0
    %1908 = vmatpush.msra.mxu0 0.0
    %1909 = vmatpush.msra.mxu0 %v1868
    %1910 = vmatpush.msra.mxu0 %v1867
    %1911 = vmatpush.msra.mxu0 %v1866
    %1912 = vmatpush.msra.mxu0 %v1865
    %1913 = vmatmul.f32.gmra.mxu0 %v1874
    %v1914 = vpop.f32.mrf.mxu0
    %v1915 = vadd.f32 %v1871, %v1914
    %1916 = vmatmul.f32.gmra.mxu0 %v1877
    %v1917 = vpop.f32.mrf.mxu0
    %v1918 = vadd.f32 %v1871, %v1917
    %1919 = vmatmul.f32.gmra.mxu0 %v1880
    %v1920 = vpop.f32.mrf.mxu0
    %v1921 = vadd.f32 %v1871, %v1920
    %1922 = vmatmul.f32.gmra.mxu0 %v1883
    %v1923 = vpop.f32.mrf.mxu0
    %v1924 = vadd.f32 %v1871, %v1923
    %1925 = vmatmul.f32.gmra.mxu0 %v1886
    %v1926 = vpop.f32.mrf.mxu0
    %v1927 = vadd.f32 %v1871, %v1926
    %1928 = vmatmul.f32.gmra.mxu0 %v1889
    %v1929 = vpop.f32.mrf.mxu0
    %v1930 = vadd.f32 %v1871, %v1929
    %1931 = vmatmul.f32.gmra.mxu0 %v1892
    %v1932 = vpop.f32.mrf.mxu0
    %v1933 = vadd.f32 %v1871, %v1932
    %1934 = vmatmul.f32.gmra.mxu0 %v1895
    %v1935 = vpop.f32.mrf.mxu0
    %v1936 = vadd.f32 %v1871, %v1935
    %1937 = vdwg.mxu0
    %1938 = vmax.xlane.f32.xlu0 %v1915
    %v1939 = vpop.xlane.xlu0 %1938
    %1940 = vmax.xlane.f32.xlu0 %v1918
    %v1941 = vpop.xlane.xlu0 %1940
    %1942 = vmax.xlane.f32.xlu0 %v1921
    %v1943 = vpop.xlane.xlu0 %1942
    %1944 = vmax.xlane.f32.xlu0 %v1924
    %v1945 = vpop.xlane.xlu0 %1944
    %1946 = vmax.xlane.f32.xlu0 %v1927
    %v1947 = vpop.xlane.xlu0 %1946
    %1948 = vmax.xlane.f32.xlu0 %v1930
    %v1949 = vpop.xlane.xlu0 %1948
    %1950 = vmax.xlane.f32.xlu0 %v1933
    %v1951 = vpop.xlane.xlu0 %1950
    %1952 = vmax.xlane.f32.xlu0 %v1936
    %v1953 = vpop.xlane.xlu0 %1952
    %v1954 = vsub.f32 %v1915, %v1939
    %v1955 = vsub.f32 %v1918, %v1941
    %v1956 = vsub.f32 %v1921, %v1943
    %v1957 = vsub.f32 %v1924, %v1945
    %v1958 = vsub.f32 %v1927, %v1947
    %v1959 = vsub.f32 %v1930, %v1949
    %v1960 = vsub.f32 %v1933, %v1951
    %v1961 = vsub.f32 %v1936, %v1953
    %v1962 = vmul.f32 %v1954, 1.442695
    %v1963 = vpow.pop %v1962
    %v1964 = vmul.f32 %v1955, 1.442695
    %v1965 = vpow.pop %v1964
    %v1966 = vmul.f32 %v1956, 1.442695
    %v1967 = vpow.pop %v1966
    %v1968 = vmul.f32 %v1957, 1.442695
    %v1969 = vpow.pop %v1968
    %v1970 = vmul.f32 %v1958, 1.442695
    %v1971 = vpow.pop %v1970
    %v1972 = vmul.f32 %v1959, 1.442695
    %v1973 = vpow.pop %v1972
    %v1974 = vmul.f32 %v1960, 1.442695
    %v1975 = vpow.pop %v1974
    %v1976 = vmul.f32 %v1961, 1.442695
    %v1977 = vpow.pop %v1976
    %1978 = vadd.xlane.f32.xlu0 %v1963
    %v1979 = vpop.xlane.xlu0 %1978
    %1980 = vadd.xlane.f32.xlu0 %v1965
    %v1981 = vpop.xlane.xlu0 %1980
    %1982 = vadd.xlane.f32.xlu0 %v1967
    %v1983 = vpop.xlane.xlu0 %1982
    %1984 = vadd.xlane.f32.xlu0 %v1969
    %v1985 = vpop.xlane.xlu0 %1984
    %1986 = vadd.xlane.f32.xlu0 %v1971
    %v1987 = vpop.xlane.xlu0 %1986
    %1988 = vadd.xlane.f32.xlu0 %v1973
    %v1989 = vpop.xlane.xlu0 %1988
    %1990 = vadd.xlane.f32.xlu0 %v1975
    %v1991 = vpop.xlane.xlu0 %1990
    %1992 = vadd.xlane.f32.xlu0 %v1977
    %v1993 = vpop.xlane.xlu0 %1992
    %v1994 = vlog2.pop %v1979
    %v1995 = vmul.f32 %v1994, 0.6931472
    %v1996 = vlog2.pop %v1981
    %v1997 = vmul.f32 %v1996, 0.6931472
    %v1998 = vlog2.pop %v1983
    %v1999 = vmul.f32 %v1998, 0.6931472
    %v2000 = vlog2.pop %v1985
    %v2001 = vmul.f32 %v2000, 0.6931472
    %v2002 = vlog2.pop %v1987
    %v2003 = vmul.f32 %v2002, 0.6931472
    %v2004 = vlog2.pop %v1989
    %v2005 = vmul.f32 %v2004, 0.6931472
    %v2006 = vlog2.pop %v1991
    %v2007 = vmul.f32 %v2006, 0.6931472
    %v2008 = vlog2.pop %v1993
    %v2009 = vmul.f32 %v2008, 0.6931472
    %v2010 = vsub.f32 %v1954, %v1995
    %v2011 = vsub.f32 %v1955, %v1997
    %v2012 = vsub.f32 %v1956, %v1999
    %v2013 = vsub.f32 %v1957, %v2001
    %v2014 = vsub.f32 %v1958, %v2003
    %v2015 = vsub.f32 %v1959, %v2005
    %v2016 = vsub.f32 %v1960, %v2007
    %v2017 = vsub.f32 %v1961, %v2009
    %2018 = vst [vmem:[#allocation19] sm:$0xff] %v2010
    %2019 = vst [vmem:[#allocation19 + $0x8] sm:$0xff] %v2011
    %2020 = vst [vmem:[#allocation19 + $0x10] sm:$0xff] %v2012
    %2021 = vst [vmem:[#allocation19 + $0x18] sm:$0xff] %v2013
    %2022 = vst [vmem:[#allocation19 + $0x20] sm:$0xff] %v2014
    %2023 = vst [vmem:[#allocation19 + $0x28] sm:$0xff] %v2015
    %2024 = vst [vmem:[#allocation19 + $0x30] sm:$0xff] %v2016
    %2025 = vst [vmem:[#allocation19 + $0x38] sm:$0xff] %v2017
    // Predicated region
    $region74: #{tpu_custom_call.1} parent=1 // pred_check
      _
    $region75: #{tpu_custom_call.1} parent=1 // pred_check_branch
      %2027 = sbr.rel (0) target = $region77
    $region76: #{tpu_custom_call.1} parent=1 // pred_region
      %2029 = vsyncadd [#allocation7], 0
      %s2030 = sshll.u32 [#allocation19], 4
      %s2031 = int_to_ptr.vmem [resolvable:$true] %s2030
      %s2032 = sshll.u32 %s9, 4
      %s2033 = int_to_ptr.hbm [resolvable:$true] %s2032
      %2038 = dma.vmem_to_hbm [thread:$0]  %s2031, 1024, %s2033, [#allocation7], 128, 128, 8
    $region77: #{tpu_custom_call.1} parent=1 // pred_fallthru
      _
    // Predicated region
    $region78: #{tpu_custom_call.1} parent=1 // pred_check
      _
    $region79: #{tpu_custom_call.1} parent=1 // pred_check_branch
      %2040 = sbr.rel (0) target = $region81
    $region80: #{tpu_custom_call.1} parent=1 // pred_region
      %2042 = dma.done [#allocation7], 1024
    $region81: #{tpu_custom_call.1} parent=1 // pred_fallthru
      _
    %2043 = vsyncpa [#allocation6], 1
    %2044 = vsyncpa [#allocation9], 1
    %2045 = vsyncpa [#allocation12], 1
    %2046 = vsyncpa [#allocation15], 1
    %2047 = vsyncpa [#allocation18], 1
    %2048 = vsyncpa [#allocation7], 1

// kernel: tpu_custom_call.1
$region0: #{tpu_custom_call.1}
  #allocation0 [shape = 'u32[]', space=smem, size = 0x4, offset = 0x4, fixed_abs, tag = 'smem constant byte address 0x4 - core index']
  #allocation1 [shape = 'u32[72,128]{1,0:T(1,128)}', space=vmem, size = 0x9000, scoped, tag = 'internal scratch']
  #allocation2 [shape = 'f32[8,32]{1,0:T(8,128)}', space=vmem, size = 0x1000, scoped, tag = 'scratch operand']
  #allocation3 [shape = 'f32[8,32]{1,0:T(8,128)}', space=vmem, size = 0x1000, scoped, tag = 'scratch operand']
  #allocation4 [shape = 'f32[8,8,32]{2,1,0:T(8,128)}', space=vmem, size = 0x8000, scoped, tag = 'scratch operand']
  %s0 = inlined_call_operand.hbm [shape: f32[8,8,16], index: 0, kind: input, shape index: {}]
  %s1 = inlined_call_operand.hbm [shape: f32[8,128], index: 1, kind: input, shape index: {}]
  %s2 = inlined_call_operand.hbm [shape: f32[8,128], index: 2, kind: input, shape index: {}]
  %s3 = inlined_call_operand.hbm [shape: f32[8,128], index: 3, kind: input, shape index: {}]
  %s4 = inlined_call_operand.hbm [shape: f32[16,128], index: 4, kind: input, shape index: {}]
  %s5 = inlined_call_operand.hbm [shape: f32[2,128,128], index: 5, kind: input, shape index: {}]
  %s6 = inlined_call_operand.hbm [shape: f32[32,128], index: 6, kind: input, shape index: {}]
  %s7 = inlined_call_operand.hbm [shape: f32[32,128], index: 7, kind: input, shape index: {}]
  %s8 = inlined_call_operand.vmem [shape: f32[1,128], index: 8, kind: input, shape index: {}]
  %s9 = inlined_call_operand.hbm [shape: f32[8,8,128], index: 9, kind: output, shape index: {}]
  %s10 = sld [smem:[#allocation0]]
  $region82: #{tpu_custom_call.1} parent=0
    _
  %s12 = ssub.s32 1, %s10
  %s13 = scalar_select 0, %s12, %s10
  $region1: #{tpu_custom_call.1} parent=0
    #allocation5 [shape = 'u8[32768]{0}', space=vmem, size = 0x8000, scoped, tag = 'input window, operand 0, single buffered']
    #allocation6 [shape = 's32[1]{0}', space=sflag, size = 0x4, scoped, tag = 'scoped memory for tpu_custom_call.1']
    #allocation7 [shape = 's32[1]{0}', space=sflag, size = 0x4, scoped, tag = 'scoped memory for tpu_custom_call.1']
    #allocation8 [shape = 'u8[4096]{0}', space=vmem, size = 0x1000, scoped, tag = 'input window, operand 1, single buffered']
    #allocation9 [shape = 's32[1]{0}', space=sflag, size = 0x4, scoped, tag = 'scoped memory for tpu_custom_call.1']
    #allocation10 [shape = 'u8[4096]{0}', space=vmem, size = 0x1000, scoped, tag = 'input window, operand 2, single buffered']
    #allocation11 [shape = 'u8[4096]{0}', space=vmem, size = 0x1000, scoped, tag = 'input window, operand 3, single buffered']
    #allocation12 [shape = 's32[1]{0}', space=sflag, size = 0x4, scoped, tag = 'scoped memory for tpu_custom_call.1']
    #allocation13 [shape = 'u8[8192]{0}', space=vmem, size = 0x2000, scoped, tag = 'input window, operand 4, single buffered']
    #allocation14 [shape = 'u8[131072]{0}', space=vmem, size = 0x20000, scoped, tag = 'input window, operand 5, single buffered']
    #allocation15 [shape = 's32[1]{0}', space=sflag, size = 0x4, scoped, tag = 'scoped memory for tpu_custom_call.1']
    #allocation16 [shape = 'u8[16384]{0}', space=vmem, size = 0x4000, scoped, tag = 'input window, operand 6, single buffered']
    #allocation17 [shape = 'u8[16384]{0}', space=vmem, size = 0x4000, scoped, tag = 'input window, operand 7, single buffered']
    #allocation18 [shape = 's32[1]{0}', space=sflag, size = 0x4, scoped, tag = 'scoped memory for tpu_custom_call.1']
    #allocation19 [shape = 'u8[32768]{0}', space=vmem, size = 0x8000, scoped, tag = 'output window, operand 0, single buffered']
    %14 = vsyncpa [#allocation6], 0
    %15 = vsyncpa [#allocation9], 0
    %16 = vsyncpa [#allocation12], 0
    %17 = vsyncpa [#allocation15], 0
    %18 = vsyncpa [#allocation18], 0
    %19 = vsyncpa [#allocation7], 0
    // Predicated region
    $region2: #{tpu_custom_call.1} parent=1 // pred_check
      _
    $region3: #{tpu_custom_call.1} parent=1 // pred_check_branch
      %21 = sbr.rel (0) target = $region5
    $region4: #{tpu_custom_call.1} parent=1 // pred_region
      %23 = vsyncadd [#allocation6], 0
      %s24 = sshll.u32 %s0, 4
      %s25 = int_to_ptr.hbm [resolvable:$true] %s24
      %s26 = sshll.u32 [#allocation5], 4
      %s27 = int_to_ptr.vmem [resolvable:$true] %s26
      %32 = dma.hbm_to_vmem [thread:$0]  %s25, 1024, %s27, [#allocation6], 128, 128, 8
    $region5: #{tpu_custom_call.1} parent=1 // pred_fallthru
      _
    // Predicated region
    $region6: #{tpu_custom_call.1} parent=1 // pred_check
      _
    $region7: #{tpu_custom_call.1} parent=1 // pred_check_branch
      %34 = sbr.rel (0) target = $region9
    $region8: #{tpu_custom_call.1} parent=1 // pred_region
      %36 = vsyncadd [#allocation9], 0
      %s38 = sshll.u32 %s1, 4
      %s39 = int_to_ptr.hbm [resolvable:$true] %s38
      %s40 = sshll.u32 [#allocation8], 4
      %s41 = int_to_ptr.vmem [resolvable:$true] %s40
      %43 = dma.hbm_to_vmem [thread:$0]  %s39, 128, %s41, [#allocation9]
    $region9: #{tpu_custom_call.1} parent=1 // pred_fallthru
      _
    // Predicated region
    $region10: #{tpu_custom_call.1} parent=1 // pred_check
      _
    $region11: #{tpu_custom_call.1} parent=1 // pred_check_branch
      %45 = sbr.rel (0) target = $region13
    $region12: #{tpu_custom_call.1} parent=1 // pred_region
      %47 = vsyncadd [#allocation9], 0
      %s49 = sshll.u32 %s2, 4
      %s50 = int_to_ptr.hbm [resolvable:$true] %s49
      %s51 = sshll.u32 [#allocation10], 4
      %s52 = int_to_ptr.vmem [resolvable:$true] %s51
      %54 = dma.hbm_to_vmem [thread:$0]  %s50, 128, %s52, [#allocation9]
    $region13: #{tpu_custom_call.1} parent=1 // pred_fallthru
      _
    // Predicated region
    $region14: #{tpu_custom_call.1} parent=1 // pred_check
      _
    $region15: #{tpu_custom_call.1} parent=1 // pred_check_branch
      %56 = sbr.rel (0) target = $region17
    $region16: #{tpu_custom_call.1} parent=1 // pred_region
      %58 = vsyncadd [#allocation12], 0
      %s60 = sshll.u32 %s3, 4
      %s61 = int_to_ptr.hbm [resolvable:$true] %s60
      %s62 = sshll.u32 [#allocation11], 4
      %s63 = int_to_ptr.vmem [resolvable:$true] %s62
      %65 = dma.hbm_to_vmem [thread:$0]  %s61, 128, %s63, [#allocation12]
    $region17: #{tpu_custom_call.1} parent=1 // pred_fallthru
      _
    // Predicated region
    $region18: #{tpu_custom_call.1} parent=1 // pred_check
      _
    $region19: #{tpu_custom_call.1} parent=1 // pred_check_branch
      %67 = sbr.rel (0) target = $region21
    $region20: #{tpu_custom_call.1} parent=1 // pred_region
      %69 = vsyncadd [#allocation12], 0
      %s70 = sshll.u32 %s4, 4
      %s71 = int_to_ptr.hbm [resolvable:$true] %s70
      %s72 = sshll.u32 [#allocation13], 4
      %s73 = int_to_ptr.vmem [resolvable:$true] %s72
      %78 = dma.hbm_to_vmem [thread:$0]  %s71, 256, %s73, [#allocation12], 128, 128, 8
    $region21: #{tpu_custom_call.1} parent=1 // pred_fallthru
      _
    // Predicated region
    $region22: #{tpu_custom_call.1} parent=1 // pred_check
      _
    $region23: #{tpu_custom_call.1} parent=1 // pred_check_branch
      %80 = sbr.rel (0) target = $region25
    $region24: #{tpu_custom_call.1} parent=1 // pred_region
      %82 = vsyncadd [#allocation15], 0
      %s83 = sshll.u32 %s5, 4
      %s84 = int_to_ptr.hbm [resolvable:$true] %s83
      %s85 = sshll.u32 [#allocation14], 4
      %s86 = int_to_ptr.vmem [resolvable:$true] %s85
      %91 = dma.hbm_to_vmem [thread:$0]  %s84, 4096, %s86, [#allocation15], 128, 128, 8
    $region25: #{tpu_custom_call.1} parent=1 // pred_fallthru
      _
    // Predicated region
    $region26: #{tpu_custom_call.1} parent=1 // pred_check
      _
    $region27: #{tpu_custom_call.1} parent=1 // pred_check_branch
      %93 = sbr.rel (0) target = $region29
    $region28: #{tpu_custom_call.1} parent=1 // pred_region
      %95 = vsyncadd [#allocation15], 0
      %s96 = sshll.u32 %s6, 4
      %s97 = int_to_ptr.hbm [resolvable:$true] %s96
      %s98 = sshll.u32 [#allocation16], 4
      %s99 = int_to_ptr.vmem [resolvable:$true] %s98
      %104 = dma.hbm_to_vmem [thread:$0]  %s97, 512, %s99, [#allocation15], 128, 128, 8
    $region29: #{tpu_custom_call.1} parent=1 // pred_fallthru
      _
    // Predicated region
    $region30: #{tpu_custom_call.1} parent=1 // pred_check
      _
    $region31: #{tpu_custom_call.1} parent=1 // pred_check_branch
      %106 = sbr.rel (0) target = $region33
    $region32: #{tpu_custom_call.1} parent=1 // pred_region
      %108 = vsyncadd [#allocation18], 0
      %s109 = sshll.u32 %s7, 4
      %s110 = int_to_ptr.hbm [resolvable:$true] %s109
      %s111 = sshll.u32 [#allocation17], 4
      %s112 = int_to_ptr.vmem [resolvable:$true] %s111
      %117 = dma.hbm_to_vmem [thread:$0]  %s110, 512, %s112, [#allocation18], 128, 128, 8
    $region33: #{tpu_custom_call.1} parent=1 // pred_fallthru
      _
    // Predicated region
    $region34: #{tpu_custom_call.1} parent=1 // pred_check
      _
    $region35: #{tpu_custom_call.1} parent=1 // pred_check_branch
      %119 = sbr.rel (0) target = $region37
    $region36: #{tpu_custom_call.1} parent=1 // pred_region
      _
    $region37: #{tpu_custom_call.1} parent=1 // pred_fallthru
      _
    // Predicated region
    $region38: #{tpu_custom_call.1} parent=1 // pred_check
      _
    $region39: #{tpu_custom_call.1} parent=1 // pred_check_branch
      %121 = sbr.rel (0) target = $region41
    $region40: #{tpu_custom_call.1} parent=1 // pred_region
      %123 = dma.done [#allocation6], 1024
    $region41: #{tpu_custom_call.1} parent=1 // pred_fallthru
      _
    // Predicated region
    $region42: #{tpu_custom_call.1} parent=1 // pred_check
      _
    $region43: #{tpu_custom_call.1} parent=1 // pred_check_branch
      %125 = sbr.rel (0) target = $region45
    $region44: #{tpu_custom_call.1} parent=1 // pred_region
      %127 = dma.done [#allocation9], 128
    $region45: #{tpu_custom_call.1} parent=1 // pred_fallthru
      _
    // Predicated region
    $region46: #{tpu_custom_call.1} parent=1 // pred_check
      _
    $region47: #{tpu_custom_call.1} parent=1 // pred_check_branch
      %129 = sbr.rel (0) target = $region49
    $region48: #{tpu_custom_call.1} parent=1 // pred_region
      %131 = dma.done [#allocation9], 128
    $region49: #{tpu_custom_call.1} parent=1 // pred_fallthru
      _
    // Predicated region
    $region50: #{tpu_custom_call.1} parent=1 // pred_check
      _
    $region51: #{tpu_custom_call.1} parent=1 // pred_check_branch
      %133 = sbr.rel (0) target = $region53
    $region52: #{tpu_custom_call.1} parent=1 // pred_region
      %135 = dma.done [#allocation12], 128
    $region53: #{tpu_custom_call.1} parent=1 // pred_fallthru
      _
    // Predicated region
    $region54: #{tpu_custom_call.1} parent=1 // pred_check
      _
    $region55: #{tpu_custom_call.1} parent=1 // pred_check_branch
      %137 = sbr.rel (0) target = $region57
    $region56: #{tpu_custom_call.1} parent=1 // pred_region
      %139 = dma.done [#allocation12], 256
    $region57: #{tpu_custom_call.1} parent=1 // pred_fallthru
      _
    // Predicated region
    $region58: #{tpu_custom_call.1} parent=1 // pred_check
      _
    $region59: #{tpu_custom_call.1} parent=1 // pred_check_branch
      %141 = sbr.rel (0) target = $region61
    $region60: #{tpu_custom_call.1} parent=1 // pred_region
      %143 = dma.done [#allocation15], 4096
    $region61: #{tpu_custom_call.1} parent=1 // pred_fallthru
      _
    // Predicated region
    $region62: #{tpu_custom_call.1} parent=1 // pred_check
      _
    $region63: #{tpu_custom_call.1} parent=1 // pred_check_branch
      %145 = sbr.rel (0) target = $region65
    $region64: #{tpu_custom_call.1} parent=1 // pred_region
      %147 = dma.done [#allocation15], 512
    $region65: #{tpu_custom_call.1} parent=1 // pred_fallthru
      _
    // Predicated region
    $region66: #{tpu_custom_call.1} parent=1 // pred_check
      _
    $region67: #{tpu_custom_call.1} parent=1 // pred_check_branch
      %149 = sbr.rel (0) target = $region69
    $region68: #{tpu_custom_call.1} parent=1 // pred_region
      %151 = dma.done [#allocation18], 512
    $region69: #{tpu_custom_call.1} parent=1 // pred_fallthru
      _
    %p152 = scmp.eq.s32.totalorder 0, 0
    // Predicated region
    $region70: #{tpu_custom_call.1} parent=1 // pred_check
      %p153 = pneg %p152
    $region71: #{tpu_custom_call.1} parent=1 // pred_check_branch
      %155 = sbr.rel (%p153) target = $region73
    $region72: #{tpu_custom_call.1} parent=1 // pred_region
      %vm156 = vcmask 261120
      %157 = vst.msk [vmem:[#allocation2] sm:$0xff] %vm156, 0.0
      %158 = vst.msk [vmem:[#allocation3] sm:$0xff] %vm156, 0.0
    $region73: #{tpu_custom_call.1} parent=1 // pred_fallthru
      _
    %v159 = vld [vmem:[#allocation8] sm:$0xff]
    %v160 = vld [vmem:[#allocation10] sm:$0xff]
    %v161 = vld [vmem:[#allocation11] sm:$0xff]
    %v162 = vld [vmem:[#allocation13] sm:$0xff]
    %v163 = vld [vmem:[#allocation13 + $0x8] sm:$0xff]
    %v164 = vld [vmem:[#allocation16] sm:$0xff]
    %v165 = vld [vmem:[#allocation16 + $0x8] sm:$0xff]
    %v166 = vld [vmem:[#allocation16 + $0x10] sm:$0xff]
    %v167 = vld [vmem:[#allocation16 + $0x18] sm:$0xff]
    %v168 = vld [vmem:[#allocation14] sm:$0xff]
    %v169 = vld [vmem:[#allocation14 + $0x8] sm:$0xff]
    %v170 = vld [vmem:[#allocation14 + $0x10] sm:$0xff]
    %v171 = vld [vmem:[#allocation14 + $0x18] sm:$0xff]
    %v172 = vld [vmem:[#allocation14 + $0x20] sm:$0xff]
    %v173 = vld [vmem:[#allocation14 + $0x28] sm:$0xff]
    %v174 = vld [vmem:[#allocation14 + $0x30] sm:$0xff]
    %v175 = vld [vmem:[#allocation14 + $0x38] sm:$0xff]
    %v176 = vld [vmem:[#allocation14 + $0x40] sm:$0xff]
    %v177 = vld [vmem:[#allocation14 + $0x48] sm:$0xff]
    %v178 = vld [vmem:[#allocation14 + $0x50] sm:$0xff]
    %v179 = vld [vmem:[#allocation14 + $0x58] sm:$0xff]
    %v180 = vld [vmem:[#allocation14 + $0x60] sm:$0xff]
    %v181 = vld [vmem:[#allocation14 + $0x68] sm:$0xff]
    %v182 = vld [vmem:[#allocation14 + $0x70] sm:$0xff]
    %v183 = vld [vmem:[#allocation14 + $0x78] sm:$0xff]
    %s184 = scalar_lea.vmem [#allocation14], 128
    %v185 = vld [vmem:[%s184] sm:$0xff]
    %v186 = vld [vmem:[%s184 + $0x8] sm:$0xff]
    %v187 = vld [vmem:[%s184 + $0x10] sm:$0xff]
    %v188 = vld [vmem:[%s184 + $0x18] sm:$0xff]
    %v189 = vld [vmem:[%s184 + $0x20] sm:$0xff]
    %v190 = vld [vmem:[%s184 + $0x28] sm:$0xff]
    %v191 = vld [vmem:[%s184 + $0x30] sm:$0xff]
    %v192 = vld [vmem:[%s184 + $0x38] sm:$0xff]
    %v193 = vld [vmem:[%s184 + $0x40] sm:$0xff]
    %v194 = vld [vmem:[%s184 + $0x48] sm:$0xff]
    %v195 = vld [vmem:[%s184 + $0x50] sm:$0xff]
    %v196 = vld [vmem:[%s184 + $0x58] sm:$0xff]
    %v197 = vld [vmem:[%s184 + $0x60] sm:$0xff]
    %v198 = vld [vmem:[%s184 + $0x68] sm:$0xff]
    %v199 = vld [vmem:[%s184 + $0x70] sm:$0xff]
    %v200 = vld [vmem:[%s184 + $0x78] sm:$0xff]
    %v201 = vld [vmem:[#allocation2] sm:$0xff]
    %v202 = vld [vmem:[#allocation3] sm:$0xff]
    %v203 = vld [vmem:[#allocation5] sm:$0x1]
    %v204 = vld [vmem:[#allocation5 + $0x8] sm:$0x1]
    %v205 = vld [vmem:[#allocation5 + $0x10] sm:$0x1]
    %v206 = vld [vmem:[#allocation5 + $0x18] sm:$0x1]
    %v207 = vld [vmem:[#allocation5 + $0x20] sm:$0x1]
    %v208 = vld [vmem:[#allocation5 + $0x28] sm:$0x1]
    %v209 = vld [vmem:[#allocation5 + $0x30] sm:$0x1]
    %v210 = vld [vmem:[#allocation5 + $0x38] sm:$0x1]
    %v219 = vrot.slane %v204, 7
    %vm220 = vcmask 1041409
    %v221 = vsel %vm220, %v219, %v203
    %v222 = vrot.slane %v205, 6
    %vm223 = vcmask 1042434
    %v224 = vsel %vm223, %v222, %v221
    %v225 = vrot.slane %v206, 5
    %vm226 = vcmask 1043459
    %v227 = vsel %vm226, %v225, %v224
    %v228 = vrot.slane %v207, 4
    %vm229 = vcmask 1044484
    %v230 = vsel %vm229, %v228, %v227
    %v231 = vrot.slane %v208, 3
    %vm232 = vcmask 1045509
    %v233 = vsel %vm232, %v231, %v230
    %v234 = vrot.slane %v209, 2
    %vm235 = vcmask 1046534
    %v236 = vsel %vm235, %v234, %v233
    %v237 = vrot.slane %v210, 1
    %vm238 = vcmask 1047559
    %v239 = vsel %vm238, %v237, %v236
    %vm240 = vcmask 130048
    %v241 = vsel %vm240, %v239, 0
    %243 = vmatpush.msra.mxu0 0.0
    %244 = vmatpush.msra.mxu0 0.0
    %245 = vmatpush.msra.mxu0 0.0
    %246 = vmatpush.msra.mxu0 0.0
    %247 = vmatpush.msra.mxu0 0.0
    %248 = vmatpush.msra.mxu0 0.0
    %249 = vmatpush.msra.mxu0 0.0
    %250 = vmatpush.msra.mxu0 0.0
    %251 = vmatpush.msra.mxu0 0.0
    %252 = vmatpush.msra.mxu0 0.0
    %253 = vmatpush.msra.mxu0 0.0
    %254 = vmatpush.msra.mxu0 0.0
    %255 = vmatpush.msra.mxu0 0.0
    %256 = vmatpush.msra.mxu0 0.0
    %257 = vmatpush.msra.mxu0 %v163
    %258 = vmatpush.msra.mxu0 %v162
    %259 = vmatmul.f32.gmra.mxu0 %v241
    %v260 = vpop.f32.mrf.mxu0
    %v261 = vadd.f32 0.0, %v260
    %262 = vdwg.mxu0
    %v263 = vmul.f32 %v261, %v159
    %vm264 = vcmask 261120
    %v266 = vsel %vm264, %v201, 0
    %268 = vmatpush.msra.mxu0 0.0
    %269 = vmatpush.msra.mxu0 0.0
    %270 = vmatpush.msra.mxu0 0.0
    %271 = vmatpush.msra.mxu0 0.0
    %272 = vmatpush.msra.mxu0 0.0
    %273 = vmatpush.msra.mxu0 0.0
    %274 = vmatpush.msra.mxu0 0.0
    %275 = vmatpush.msra.mxu0 0.0
    %276 = vmatpush.msra.mxu0 0.0
    %277 = vmatpush.msra.mxu0 0.0
    %278 = vmatpush.msra.mxu0 0.0
    %279 = vmatpush.msra.mxu0 0.0
    %280 = vmatpush.msra.mxu0 %v167
    %281 = vmatpush.msra.mxu0 %v166
    %282 = vmatpush.msra.mxu0 %v165
    %283 = vmatpush.msra.mxu0 %v164
    %284 = vmatmul.f32.gmra.mxu0 %v266
    %v285 = vpop.f32.mrf.mxu0
    %v286 = vadd.f32 0.0, %v285
    %287 = vdwg.mxu0
    %v288 = vmul.f32 %v286, %v161
    %289 = vmatpush.msra.mxu0 %v200
    %290 = vmatpush.msra.mxu0 %v199
    %291 = vmatpush.msra.mxu0 %v198
    %292 = vmatpush.msra.mxu0 %v197
    %293 = vmatpush.msra.mxu0 %v196
    %294 = vmatpush.msra.mxu0 %v195
    %295 = vmatpush.msra.mxu0 %v194
    %296 = vmatpush.msra.mxu0 %v193
    %297 = vmatpush.msra.mxu0 %v192
    %298 = vmatpush.msra.mxu0 %v191
    %299 = vmatpush.msra.mxu0 %v190
    %300 = vmatpush.msra.mxu0 %v189
    %301 = vmatpush.msra.mxu0 %v188
    %302 = vmatpush.msra.mxu0 %v187
    %303 = vmatpush.msra.mxu0 %v186
    %304 = vmatpush.msra.mxu0 %v185
    %305 = vmatmul.f32.gmra.mxu0 %v288
    %v306 = vpop.f32.mrf.mxu0
    %v307 = vadd.f32 0.0, %v306
    %308 = vdwg.mxu0
    %309 = vmatpush.msra.mxu0 %v183
    %310 = vmatpush.msra.mxu0 %v182
    %311 = vmatpush.msra.mxu0 %v181
    %312 = vmatpush.msra.mxu0 %v180
    %313 = vmatpush.msra.mxu0 %v179
    %314 = vmatpush.msra.mxu0 %v178
    %315 = vmatpush.msra.mxu0 %v177
    %316 = vmatpush.msra.mxu0 %v176
    %317 = vmatpush.msra.mxu0 %v175
    %318 = vmatpush.msra.mxu0 %v174
    %319 = vmatpush.msra.mxu0 %v173
    %320 = vmatpush.msra.mxu0 %v172
    %321 = vmatpush.msra.mxu0 %v171
    %322 = vmatpush.msra.mxu0 %v170
    %323 = vmatpush.msra.mxu0 %v169
    %324 = vmatpush.msra.mxu0 %v168
    %325 = vmatmul.f32.gmra.mxu0 %v263
    %v326 = vpop.f32.mrf.mxu0
    %v327 = vadd.f32 %v307, %v326
    %328 = vdwg.mxu0
    %v329 = vadd.f32 %v327, %v160
    %v330 = vxor.u32 %v329, 2147483648
    %v331 = vmul.f32 %v330, 1.442695
    %v332 = vpow.pop %v331
    %v333 = vadd.f32 %v332, 1.0
    %v334 = vrcp.pop %v333
    %v335 = vmul.f32 %v333, %v334
    %v336 = vsub.f32 1.0, %v335
    %v337 = vmul.f32 %v334, %v336
    %v338 = vadd.f32 %v334, %v337
    %vm339 = vweird.f32 %v333
    %vm340 = vweird.f32 %v334
    %vm341 = vmor %vm339, %vm340
    %v342 = vsel %vm341, %v334, %v338
    %v343 = vand.u32 2147483647, %v333
    %vm344 = vcmp.eq.f32.partialorder %v343, 8.507059e+37
    %v345 = vand.u32 %v333, 2147483648
    %v346 = vor.u32 1.1754944e-38, %v345
    %v347 = vsel %vm344, %v346, %v342
    %v348 = vmul.f32 1.0, %v347
    %v349 = vtanh.pop %v329
    %351 = vrot.lane.b32.xlu0 %v202, 32
    %v352 = vpop.permute.xlu0 %351
    %v354 = vmul.f32 %v348, %v352
    %356 = vrot.lane.b32.xlu0 %v349, 32
    %v357 = vpop.permute.xlu0 %356
    %v359 = vmul.f32 %v348, %v357
    %361 = vrot.lane.b32.xlu0 %v359, 32
    %v362 = vpop.permute.xlu0 %361
    %v364 = vadd.f32 %v354, %v362
    %v365 = vtanh.pop %v364
    %367 = vrot.lane.b32.xlu0 %v365, 32
    %v368 = vpop.permute.xlu0 %367
    %v370 = vmul.f32 %v348, %v368
    %v372 = vrot.slane %v370, 1
    %v373 = vrot.slane %v370, 2
    %v374 = vrot.slane %v370, 3
    %v375 = vrot.slane %v370, 4
    %v376 = vrot.slane %v370, 5
    %v377 = vrot.slane %v370, 6
    %v378 = vrot.slane %v370, 7
    %v379 = vperm.slane %v370, 0
    %v380 = vperm.slane %v372, 0
    %v381 = vperm.slane %v373, 0
    %v382 = vperm.slane %v374, 0
    %v383 = vperm.slane %v375, 0
    %v384 = vperm.slane %v376, 0
    %v385 = vperm.slane %v377, 0
    %v386 = vperm.slane %v378, 0
    %387 = vrot.lane.b32.xlu0 %v379, 64
    %v388 = vpop.permute.xlu0 %387
    %389 = vrot.lane.b32.xlu0 %v380, 64
    %v390 = vpop.permute.xlu0 %389
    %391 = vrot.lane.b32.xlu0 %v381, 64
    %v392 = vpop.permute.xlu0 %391
    %393 = vrot.lane.b32.xlu0 %v382, 64
    %v394 = vpop.permute.xlu0 %393
    %395 = vrot.lane.b32.xlu0 %v383, 64
    %v396 = vpop.permute.xlu0 %395
    %397 = vrot.lane.b32.xlu0 %v384, 64
    %v398 = vpop.permute.xlu0 %397
    %399 = vrot.lane.b32.xlu0 %v385, 64
    %v400 = vpop.permute.xlu0 %399
    %401 = vrot.lane.b32.xlu0 %v386, 64
    %v402 = vpop.permute.xlu0 %401
    %vm411 = vcmask 253952
    %412 = vst.msk [vmem:[#allocation4] sm:$0x1] %vm411, %v388
    %413 = vst.msk [vmem:[#allocation4 + $0x8] sm:$0x1] %vm411, %v390
    %414 = vst.msk [vmem:[#allocation4 + $0x10] sm:$0x1] %vm411, %v392
    %415 = vst.msk [vmem:[#allocation4 + $0x18] sm:$0x1] %vm411, %v394
    %416 = vst.msk [vmem:[#allocation4 + $0x20] sm:$0x1] %vm411, %v396
    %417 = vst.msk [vmem:[#allocation4 + $0x28] sm:$0x1] %vm411, %v398
    %418 = vst.msk [vmem:[#allocation4 + $0x30] sm:$0x1] %vm411, %v400
    %419 = vst.msk [vmem:[#allocation4 + $0x38] sm:$0x1] %vm411, %v402
    %v420 = vld [vmem:[#allocation5 + $0x1] sm:$0x1]
    %v421 = vld [vmem:[#allocation5 + $0x9] sm:$0x1]
    %v422 = vld [vmem:[#allocation5 + $0x11] sm:$0x1]
    %v423 = vld [vmem:[#allocation5 + $0x19] sm:$0x1]
    %v424 = vld [vmem:[#allocation5 + $0x21] sm:$0x1]
    %v425 = vld [vmem:[#allocation5 + $0x29] sm:$0x1]
    %v426 = vld [vmem:[#allocation5 + $0x31] sm:$0x1]
    %v427 = vld [vmem:[#allocation5 + $0x39] sm:$0x1]
    %v436 = vrot.slane %v421, 7
    %v437 = vsel %vm220, %v436, %v420
    %v438 = vrot.slane %v422, 6
    %v439 = vsel %vm223, %v438, %v437
    %v440 = vrot.slane %v423, 5
    %v441 = vsel %vm226, %v440, %v439
    %v442 = vrot.slane %v424, 4
    %v443 = vsel %vm229, %v442, %v441
    %v444 = vrot.slane %v425, 3
    %v445 = vsel %vm232, %v444, %v443
    %v446 = vrot.slane %v426, 2
    %v447 = vsel %vm235, %v446, %v445
    %v448 = vrot.slane %v427, 1
    %v449 = vsel %vm238, %v448, %v447
    %v450 = vsel %vm240, %v449, 0
    %452 = vmatpush.msra.mxu0 0.0
    %453 = vmatpush.msra.mxu0 0.0
    %454 = vmatpush.msra.mxu0 0.0
    %455 = vmatpush.msra.mxu0 0.0
    %456 = vmatpush.msra.mxu0 0.0
    %457 = vmatpush.msra.mxu0 0.0
    %458 = vmatpush.msra.mxu0 0.0
    %459 = vmatpush.msra.mxu0 0.0
    %460 = vmatpush.msra.mxu0 0.0
    %461 = vmatpush.msra.mxu0 0.0
    %462 = vmatpush.msra.mxu0 0.0
    %463 = vmatpush.msra.mxu0 0.0
    %464 = vmatpush.msra.mxu0 0.0
    %465 = vmatpush.msra.mxu0 0.0
    %466 = vmatpush.msra.mxu0 %v163
    %467 = vmatpush.msra.mxu0 %v162
    %468 = vmatmul.f32.gmra.mxu0 %v450
    %v469 = vpop.f32.mrf.mxu0
    %v470 = vadd.f32 0.0, %v469
    %471 = vdwg.mxu0
    %v472 = vmul.f32 %v470, %v159
    %473 = vrot.lane.b32.xlu0 %v370, 64
    %v474 = vpop.permute.xlu0 %473
    %v475 = vsel %vm264, %v474, 0
    %477 = vmatpush.msra.mxu0 0.0
    %478 = vmatpush.msra.mxu0 0.0
    %479 = vmatpush.msra.mxu0 0.0
    %480 = vmatpush.msra.mxu0 0.0
    %481 = vmatpush.msra.mxu0 0.0
    %482 = vmatpush.msra.mxu0 0.0
    %483 = vmatpush.msra.mxu0 0.0
    %484 = vmatpush.msra.mxu0 0.0
    %485 = vmatpush.msra.mxu0 0.0
    %486 = vmatpush.msra.mxu0 0.0
    %487 = vmatpush.msra.mxu0 0.0
    %488 = vmatpush.msra.mxu0 0.0
    %489 = vmatpush.msra.mxu0 %v167
    %490 = vmatpush.msra.mxu0 %v166
    %491 = vmatpush.msra.mxu0 %v165
    %492 = vmatpush.msra.mxu0 %v164
    %493 = vmatmul.f32.gmra.mxu0 %v475
    %v494 = vpop.f32.mrf.mxu0
    %v495 = vadd.f32 0.0, %v494
    %496 = vdwg.mxu0
    %v497 = vmul.f32 %v495, %v161
    %498 = vmatpush.msra.mxu0 %v200
    %499 = vmatpush.msra.mxu0 %v199
    %500 = vmatpush.msra.mxu0 %v198
    %501 = vmatpush.msra.mxu0 %v197
    %502 = vmatpush.msra.mxu0 %v196
    %503 = vmatpush.msra.mxu0 %v195
    %504 = vmatpush.msra.mxu0 %v194
    %505 = vmatpush.msra.mxu0 %v193
    %506 = vmatpush.msra.mxu0 %v192
    %507 = vmatpush.msra.mxu0 %v191
    %508 = vmatpush.msra.mxu0 %v190
    %509 = vmatpush.msra.mxu0 %v189
    %510 = vmatpush.msra.mxu0 %v188
    %511 = vmatpush.msra.mxu0 %v187
    %512 = vmatpush.msra.mxu0 %v186
    %513 = vmatpush.msra.mxu0 %v185
    %514 = vmatmul.f32.gmra.mxu0 %v497
    %v515 = vpop.f32.mrf.mxu0
    %v516 = vadd.f32 0.0, %v515
    %517 = vdwg.mxu0
    %518 = vmatpush.msra.mxu0 %v183
    %519 = vmatpush.msra.mxu0 %v182
    %520 = vmatpush.msra.mxu0 %v181
    %521 = vmatpush.msra.mxu0 %v180
    %522 = vmatpush.msra.mxu0 %v179
    %523 = vmatpush.msra.mxu0 %v178
    %524 = vmatpush.msra.mxu0 %v177
    %525 = vmatpush.msra.mxu0 %v176
    %526 = vmatpush.msra.mxu0 %v175
    %527 = vmatpush.msra.mxu0 %v174
    %528 = vmatpush.msra.mxu0 %v173
    %529 = vmatpush.msra.mxu0 %v172
    %530 = vmatpush.msra.mxu0 %v171
    %531 = vmatpush.msra.mxu0 %v170
    %532 = vmatpush.msra.mxu0 %v169
    %533 = vmatpush.msra.mxu0 %v168
    %534 = vmatmul.f32.gmra.mxu0 %v472
    %v535 = vpop.f32.mrf.mxu0
    %v536 = vadd.f32 %v516, %v535
    %537 = vdwg.mxu0
    %v538 = vadd.f32 %v536, %v160
    %v539 = vxor.u32 %v538, 2147483648
    %v540 = vmul.f32 %v539, 1.442695
    %v541 = vpow.pop %v540
    %v542 = vadd.f32 %v541, 1.0
    %v543 = vrcp.pop %v542
    %v544 = vmul.f32 %v542, %v543
    %v545 = vsub.f32 1.0, %v544
    %v546 = vmul.f32 %v543, %v545
    %v547 = vadd.f32 %v543, %v546
    %vm548 = vweird.f32 %v542
    %vm549 = vweird.f32 %v543
    %vm550 = vmor %vm548, %vm549
    %v551 = vsel %vm550, %v543, %v547
    %v552 = vand.u32 2147483647, %v542
    %vm553 = vcmp.eq.f32.partialorder %v552, 8.507059e+37
    %v554 = vand.u32 %v542, 2147483648
    %v555 = vor.u32 1.1754944e-38, %v554
    %v556 = vsel %vm553, %v555, %v551
    %v557 = vmul.f32 1.0, %v556
    %v558 = vtanh.pop %v538
    %v559 = vmul.f32 %v557, %v364
    %561 = vrot.lane.b32.xlu0 %v558, 32
    %v562 = vpop.permute.xlu0 %561
    %v564 = vmul.f32 %v557, %v562
    %566 = vrot.lane.b32.xlu0 %v564, 32
    %v567 = vpop.permute.xlu0 %566
    %v569 = vadd.f32 %v559, %v567
    %v570 = vtanh.pop %v569
    %572 = vrot.lane.b32.xlu0 %v570, 32
    %v573 = vpop.permute.xlu0 %572
    %v575 = vmul.f32 %v557, %v573
    %v577 = vrot.slane %v575, 1
    %v578 = vrot.slane %v575, 2
    %v579 = vrot.slane %v575, 3
    %v580 = vrot.slane %v575, 4
    %v581 = vrot.slane %v575, 5
    %v582 = vrot.slane %v575, 6
    %v583 = vrot.slane %v575, 7
    %v584 = vperm.slane %v575, 0
    %v585 = vperm.slane %v577, 0
    %v586 = vperm.slane %v578, 0
    %v587 = vperm.slane %v579, 0
    %v588 = vperm.slane %v580, 0
    %v589 = vperm.slane %v581, 0
    %v590 = vperm.slane %v582, 0
    %v591 = vperm.slane %v583, 0
    %592 = vrot.lane.b32.xlu0 %v584, 64
    %v593 = vpop.permute.xlu0 %592
    %594 = vrot.lane.b32.xlu0 %v585, 64
    %v595 = vpop.permute.xlu0 %594
    %596 = vrot.lane.b32.xlu0 %v586, 64
    %v597 = vpop.permute.xlu0 %596
    %598 = vrot.lane.b32.xlu0 %v587, 64
    %v599 = vpop.permute.xlu0 %598
    %600 = vrot.lane.b32.xlu0 %v588, 64
    %v601 = vpop.permute.xlu0 %600
    %602 = vrot.lane.b32.xlu0 %v589, 64
    %v603 = vpop.permute.xlu0 %602
    %604 = vrot.lane.b32.xlu0 %v590, 64
    %v605 = vpop.permute.xlu0 %604
    %606 = vrot.lane.b32.xlu0 %v591, 64
    %v607 = vpop.permute.xlu0 %606
    %616 = vst.msk [vmem:[#allocation4 + $0x1] sm:$0x1] %vm411, %v593
    %617 = vst.msk [vmem:[#allocation4 + $0x9] sm:$0x1] %vm411, %v595
    %618 = vst.msk [vmem:[#allocation4 + $0x11] sm:$0x1] %vm411, %v597
    %619 = vst.msk [vmem:[#allocation4 + $0x19] sm:$0x1] %vm411, %v599
    %620 = vst.msk [vmem:[#allocation4 + $0x21] sm:$0x1] %vm411, %v601
    %621 = vst.msk [vmem:[#allocation4 + $0x29] sm:$0x1] %vm411, %v603
    %622 = vst.msk [vmem:[#allocation4 + $0x31] sm:$0x1] %vm411, %v605
    %623 = vst.msk [vmem:[#allocation4 + $0x39] sm:$0x1] %vm411, %v607
    %v624 = vld [vmem:[#allocation5 + $0x2] sm:$0x1]
    %v625 = vld [vmem:[#allocation5 + $0xa] sm:$0x1]
    %v626 = vld [vmem:[#allocation5 + $0x12] sm:$0x1]
    %v627 = vld [vmem:[#allocation5 + $0x1a] sm:$0x1]
    %v628 = vld [vmem:[#allocation5 + $0x22] sm:$0x1]
    %v629 = vld [vmem:[#allocation5 + $0x2a] sm:$0x1]
    %v630 = vld [vmem:[#allocation5 + $0x32] sm:$0x1]
    %v631 = vld [vmem:[#allocation5 + $0x3a] sm:$0x1]
    %v640 = vrot.slane %v625, 7
    %v641 = vsel %vm220, %v640, %v624
    %v642 = vrot.slane %v626, 6
    %v643 = vsel %vm223, %v642, %v641
    %v644 = vrot.slane %v627, 5
    %v645 = vsel %vm226, %v644, %v643
    %v646 = vrot.slane %v628, 4
    %v647 = vsel %vm229, %v646, %v645
    %v648 = vrot.slane %v629, 3
    %v649 = vsel %vm232, %v648, %v647
    %v650 = vrot.slane %v630, 2
    %v651 = vsel %vm235, %v650, %v649
    %v652 = vrot.slane %v631, 1
    %v653 = vsel %vm238, %v652, %v651
    %v654 = vsel %vm240, %v653, 0
    %656 = vmatpush.msra.mxu0 0.0
    %657 = vmatpush.msra.mxu0 0.0
    %658 = vmatpush.msra.mxu0 0.0
    %659 = vmatpush.msra.mxu0 0.0
    %660 = vmatpush.msra.mxu0 0.0
    %661 = vmatpush.msra.mxu0 0.0
    %662 = vmatpush.msra.mxu0 0.0
    %663 = vmatpush.msra.mxu0 0.0
    %664 = vmatpush.msra.mxu0 0.0
    %665 = vmatpush.msra.mxu0 0.0
    %666 = vmatpush.msra.mxu0 0.0
    %667 = vmatpush.msra.mxu0 0.0
    %668 = vmatpush.msra.mxu0 0.0
    %669 = vmatpush.msra.mxu0 0.0
    %670 = vmatpush.msra.mxu0 %v163
    %671 = vmatpush.msra.mxu0 %v162
    %672 = vmatmul.f32.gmra.mxu0 %v654
    %v673 = vpop.f32.mrf.mxu0
    %v674 = vadd.f32 0.0, %v673
    %675 = vdwg.mxu0
    %v676 = vmul.f32 %v674, %v159
    %677 = vrot.lane.b32.xlu0 %v575, 64
    %v678 = vpop.permute.xlu0 %677
    %v679 = vsel %vm264, %v678, 0
    %681 = vmatpush.msra.mxu0 0.0
    %682 = vmatpush.msra.mxu0 0.0
    %683 = vmatpush.msra.mxu0 0.0
    %684 = vmatpush.msra.mxu0 0.0
    %685 = vmatpush.msra.mxu0 0.0
    %686 = vmatpush.msra.mxu0 0.0
    %687 = vmatpush.msra.mxu0 0.0
    %688 = vmatpush.msra.mxu0 0.0
    %689 = vmatpush.msra.mxu0 0.0
    %690 = vmatpush.msra.mxu0 0.0
    %691 = vmatpush.msra.mxu0 0.0
    %692 = vmatpush.msra.mxu0 0.0
    %693 = vmatpush.msra.mxu0 %v167
    %694 = vmatpush.msra.mxu0 %v166
    %695 = vmatpush.msra.mxu0 %v165
    %696 = vmatpush.msra.mxu0 %v164
    %697 = vmatmul.f32.gmra.mxu0 %v679
    %v698 = vpop.f32.mrf.mxu0
    %v699 = vadd.f32 0.0, %v698
    %700 = vdwg.mxu0
    %v701 = vmul.f32 %v699, %v161
    %702 = vmatpush.msra.mxu0 %v200
    %703 = vmatpush.msra.mxu0 %v199
    %704 = vmatpush.msra.mxu0 %v198
    %705 = vmatpush.msra.mxu0 %v197
    %706 = vmatpush.msra.mxu0 %v196
    %707 = vmatpush.msra.mxu0 %v195
    %708 = vmatpush.msra.mxu0 %v194
    %709 = vmatpush.msra.mxu0 %v193
    %710 = vmatpush.msra.mxu0 %v192
    %711 = vmatpush.msra.mxu0 %v191
    %712 = vmatpush.msra.mxu0 %v190
    %713 = vmatpush.msra.mxu0 %v189
    %714 = vmatpush.msra.mxu0 %v188
    %715 = vmatpush.msra.mxu0 %v187
    %716 = vmatpush.msra.mxu0 %v186
    %717 = vmatpush.msra.mxu0 %v185
    %718 = vmatmul.f32.gmra.mxu0 %v701
    %v719 = vpop.f32.mrf.mxu0
    %v720 = vadd.f32 0.0, %v719
    %721 = vdwg.mxu0
    %722 = vmatpush.msra.mxu0 %v183
    %723 = vmatpush.msra.mxu0 %v182
    %724 = vmatpush.msra.mxu0 %v181
    %725 = vmatpush.msra.mxu0 %v180
    %726 = vmatpush.msra.mxu0 %v179
    %727 = vmatpush.msra.mxu0 %v178
    %728 = vmatpush.msra.mxu0 %v177
    %729 = vmatpush.msra.mxu0 %v176
    %730 = vmatpush.msra.mxu0 %v175
    %731 = vmatpush.msra.mxu0 %v174
    %732 = vmatpush.msra.mxu0 %v173
    %733 = vmatpush.msra.mxu0 %v172
    %734 = vmatpush.msra.mxu0 %v171
    %735 = vmatpush.msra.mxu0 %v170
    %736 = vmatpush.msra.mxu0 %v169
    %737 = vmatpush.msra.mxu0 %v168
    %738 = vmatmul.f32.gmra.mxu0 %v676
    %v739 = vpop.f32.mrf.mxu0
    %v740 = vadd.f32 %v720, %v739
    %741 = vdwg.mxu0
    %v742 = vadd.f32 %v740, %v160
    %v743 = vxor.u32 %v742, 2147483648
    %v744 = vmul.f32 %v743, 1.442695
    %v745 = vpow.pop %v744
    %v746 = vadd.f32 %v745, 1.0
    %v747 = vrcp.pop %v746
    %v748 = vmul.f32 %v746, %v747
    %v749 = vsub.f32 1.0, %v748
    %v750 = vmul.f32 %v747, %v749
    %v751 = vadd.f32 %v747, %v750
    %vm752 = vweird.f32 %v746
    %vm753 = vweird.f32 %v747
    %vm754 = vmor %vm752, %vm753
    %v755 = vsel %vm754, %v747, %v751
    %v756 = vand.u32 2147483647, %v746
    %vm757 = vcmp.eq.f32.partialorder %v756, 8.507059e+37
    %v758 = vand.u32 %v746, 2147483648
    %v759 = vor.u32 1.1754944e-38, %v758
    %v760 = vsel %vm757, %v759, %v755
    %v761 = vmul.f32 1.0, %v760
    %v762 = vtanh.pop %v742
    %v763 = vmul.f32 %v761, %v569
    %765 = vrot.lane.b32.xlu0 %v762, 32
    %v766 = vpop.permute.xlu0 %765
    %v768 = vmul.f32 %v761, %v766
    %770 = vrot.lane.b32.xlu0 %v768, 32
    %v771 = vpop.permute.xlu0 %770
    %v773 = vadd.f32 %v763, %v771
    %v774 = vtanh.pop %v773
    %776 = vrot.lane.b32.xlu0 %v774, 32
    %v777 = vpop.permute.xlu0 %776
    %v779 = vmul.f32 %v761, %v777
    %v781 = vrot.slane %v779, 1
    %v782 = vrot.slane %v779, 2
    %v783 = vrot.slane %v779, 3
    %v784 = vrot.slane %v779, 4
    %v785 = vrot.slane %v779, 5
    %v786 = vrot.slane %v779, 6
    %v787 = vrot.slane %v779, 7
    %v788 = vperm.slane %v779, 0
    %v789 = vperm.slane %v781, 0
    %v790 = vperm.slane %v782, 0
    %v791 = vperm.slane %v783, 0
    %v792 = vperm.slane %v784, 0
    %v793 = vperm.slane %v785, 0
    %v794 = vperm.slane %v786, 0
    %v795 = vperm.slane %v787, 0
    %796 = vrot.lane.b32.xlu0 %v788, 64
    %v797 = vpop.permute.xlu0 %796
    %798 = vrot.lane.b32.xlu0 %v789, 64
    %v799 = vpop.permute.xlu0 %798
    %800 = vrot.lane.b32.xlu0 %v790, 64
    %v801 = vpop.permute.xlu0 %800
    %802 = vrot.lane.b32.xlu0 %v791, 64
    %v803 = vpop.permute.xlu0 %802
    %804 = vrot.lane.b32.xlu0 %v792, 64
    %v805 = vpop.permute.xlu0 %804
    %806 = vrot.lane.b32.xlu0 %v793, 64
    %v807 = vpop.permute.xlu0 %806
    %808 = vrot.lane.b32.xlu0 %v794, 64
    %v809 = vpop.permute.xlu0 %808
    %810 = vrot.lane.b32.xlu0 %v795, 64
    %v811 = vpop.permute.xlu0 %810
    %820 = vst.msk [vmem:[#allocation4 + $0x2] sm:$0x1] %vm411, %v797
    %821 = vst.msk [vmem:[#allocation4 + $0xa] sm:$0x1] %vm411, %v799
    %822 = vst.msk [vmem:[#allocation4 + $0x12] sm:$0x1] %vm411, %v801
    %823 = vst.msk [vmem:[#allocation4 + $0x1a] sm:$0x1] %vm411, %v803
    %824 = vst.msk [vmem:[#allocation4 + $0x22] sm:$0x1] %vm411, %v805
    %825 = vst.msk [vmem:[#allocation4 + $0x2a] sm:$0x1] %vm411, %v807
    %826 = vst.msk [vmem:[#allocation4 + $0x32] sm:$0x1] %vm411, %v809
    %827 = vst.msk [vmem:[#allocation4 + $0x3a] sm:$0x1] %vm411, %v811
    %v828 = vld [vmem:[#allocation5 + $0x3] sm:$0x1]
    %v829 = vld [vmem:[#allocation5 + $0xb] sm:$0x1]
    %v830 = vld [vmem:[#allocation5 + $0x13] sm:$0x1]
    %v831 = vld [vmem:[#allocation5 + $0x1b] sm:$0x1]
    %v832 = vld [vmem:[#allocation5 + $0x23] sm:$0x1]
    %v833 = vld [vmem:[#allocation5 + $0x2b] sm:$0x1]
    %v834 = vld [vmem:[#allocation5 + $0x33] sm:$0x1]
    %v835 = vld [vmem:[#allocation5 + $0x3b] sm:$0x1]
    %v844 = vrot.slane %v829, 7
    %v845 = vsel %vm220, %v844, %v828
    %v846 = vrot.slane %v830, 6
    %v847 = vsel %vm223, %v846, %v845
    %v848 = vrot.slane %v831, 5
    %v849 = vsel %vm226, %v848, %v847
    %v850 = vrot.slane %v832, 4
    %v851 = vsel %vm229, %v850, %v849
    %v852 = vrot.slane %v833, 3
    %v853 = vsel %vm232, %v852, %v851
    %v854 = vrot.slane %v834, 2
    %v855 = vsel %vm235, %v854, %v853
    %v856 = vrot.slane %v835, 1
    %v857 = vsel %vm238, %v856, %v855
    %v858 = vsel %vm240, %v857, 0
    %860 = vmatpush.msra.mxu0 0.0
    %861 = vmatpush.msra.mxu0 0.0
    %862 = vmatpush.msra.mxu0 0.0
    %863 = vmatpush.msra.mxu0 0.0
    %864 = vmatpush.msra.mxu0 0.0
    %865 = vmatpush.msra.mxu0 0.0
    %866 = vmatpush.msra.mxu0 0.0
    %867 = vmatpush.msra.mxu0 0.0
    %868 = vmatpush.msra.mxu0 0.0
    %869 = vmatpush.msra.mxu0 0.0
    %870 = vmatpush.msra.mxu0 0.0
    %871 = vmatpush.msra.mxu0 0.0
    %872 = vmatpush.msra.mxu0 0.0
    %873 = vmatpush.msra.mxu0 0.0
    %874 = vmatpush.msra.mxu0 %v163
    %875 = vmatpush.msra.mxu0 %v162
    %876 = vmatmul.f32.gmra.mxu0 %v858
    %v877 = vpop.f32.mrf.mxu0
    %v878 = vadd.f32 0.0, %v877
    %879 = vdwg.mxu0
    %v880 = vmul.f32 %v878, %v159
    %881 = vrot.lane.b32.xlu0 %v779, 64
    %v882 = vpop.permute.xlu0 %881
    %v883 = vsel %vm264, %v882, 0
    %885 = vmatpush.msra.mxu0 0.0
    %886 = vmatpush.msra.mxu0 0.0
    %887 = vmatpush.msra.mxu0 0.0
    %888 = vmatpush.msra.mxu0 0.0
    %889 = vmatpush.msra.mxu0 0.0
    %890 = vmatpush.msra.mxu0 0.0
    %891 = vmatpush.msra.mxu0 0.0
    %892 = vmatpush.msra.mxu0 0.0
    %893 = vmatpush.msra.mxu0 0.0
    %894 = vmatpush.msra.mxu0 0.0
    %895 = vmatpush.msra.mxu0 0.0
    %896 = vmatpush.msra.mxu0 0.0
    %897 = vmatpush.msra.mxu0 %v167
    %898 = vmatpush.msra.mxu0 %v166
    %899 = vmatpush.msra.mxu0 %v165
    %900 = vmatpush.msra.mxu0 %v164
    %901 = vmatmul.f32.gmra.mxu0 %v883
    %v902 = vpop.f32.mrf.mxu0
    %v903 = vadd.f32 0.0, %v902
    %904 = vdwg.mxu0
    %v905 = vmul.f32 %v903, %v161
    %906 = vmatpush.msra.mxu0 %v200
    %907 = vmatpush.msra.mxu0 %v199
    %908 = vmatpush.msra.mxu0 %v198
    %909 = vmatpush.msra.mxu0 %v197
    %910 = vmatpush.msra.mxu0 %v196
    %911 = vmatpush.msra.mxu0 %v195
    %912 = vmatpush.msra.mxu0 %v194
    %913 = vmatpush.msra.mxu0 %v193
    %914 = vmatpush.msra.mxu0 %v192
    %915 = vmatpush.msra.mxu0 %v191
    %916 = vmatpush.msra.mxu0 %v190
    %917 = vmatpush.msra.mxu0 %v189
    %918 = vmatpush.msra.mxu0 %v188
    %919 = vmatpush.msra.mxu0 %v187
    %920 = vmatpush.msra.mxu0 %v186
    %921 = vmatpush.msra.mxu0 %v185
    %922 = vmatmul.f32.gmra.mxu0 %v905
    %v923 = vpop.f32.mrf.mxu0
    %v924 = vadd.f32 0.0, %v923
    %925 = vdwg.mxu0
    %926 = vmatpush.msra.mxu0 %v183
    %927 = vmatpush.msra.mxu0 %v182
    %928 = vmatpush.msra.mxu0 %v181
    %929 = vmatpush.msra.mxu0 %v180
    %930 = vmatpush.msra.mxu0 %v179
    %931 = vmatpush.msra.mxu0 %v178
    %932 = vmatpush.msra.mxu0 %v177
    %933 = vmatpush.msra.mxu0 %v176
    %934 = vmatpush.msra.mxu0 %v175
    %935 = vmatpush.msra.mxu0 %v174
    %936 = vmatpush.msra.mxu0 %v173
    %937 = vmatpush.msra.mxu0 %v172
    %938 = vmatpush.msra.mxu0 %v171
    %939 = vmatpush.msra.mxu0 %v170
    %940 = vmatpush.msra.mxu0 %v169
    %941 = vmatpush.msra.mxu0 %v168
    %942 = vmatmul.f32.gmra.mxu0 %v880
    %v943 = vpop.f32.mrf.mxu0
    %v944 = vadd.f32 %v924, %v943
    %945 = vdwg.mxu0
    %v946 = vadd.f32 %v944, %v160
    %v947 = vxor.u32 %v946, 2147483648
    %v948 = vmul.f32 %v947, 1.442695
    %v949 = vpow.pop %v948
    %v950 = vadd.f32 %v949, 1.0
    %v951 = vrcp.pop %v950
    %v952 = vmul.f32 %v950, %v951
    %v953 = vsub.f32 1.0, %v952
    %v954 = vmul.f32 %v951, %v953
    %v955 = vadd.f32 %v951, %v954
    %vm956 = vweird.f32 %v950
    %vm957 = vweird.f32 %v951
    %vm958 = vmor %vm956, %vm957
    %v959 = vsel %vm958, %v951, %v955
    %v960 = vand.u32 2147483647, %v950
    %vm961 = vcmp.eq.f32.partialorder %v960, 8.507059e+37
    %v962 = vand.u32 %v950, 2147483648
    %v963 = vor.u32 1.1754944e-38, %v962
    %v964 = vsel %vm961, %v963, %v959
    %v965 = vmul.f32 1.0, %v964
    %v966 = vtanh.pop %v946
    %v967 = vmul.f32 %v965, %v773
    %969 = vrot.lane.b32.xlu0 %v966, 32
    %v970 = vpop.permute.xlu0 %969
    %v972 = vmul.f32 %v965, %v970
    %974 = vrot.lane.b32.xlu0 %v972, 32
    %v975 = vpop.permute.xlu0 %974
    %v977 = vadd.f32 %v967, %v975
    %v978 = vtanh.pop %v977
    %980 = vrot.lane.b32.xlu0 %v978, 32
    %v981 = vpop.permute.xlu0 %980
    %v983 = vmul.f32 %v965, %v981
    %v985 = vrot.slane %v983, 1
    %v986 = vrot.slane %v983, 2
    %v987 = vrot.slane %v983, 3
    %v988 = vrot.slane %v983, 4
    %v989 = vrot.slane %v983, 5
    %v990 = vrot.slane %v983, 6
    %v991 = vrot.slane %v983, 7
    %v992 = vperm.slane %v983, 0
    %v993 = vperm.slane %v985, 0
    %v994 = vperm.slane %v986, 0
    %v995 = vperm.slane %v987, 0
    %v996 = vperm.slane %v988, 0
    %v997 = vperm.slane %v989, 0
    %v998 = vperm.slane %v990, 0
    %v999 = vperm.slane %v991, 0
    %1000 = vrot.lane.b32.xlu0 %v992, 64
    %v1001 = vpop.permute.xlu0 %1000
    %1002 = vrot.lane.b32.xlu0 %v993, 64
    %v1003 = vpop.permute.xlu0 %1002
    %1004 = vrot.lane.b32.xlu0 %v994, 64
    %v1005 = vpop.permute.xlu0 %1004
    %1006 = vrot.lane.b32.xlu0 %v995, 64
    %v1007 = vpop.permute.xlu0 %1006
    %1008 = vrot.lane.b32.xlu0 %v996, 64
    %v1009 = vpop.permute.xlu0 %1008
    %1010 = vrot.lane.b32.xlu0 %v997, 64
    %v1011 = vpop.permute.xlu0 %1010
    %1012 = vrot.lane.b32.xlu0 %v998, 64
    %v1013 = vpop.permute.xlu0 %1012
    %1014 = vrot.lane.b32.xlu0 %v999, 64
    %v1015 = vpop.permute.xlu0 %1014
    %1024 = vst.msk [vmem:[#allocation4 + $0x3] sm:$0x1] %vm411, %v1001
    %1025 = vst.msk [vmem:[#allocation4 + $0xb] sm:$0x1] %vm411, %v1003
    %1026 = vst.msk [vmem:[#allocation4 + $0x13] sm:$0x1] %vm411, %v1005
    %1027 = vst.msk [vmem:[#allocation4 + $0x1b] sm:$0x1] %vm411, %v1007
    %1028 = vst.msk [vmem:[#allocation4 + $0x23] sm:$0x1] %vm411, %v1009
    %1029 = vst.msk [vmem:[#allocation4 + $0x2b] sm:$0x1] %vm411, %v1011
    %1030 = vst.msk [vmem:[#allocation4 + $0x33] sm:$0x1] %vm411, %v1013
    %1031 = vst.msk [vmem:[#allocation4 + $0x3b] sm:$0x1] %vm411, %v1015
    %v1032 = vld [vmem:[#allocation5 + $0x4] sm:$0x1]
    %v1033 = vld [vmem:[#allocation5 + $0xc] sm:$0x1]
    %v1034 = vld [vmem:[#allocation5 + $0x14] sm:$0x1]
    %v1035 = vld [vmem:[#allocation5 + $0x1c] sm:$0x1]
    %v1036 = vld [vmem:[#allocation5 + $0x24] sm:$0x1]
    %v1037 = vld [vmem:[#allocation5 + $0x2c] sm:$0x1]
    %v1038 = vld [vmem:[#allocation5 + $0x34] sm:$0x1]
    %v1039 = vld [vmem:[#allocation5 + $0x3c] sm:$0x1]
    %v1048 = vrot.slane %v1033, 7
    %v1049 = vsel %vm220, %v1048, %v1032
    %v1050 = vrot.slane %v1034, 6
    %v1051 = vsel %vm223, %v1050, %v1049
    %v1052 = vrot.slane %v1035, 5
    %v1053 = vsel %vm226, %v1052, %v1051
    %v1054 = vrot.slane %v1036, 4
    %v1055 = vsel %vm229, %v1054, %v1053
    %v1056 = vrot.slane %v1037, 3
    %v1057 = vsel %vm232, %v1056, %v1055
    %v1058 = vrot.slane %v1038, 2
    %v1059 = vsel %vm235, %v1058, %v1057
    %v1060 = vrot.slane %v1039, 1
    %v1061 = vsel %vm238, %v1060, %v1059
    %v1062 = vsel %vm240, %v1061, 0
    %1064 = vmatpush.msra.mxu0 0.0
    %1065 = vmatpush.msra.mxu0 0.0
    %1066 = vmatpush.msra.mxu0 0.0
    %1067 = vmatpush.msra.mxu0 0.0
    %1068 = vmatpush.msra.mxu0 0.0
    %1069 = vmatpush.msra.mxu0 0.0
    %1070 = vmatpush.msra.mxu0 0.0
    %1071 = vmatpush.msra.mxu0 0.0
    %1072 = vmatpush.msra.mxu0 0.0
    %1073 = vmatpush.msra.mxu0 0.0
    %1074 = vmatpush.msra.mxu0 0.0
    %1075 = vmatpush.msra.mxu0 0.0
    %1076 = vmatpush.msra.mxu0 0.0
    %1077 = vmatpush.msra.mxu0 0.0
    %1078 = vmatpush.msra.mxu0 %v163
    %1079 = vmatpush.msra.mxu0 %v162
    %1080 = vmatmul.f32.gmra.mxu0 %v1062
    %v1081 = vpop.f32.mrf.mxu0
    %v1082 = vadd.f32 0.0, %v1081
    %1083 = vdwg.mxu0
    %v1084 = vmul.f32 %v1082, %v159
    %1085 = vrot.lane.b32.xlu0 %v983, 64
    %v1086 = vpop.permute.xlu0 %1085
    %v1087 = vsel %vm264, %v1086, 0
    %1089 = vmatpush.msra.mxu0 0.0
    %1090 = vmatpush.msra.mxu0 0.0
    %1091 = vmatpush.msra.mxu0 0.0
    %1092 = vmatpush.msra.mxu0 0.0
    %1093 = vmatpush.msra.mxu0 0.0
    %1094 = vmatpush.msra.mxu0 0.0
    %1095 = vmatpush.msra.mxu0 0.0
    %1096 = vmatpush.msra.mxu0 0.0
    %1097 = vmatpush.msra.mxu0 0.0
    %1098 = vmatpush.msra.mxu0 0.0
    %1099 = vmatpush.msra.mxu0 0.0
    %1100 = vmatpush.msra.mxu0 0.0
    %1101 = vmatpush.msra.mxu0 %v167
    %1102 = vmatpush.msra.mxu0 %v166
    %1103 = vmatpush.msra.mxu0 %v165
    %1104 = vmatpush.msra.mxu0 %v164
    %1105 = vmatmul.f32.gmra.mxu0 %v1087
    %v1106 = vpop.f32.mrf.mxu0
    %v1107 = vadd.f32 0.0, %v1106
    %1108 = vdwg.mxu0
    %v1109 = vmul.f32 %v1107, %v161
    %1110 = vmatpush.msra.mxu0 %v200
    %1111 = vmatpush.msra.mxu0 %v199
    %1112 = vmatpush.msra.mxu0 %v198
    %1113 = vmatpush.msra.mxu0 %v197
    %1114 = vmatpush.msra.mxu0 %v196
    %1115 = vmatpush.msra.mxu0 %v195
    %1116 = vmatpush.msra.mxu0 %v194
    %1117 = vmatpush.msra.mxu0 %v193
    %1118 = vmatpush.msra.mxu0 %v192
    %1119 = vmatpush.msra.mxu0 %v191
    %1120 = vmatpush.msra.mxu0 %v190
    %1121 = vmatpush.msra.mxu0 %v189
    %1122 = vmatpush.msra.mxu0 %v188
    %1123 = vmatpush.msra.mxu0 %v187
    %1124 = vmatpush.msra.mxu0 %v186
    %1125 = vmatpush.msra.mxu0 %v185
    %1126 = vmatmul.f32.gmra.mxu0 %v1109
    %v1127 = vpop.f32.mrf.mxu0
    %v1128 = vadd.f32 0.0, %v1127
    %1129 = vdwg.mxu0
    %1130 = vmatpush.msra.mxu0 %v183
    %1131 = vmatpush.msra.mxu0 %v182
    %1132 = vmatpush.msra.mxu0 %v181
    %1133 = vmatpush.msra.mxu0 %v180
    %1134 = vmatpush.msra.mxu0 %v179
    %1135 = vmatpush.msra.mxu0 %v178
    %1136 = vmatpush.msra.mxu0 %v177
    %1137 = vmatpush.msra.mxu0 %v176
    %1138 = vmatpush.msra.mxu0 %v175
    %1139 = vmatpush.msra.mxu0 %v174
    %1140 = vmatpush.msra.mxu0 %v173
    %1141 = vmatpush.msra.mxu0 %v172
    %1142 = vmatpush.msra.mxu0 %v171
    %1143 = vmatpush.msra.mxu0 %v170
    %1144 = vmatpush.msra.mxu0 %v169
    %1145 = vmatpush.msra.mxu0 %v168
    %1146 = vmatmul.f32.gmra.mxu0 %v1084
    %v1147 = vpop.f32.mrf.mxu0
    %v1148 = vadd.f32 %v1128, %v1147
    %1149 = vdwg.mxu0
    %v1150 = vadd.f32 %v1148, %v160
    %v1151 = vxor.u32 %v1150, 2147483648
    %v1152 = vmul.f32 %v1151, 1.442695
    %v1153 = vpow.pop %v1152
    %v1154 = vadd.f32 %v1153, 1.0
    %v1155 = vrcp.pop %v1154
    %v1156 = vmul.f32 %v1154, %v1155
    %v1157 = vsub.f32 1.0, %v1156
    %v1158 = vmul.f32 %v1155, %v1157
    %v1159 = vadd.f32 %v1155, %v1158
    %vm1160 = vweird.f32 %v1154
    %vm1161 = vweird.f32 %v1155
    %vm1162 = vmor %vm1160, %vm1161
    %v1163 = vsel %vm1162, %v1155, %v1159
    %v1164 = vand.u32 2147483647, %v1154
    %vm1165 = vcmp.eq.f32.partialorder %v1164, 8.507059e+37
    %v1166 = vand.u32 %v1154, 2147483648
    %v1167 = vor.u32 1.1754944e-38, %v1166
    %v1168 = vsel %vm1165, %v1167, %v1163
    %v1169 = vmul.f32 1.0, %v1168
    %v1170 = vtanh.pop %v1150
    %v1171 = vmul.f32 %v1169, %v977
    %1173 = vrot.lane.b32.xlu0 %v1170, 32
    %v1174 = vpop.permute.xlu0 %1173
    %v1176 = vmul.f32 %v1169, %v1174
    %1178 = vrot.lane.b32.xlu0 %v1176, 32
    %v1179 = vpop.permute.xlu0 %1178
    %v1181 = vadd.f32 %v1171, %v1179
    %v1182 = vtanh.pop %v1181
    %1184 = vrot.lane.b32.xlu0 %v1182, 32
    %v1185 = vpop.permute.xlu0 %1184
    %v1187 = vmul.f32 %v1169, %v1185
    %v1189 = vrot.slane %v1187, 1
    %v1190 = vrot.slane %v1187, 2
    %v1191 = vrot.slane %v1187, 3
    %v1192 = vrot.slane %v1187, 4
    %v1193 = vrot.slane %v1187, 5
    %v1194 = vrot.slane %v1187, 6
    %v1195 = vrot.slane %v1187, 7
    %v1196 = vperm.slane %v1187, 0
    %v1197 = vperm.slane %v1189, 0
    %v1198 = vperm.slane %v1190, 0
    %v1199 = vperm.slane %v1191, 0
    %v1200 = vperm.slane %v1192, 0
    %v1201 = vperm.slane %v1193, 0
    %v1202 = vperm.slane %v1194, 0
    %v1203 = vperm.slane %v1195, 0
    %1204 = vrot.lane.b32.xlu0 %v1196, 64
    %v1205 = vpop.permute.xlu0 %1204
    %1206 = vrot.lane.b32.xlu0 %v1197, 64
    %v1207 = vpop.permute.xlu0 %1206
    %1208 = vrot.lane.b32.xlu0 %v1198, 64
    %v1209 = vpop.permute.xlu0 %1208
    %1210 = vrot.lane.b32.xlu0 %v1199, 64
    %v1211 = vpop.permute.xlu0 %1210
    %1212 = vrot.lane.b32.xlu0 %v1200, 64
    %v1213 = vpop.permute.xlu0 %1212
    %1214 = vrot.lane.b32.xlu0 %v1201, 64
    %v1215 = vpop.permute.xlu0 %1214
    %1216 = vrot.lane.b32.xlu0 %v1202, 64
    %v1217 = vpop.permute.xlu0 %1216
    %1218 = vrot.lane.b32.xlu0 %v1203, 64
    %v1219 = vpop.permute.xlu0 %1218
    %1228 = vst.msk [vmem:[#allocation4 + $0x4] sm:$0x1] %vm411, %v1205
    %1229 = vst.msk [vmem:[#allocation4 + $0xc] sm:$0x1] %vm411, %v1207
    %1230 = vst.msk [vmem:[#allocation4 + $0x14] sm:$0x1] %vm411, %v1209
    %1231 = vst.msk [vmem:[#allocation4 + $0x1c] sm:$0x1] %vm411, %v1211
    %1232 = vst.msk [vmem:[#allocation4 + $0x24] sm:$0x1] %vm411, %v1213
    %1233 = vst.msk [vmem:[#allocation4 + $0x2c] sm:$0x1] %vm411, %v1215
    %1234 = vst.msk [vmem:[#allocation4 + $0x34] sm:$0x1] %vm411, %v1217
    %1235 = vst.msk [vmem:[#allocation4 + $0x3c] sm:$0x1] %vm411, %v1219
    %v1236 = vld [vmem:[#allocation5 + $0x5] sm:$0x1]
    %v1237 = vld [vmem:[#allocation5 + $0xd] sm:$0x1]
    %v1238 = vld [vmem:[#allocation5 + $0x15] sm:$0x1]
    %v1239 = vld [vmem:[#allocation5 + $0x1d] sm:$0x1]
    %v1240 = vld [vmem:[#allocation5 + $0x25] sm:$0x1]
    %v1241 = vld [vmem:[#allocation5 + $0x2d] sm:$0x1]
    %v1242 = vld [vmem:[#allocation5 + $0x35] sm:$0x1]
    %v1243 = vld [vmem:[#allocation5 + $0x3d] sm:$0x1]
    %v1252 = vrot.slane %v1237, 7
    %v1253 = vsel %vm220, %v1252, %v1236
    %v1254 = vrot.slane %v1238, 6
    %v1255 = vsel %vm223, %v1254, %v1253
    %v1256 = vrot.slane %v1239, 5
    %v1257 = vsel %vm226, %v1256, %v1255
    %v1258 = vrot.slane %v1240, 4
    %v1259 = vsel %vm229, %v1258, %v1257
    %v1260 = vrot.slane %v1241, 3
    %v1261 = vsel %vm232, %v1260, %v1259
    %v1262 = vrot.slane %v1242, 2
    %v1263 = vsel %vm235, %v1262, %v1261
    %v1264 = vrot.slane %v1243, 1
    %v1265 = vsel %vm238, %v1264, %v1263
    %v1266 = vsel %vm240, %v1265, 0
    %1268 = vmatpush.msra.mxu0 0.0
    %1269 = vmatpush.msra.mxu0 0.0
    %1270 = vmatpush.msra.mxu0 0.0
    %1271 = vmatpush.msra.mxu0 0.0
    %1272 = vmatpush.msra.mxu0 0.0
    %1273 = vmatpush.msra.mxu0 0.0
    %1274 = vmatpush.msra.mxu0 0.0
    %1275 = vmatpush.msra.mxu0 0.0
    %1276 = vmatpush.msra.mxu0 0.0
    %1277 = vmatpush.msra.mxu0 0.0
    %1278 = vmatpush.msra.mxu0 0.0
    %1279 = vmatpush.msra.mxu0 0.0
    %1280 = vmatpush.msra.mxu0 0.0
    %1281 = vmatpush.msra.mxu0 0.0
    %1282 = vmatpush.msra.mxu0 %v163
    %1283 = vmatpush.msra.mxu0 %v162
    %1284 = vmatmul.f32.gmra.mxu0 %v1266
    %v1285 = vpop.f32.mrf.mxu0
    %v1286 = vadd.f32 0.0, %v1285
    %1287 = vdwg.mxu0
    %v1288 = vmul.f32 %v1286, %v159
    %1289 = vrot.lane.b32.xlu0 %v1187, 64
    %v1290 = vpop.permute.xlu0 %1289
    %v1291 = vsel %vm264, %v1290, 0
    %1293 = vmatpush.msra.mxu0 0.0
    %1294 = vmatpush.msra.mxu0 0.0
    %1295 = vmatpush.msra.mxu0 0.0
    %1296 = vmatpush.msra.mxu0 0.0
    %1297 = vmatpush.msra.mxu0 0.0
    %1298 = vmatpush.msra.mxu0 0.0
    %1299 = vmatpush.msra.mxu0 0.0
    %1300 = vmatpush.msra.mxu0 0.0
    %1301 = vmatpush.msra.mxu0 0.0
    %1302 = vmatpush.msra.mxu0 0.0
    %1303 = vmatpush.msra.mxu0 0.0
    %1304 = vmatpush.msra.mxu0 0.0
    %1305 = vmatpush.msra.mxu0 %v167
    %1306 = vmatpush.msra.mxu0 %v166
    %1307 = vmatpush.msra.mxu0 %v165
    %1308 = vmatpush.msra.mxu0 %v164
    %1309 = vmatmul.f32.gmra.mxu0 %v1291
    %v1310 = vpop.f32.mrf.mxu0
    %v1311 = vadd.f32 0.0, %v1310
    %1312 = vdwg.mxu0
    %v1313 = vmul.f32 %v1311, %v161
    %1314 = vmatpush.msra.mxu0 %v200
    %1315 = vmatpush.msra.mxu0 %v199
    %1316 = vmatpush.msra.mxu0 %v198
    %1317 = vmatpush.msra.mxu0 %v197
    %1318 = vmatpush.msra.mxu0 %v196
    %1319 = vmatpush.msra.mxu0 %v195
    %1320 = vmatpush.msra.mxu0 %v194
    %1321 = vmatpush.msra.mxu0 %v193
    %1322 = vmatpush.msra.mxu0 %v192
    %1323 = vmatpush.msra.mxu0 %v191
    %1324 = vmatpush.msra.mxu0 %v190
    %1325 = vmatpush.msra.mxu0 %v189
    %1326 = vmatpush.msra.mxu0 %v188
    %1327 = vmatpush.msra.mxu0 %v187
    %1328 = vmatpush.msra.mxu0 %v186
    %1329 = vmatpush.msra.mxu0 %v185
    %1330 = vmatmul.f32.gmra.mxu0 %v1313
    %v1331 = vpop.f32.mrf.mxu0
    %v1332 = vadd.f32 0.0, %v1331
    %1333 = vdwg.mxu0
    %1334 = vmatpush.msra.mxu0 %v183
    %1335 = vmatpush.msra.mxu0 %v182
    %1336 = vmatpush.msra.mxu0 %v181
    %1337 = vmatpush.msra.mxu0 %v180
    %1338 = vmatpush.msra.mxu0 %v179
    %1339 = vmatpush.msra.mxu0 %v178
    %1340 = vmatpush.msra.mxu0 %v177
    %1341 = vmatpush.msra.mxu0 %v176
    %1342 = vmatpush.msra.mxu0 %v175
    %1343 = vmatpush.msra.mxu0 %v174
    %1344 = vmatpush.msra.mxu0 %v173
    %1345 = vmatpush.msra.mxu0 %v172
    %1346 = vmatpush.msra.mxu0 %v171
    %1347 = vmatpush.msra.mxu0 %v170
    %1348 = vmatpush.msra.mxu0 %v169
    %1349 = vmatpush.msra.mxu0 %v168
    %1350 = vmatmul.f32.gmra.mxu0 %v1288
    %v1351 = vpop.f32.mrf.mxu0
    %v1352 = vadd.f32 %v1332, %v1351
    %1353 = vdwg.mxu0
    %v1354 = vadd.f32 %v1352, %v160
    %v1355 = vxor.u32 %v1354, 2147483648
    %v1356 = vmul.f32 %v1355, 1.442695
    %v1357 = vpow.pop %v1356
    %v1358 = vadd.f32 %v1357, 1.0
    %v1359 = vrcp.pop %v1358
    %v1360 = vmul.f32 %v1358, %v1359
    %v1361 = vsub.f32 1.0, %v1360
    %v1362 = vmul.f32 %v1359, %v1361
    %v1363 = vadd.f32 %v1359, %v1362
    %vm1364 = vweird.f32 %v1358
    %vm1365 = vweird.f32 %v1359
    %vm1366 = vmor %vm1364, %vm1365
    %v1367 = vsel %vm1366, %v1359, %v1363
    %v1368 = vand.u32 2147483647, %v1358
    %vm1369 = vcmp.eq.f32.partialorder %v1368, 8.507059e+37
    %v1370 = vand.u32 %v1358, 2147483648
    %v1371 = vor.u32 1.1754944e-38, %v1370
    %v1372 = vsel %vm1369, %v1371, %v1367
    %v1373 = vmul.f32 1.0, %v1372
    %v1374 = vtanh.pop %v1354
    %v1375 = vmul.f32 %v1373, %v1181
    %1377 = vrot.lane.b32.xlu0 %v1374, 32
    %v1378 = vpop.permute.xlu0 %1377
    %v1380 = vmul.f32 %v1373, %v1378
    %1382 = vrot.lane.b32.xlu0 %v1380, 32
    %v1383 = vpop.permute.xlu0 %1382
    %v1385 = vadd.f32 %v1375, %v1383
    %v1386 = vtanh.pop %v1385
    %1388 = vrot.lane.b32.xlu0 %v1386, 32
    %v1389 = vpop.permute.xlu0 %1388
    %v1391 = vmul.f32 %v1373, %v1389
    %v1393 = vrot.slane %v1391, 1
    %v1394 = vrot.slane %v1391, 2
    %v1395 = vrot.slane %v1391, 3
    %v1396 = vrot.slane %v1391, 4
    %v1397 = vrot.slane %v1391, 5
    %v1398 = vrot.slane %v1391, 6
    %v1399 = vrot.slane %v1391, 7
    %v1400 = vperm.slane %v1391, 0
    %v1401 = vperm.slane %v1393, 0
    %v1402 = vperm.slane %v1394, 0
    %v1403 = vperm.slane %v1395, 0
    %v1404 = vperm.slane %v1396, 0
    %v1405 = vperm.slane %v1397, 0
    %v1406 = vperm.slane %v1398, 0
    %v1407 = vperm.slane %v1399, 0
    %1408 = vrot.lane.b32.xlu0 %v1400, 64
    %v1409 = vpop.permute.xlu0 %1408
    %1410 = vrot.lane.b32.xlu0 %v1401, 64
    %v1411 = vpop.permute.xlu0 %1410
    %1412 = vrot.lane.b32.xlu0 %v1402, 64
    %v1413 = vpop.permute.xlu0 %1412
    %1414 = vrot.lane.b32.xlu0 %v1403, 64
    %v1415 = vpop.permute.xlu0 %1414
    %1416 = vrot.lane.b32.xlu0 %v1404, 64
    %v1417 = vpop.permute.xlu0 %1416
    %1418 = vrot.lane.b32.xlu0 %v1405, 64
    %v1419 = vpop.permute.xlu0 %1418
    %1420 = vrot.lane.b32.xlu0 %v1406, 64
    %v1421 = vpop.permute.xlu0 %1420
    %1422 = vrot.lane.b32.xlu0 %v1407, 64
    %v1423 = vpop.permute.xlu0 %1422
    %1432 = vst.msk [vmem:[#allocation4 + $0x5] sm:$0x1] %vm411, %v1409
    %1433 = vst.msk [vmem:[#allocation4 + $0xd] sm:$0x1] %vm411, %v1411
    %1434 = vst.msk [vmem:[#allocation4 + $0x15] sm:$0x1] %vm411, %v1413
    %1435 = vst.msk [vmem:[#allocation4 + $0x1d] sm:$0x1] %vm411, %v1415
    %1436 = vst.msk [vmem:[#allocation4 + $0x25] sm:$0x1] %vm411, %v1417
    %1437 = vst.msk [vmem:[#allocation4 + $0x2d] sm:$0x1] %vm411, %v1419
    %1438 = vst.msk [vmem:[#allocation4 + $0x35] sm:$0x1] %vm411, %v1421
    %1439 = vst.msk [vmem:[#allocation4 + $0x3d] sm:$0x1] %vm411, %v1423
    %v1440 = vld [vmem:[#allocation5 + $0x6] sm:$0x1]
    %v1441 = vld [vmem:[#allocation5 + $0xe] sm:$0x1]
    %v1442 = vld [vmem:[#allocation5 + $0x16] sm:$0x1]
    %v1443 = vld [vmem:[#allocation5 + $0x1e] sm:$0x1]
    %v1444 = vld [vmem:[#allocation5 + $0x26] sm:$0x1]
    %v1445 = vld [vmem:[#allocation5 + $0x2e] sm:$0x1]
    %v1446 = vld [vmem:[#allocation5 + $0x36] sm:$0x1]
    %v1447 = vld [vmem:[#allocation5 + $0x3e] sm:$0x1]
    %v1456 = vrot.slane %v1441, 7
    %v1457 = vsel %vm220, %v1456, %v1440
    %v1458 = vrot.slane %v1442, 6
    %v1459 = vsel %vm223, %v1458, %v1457
    %v1460 = vrot.slane %v1443, 5
    %v1461 = vsel %vm226, %v1460, %v1459
    %v1462 = vrot.slane %v1444, 4
    %v1463 = vsel %vm229, %v1462, %v1461
    %v1464 = vrot.slane %v1445, 3
    %v1465 = vsel %vm232, %v1464, %v1463
    %v1466 = vrot.slane %v1446, 2
    %v1467 = vsel %vm235, %v1466, %v1465
    %v1468 = vrot.slane %v1447, 1
    %v1469 = vsel %vm238, %v1468, %v1467
    %v1470 = vsel %vm240, %v1469, 0
    %1472 = vmatpush.msra.mxu0 0.0
    %1473 = vmatpush.msra.mxu0 0.0
    %1474 = vmatpush.msra.mxu0 0.0
    %1475 = vmatpush.msra.mxu0 0.0
    %1476 = vmatpush.msra.mxu0 0.0
    %1477 = vmatpush.msra.mxu0 0.0
    %1478 = vmatpush.msra.mxu0 0.0
    %1479 = vmatpush.msra.mxu0 0.0
    %1480 = vmatpush.msra.mxu0 0.0
    %1481 = vmatpush.msra.mxu0 0.0
    %1482 = vmatpush.msra.mxu0 0.0
    %1483 = vmatpush.msra.mxu0 0.0
    %1484 = vmatpush.msra.mxu0 0.0
    %1485 = vmatpush.msra.mxu0 0.0
    %1486 = vmatpush.msra.mxu0 %v163
    %1487 = vmatpush.msra.mxu0 %v162
    %1488 = vmatmul.f32.gmra.mxu0 %v1470
    %v1489 = vpop.f32.mrf.mxu0
    %v1490 = vadd.f32 0.0, %v1489
    %1491 = vdwg.mxu0
    %v1492 = vmul.f32 %v1490, %v159
    %1493 = vrot.lane.b32.xlu0 %v1391, 64
    %v1494 = vpop.permute.xlu0 %1493
    %v1495 = vsel %vm264, %v1494, 0
    %1497 = vmatpush.msra.mxu0 0.0
    %1498 = vmatpush.msra.mxu0 0.0
    %1499 = vmatpush.msra.mxu0 0.0
    %1500 = vmatpush.msra.mxu0 0.0
    %1501 = vmatpush.msra.mxu0 0.0
    %1502 = vmatpush.msra.mxu0 0.0
    %1503 = vmatpush.msra.mxu0 0.0
    %1504 = vmatpush.msra.mxu0 0.0
    %1505 = vmatpush.msra.mxu0 0.0
    %1506 = vmatpush.msra.mxu0 0.0
    %1507 = vmatpush.msra.mxu0 0.0
    %1508 = vmatpush.msra.mxu0 0.0
    %1509 = vmatpush.msra.mxu0 %v167
    %1510 = vmatpush.msra.mxu0 %v166
    %1511 = vmatpush.msra.mxu0 %v165
    %1512 = vmatpush.msra.mxu0 %v164
    %1513 = vmatmul.f32.gmra.mxu0 %v1495
    %v1514 = vpop.f32.mrf.mxu0
    %v1515 = vadd.f32 0.0, %v1514
    %1516 = vdwg.mxu0
    %v1517 = vmul.f32 %v1515, %v161
    %1518 = vmatpush.msra.mxu0 %v200
    %1519 = vmatpush.msra.mxu0 %v199
    %1520 = vmatpush.msra.mxu0 %v198
    %1521 = vmatpush.msra.mxu0 %v197
    %1522 = vmatpush.msra.mxu0 %v196
    %1523 = vmatpush.msra.mxu0 %v195
    %1524 = vmatpush.msra.mxu0 %v194
    %1525 = vmatpush.msra.mxu0 %v193
    %1526 = vmatpush.msra.mxu0 %v192
    %1527 = vmatpush.msra.mxu0 %v191
    %1528 = vmatpush.msra.mxu0 %v190
    %1529 = vmatpush.msra.mxu0 %v189
    %1530 = vmatpush.msra.mxu0 %v188
    %1531 = vmatpush.msra.mxu0 %v187
    %1532 = vmatpush.msra.mxu0 %v186
    %1533 = vmatpush.msra.mxu0 %v185
    %1534 = vmatmul.f32.gmra.mxu0 %v1517
    %v1535 = vpop.f32.mrf.mxu0
    %v1536 = vadd.f32 0.0, %v1535
    %1537 = vdwg.mxu0
    %1538 = vmatpush.msra.mxu0 %v183
    %1539 = vmatpush.msra.mxu0 %v182
    %1540 = vmatpush.msra.mxu0 %v181
    %1541 = vmatpush.msra.mxu0 %v180
    %1542 = vmatpush.msra.mxu0 %v179
    %1543 = vmatpush.msra.mxu0 %v178
    %1544 = vmatpush.msra.mxu0 %v177
    %1545 = vmatpush.msra.mxu0 %v176
    %1546 = vmatpush.msra.mxu0 %v175
    %1547 = vmatpush.msra.mxu0 %v174
    %1548 = vmatpush.msra.mxu0 %v173
    %1549 = vmatpush.msra.mxu0 %v172
    %1550 = vmatpush.msra.mxu0 %v171
    %1551 = vmatpush.msra.mxu0 %v170
    %1552 = vmatpush.msra.mxu0 %v169
    %1553 = vmatpush.msra.mxu0 %v168
    %1554 = vmatmul.f32.gmra.mxu0 %v1492
    %v1555 = vpop.f32.mrf.mxu0
    %v1556 = vadd.f32 %v1536, %v1555
    %1557 = vdwg.mxu0
    %v1558 = vadd.f32 %v1556, %v160
    %v1559 = vxor.u32 %v1558, 2147483648
    %v1560 = vmul.f32 %v1559, 1.442695
    %v1561 = vpow.pop %v1560
    %v1562 = vadd.f32 %v1561, 1.0
    %v1563 = vrcp.pop %v1562
    %v1564 = vmul.f32 %v1562, %v1563
    %v1565 = vsub.f32 1.0, %v1564
    %v1566 = vmul.f32 %v1563, %v1565
    %v1567 = vadd.f32 %v1563, %v1566
    %vm1568 = vweird.f32 %v1562
    %vm1569 = vweird.f32 %v1563
    %vm1570 = vmor %vm1568, %vm1569
    %v1571 = vsel %vm1570, %v1563, %v1567
    %v1572 = vand.u32 2147483647, %v1562
    %vm1573 = vcmp.eq.f32.partialorder %v1572, 8.507059e+37
    %v1574 = vand.u32 %v1562, 2147483648
    %v1575 = vor.u32 1.1754944e-38, %v1574
    %v1576 = vsel %vm1573, %v1575, %v1571
    %v1577 = vmul.f32 1.0, %v1576
    %v1578 = vtanh.pop %v1558
    %v1579 = vmul.f32 %v1577, %v1385
    %1581 = vrot.lane.b32.xlu0 %v1578, 32
    %v1582 = vpop.permute.xlu0 %1581
    %v1584 = vmul.f32 %v1577, %v1582
    %1586 = vrot.lane.b32.xlu0 %v1584, 32
    %v1587 = vpop.permute.xlu0 %1586
    %v1589 = vadd.f32 %v1579, %v1587
    %v1590 = vtanh.pop %v1589
    %1592 = vrot.lane.b32.xlu0 %v1590, 32
    %v1593 = vpop.permute.xlu0 %1592
    %v1595 = vmul.f32 %v1577, %v1593
    %v1597 = vrot.slane %v1595, 1
    %v1598 = vrot.slane %v1595, 2
    %v1599 = vrot.slane %v1595, 3
    %v1600 = vrot.slane %v1595, 4
    %v1601 = vrot.slane %v1595, 5
    %v1602 = vrot.slane %v1595, 6
    %v1603 = vrot.slane %v1595, 7
    %v1604 = vperm.slane %v1595, 0
    %v1605 = vperm.slane %v1597, 0
    %v1606 = vperm.slane %v1598, 0
    %v1607 = vperm.slane %v1599, 0
    %v1608 = vperm.slane %v1600, 0
    %v1609 = vperm.slane %v1601, 0
    %v1610 = vperm.slane %v1602, 0
    %v1611 = vperm.slane %v1603, 0
    %1612 = vrot.lane.b32.xlu0 %v1604, 64
    %v1613 = vpop.permute.xlu0 %1612
    %1614 = vrot.lane.b32.xlu0 %v1605, 64
    %v1615 = vpop.permute.xlu0 %1614
    %1616 = vrot.lane.b32.xlu0 %v1606, 64
    %v1617 = vpop.permute.xlu0 %1616
    %1618 = vrot.lane.b32.xlu0 %v1607, 64
    %v1619 = vpop.permute.xlu0 %1618
    %1620 = vrot.lane.b32.xlu0 %v1608, 64
    %v1621 = vpop.permute.xlu0 %1620
    %1622 = vrot.lane.b32.xlu0 %v1609, 64
    %v1623 = vpop.permute.xlu0 %1622
    %1624 = vrot.lane.b32.xlu0 %v1610, 64
    %v1625 = vpop.permute.xlu0 %1624
    %1626 = vrot.lane.b32.xlu0 %v1611, 64
    %v1627 = vpop.permute.xlu0 %1626
    %1636 = vst.msk [vmem:[#allocation4 + $0x6] sm:$0x1] %vm411, %v1613
    %1637 = vst.msk [vmem:[#allocation4 + $0xe] sm:$0x1] %vm411, %v1615
    %1638 = vst.msk [vmem:[#allocation4 + $0x16] sm:$0x1] %vm411, %v1617
    %1639 = vst.msk [vmem:[#allocation4 + $0x1e] sm:$0x1] %vm411, %v1619
    %1640 = vst.msk [vmem:[#allocation4 + $0x26] sm:$0x1] %vm411, %v1621
    %1641 = vst.msk [vmem:[#allocation4 + $0x2e] sm:$0x1] %vm411, %v1623
    %1642 = vst.msk [vmem:[#allocation4 + $0x36] sm:$0x1] %vm411, %v1625
    %1643 = vst.msk [vmem:[#allocation4 + $0x3e] sm:$0x1] %vm411, %v1627
    %v1644 = vld [vmem:[#allocation5 + $0x7] sm:$0x1]
    %v1645 = vld [vmem:[#allocation5 + $0xf] sm:$0x1]
    %v1646 = vld [vmem:[#allocation5 + $0x17] sm:$0x1]
    %v1647 = vld [vmem:[#allocation5 + $0x1f] sm:$0x1]
    %v1648 = vld [vmem:[#allocation5 + $0x27] sm:$0x1]
    %v1649 = vld [vmem:[#allocation5 + $0x2f] sm:$0x1]
    %v1650 = vld [vmem:[#allocation5 + $0x37] sm:$0x1]
    %v1651 = vld [vmem:[#allocation5 + $0x3f] sm:$0x1]
    %v1660 = vrot.slane %v1645, 7
    %v1661 = vsel %vm220, %v1660, %v1644
    %v1662 = vrot.slane %v1646, 6
    %v1663 = vsel %vm223, %v1662, %v1661
    %v1664 = vrot.slane %v1647, 5
    %v1665 = vsel %vm226, %v1664, %v1663
    %v1666 = vrot.slane %v1648, 4
    %v1667 = vsel %vm229, %v1666, %v1665
    %v1668 = vrot.slane %v1649, 3
    %v1669 = vsel %vm232, %v1668, %v1667
    %v1670 = vrot.slane %v1650, 2
    %v1671 = vsel %vm235, %v1670, %v1669
    %v1672 = vrot.slane %v1651, 1
    %v1673 = vsel %vm238, %v1672, %v1671
    %v1674 = vsel %vm240, %v1673, 0
    %1676 = vmatpush.msra.mxu0 0.0
    %1677 = vmatpush.msra.mxu0 0.0
    %1678 = vmatpush.msra.mxu0 0.0
    %1679 = vmatpush.msra.mxu0 0.0
    %1680 = vmatpush.msra.mxu0 0.0
    %1681 = vmatpush.msra.mxu0 0.0
    %1682 = vmatpush.msra.mxu0 0.0
    %1683 = vmatpush.msra.mxu0 0.0
    %1684 = vmatpush.msra.mxu0 0.0
    %1685 = vmatpush.msra.mxu0 0.0
    %1686 = vmatpush.msra.mxu0 0.0
    %1687 = vmatpush.msra.mxu0 0.0
    %1688 = vmatpush.msra.mxu0 0.0
    %1689 = vmatpush.msra.mxu0 0.0
    %1690 = vmatpush.msra.mxu0 %v163
    %1691 = vmatpush.msra.mxu0 %v162
    %1692 = vmatmul.f32.gmra.mxu0 %v1674
    %v1693 = vpop.f32.mrf.mxu0
    %v1694 = vadd.f32 0.0, %v1693
    %1695 = vdwg.mxu0
    %v1696 = vmul.f32 %v1694, %v159
    %1697 = vrot.lane.b32.xlu0 %v1595, 64
    %v1698 = vpop.permute.xlu0 %1697
    %v1699 = vsel %vm264, %v1698, 0
    %1701 = vmatpush.msra.mxu0 0.0
    %1702 = vmatpush.msra.mxu0 0.0
    %1703 = vmatpush.msra.mxu0 0.0
    %1704 = vmatpush.msra.mxu0 0.0
    %1705 = vmatpush.msra.mxu0 0.0
    %1706 = vmatpush.msra.mxu0 0.0
    %1707 = vmatpush.msra.mxu0 0.0
    %1708 = vmatpush.msra.mxu0 0.0
    %1709 = vmatpush.msra.mxu0 0.0
    %1710 = vmatpush.msra.mxu0 0.0
    %1711 = vmatpush.msra.mxu0 0.0
    %1712 = vmatpush.msra.mxu0 0.0
    %1713 = vmatpush.msra.mxu0 %v167
    %1714 = vmatpush.msra.mxu0 %v166
    %1715 = vmatpush.msra.mxu0 %v165
    %1716 = vmatpush.msra.mxu0 %v164
    %1717 = vmatmul.f32.gmra.mxu0 %v1699
    %v1718 = vpop.f32.mrf.mxu0
    %v1719 = vadd.f32 0.0, %v1718
    %1720 = vdwg.mxu0
    %v1721 = vmul.f32 %v1719, %v161
    %1722 = vmatpush.msra.mxu0 %v200
    %1723 = vmatpush.msra.mxu0 %v199
    %1724 = vmatpush.msra.mxu0 %v198
    %1725 = vmatpush.msra.mxu0 %v197
    %1726 = vmatpush.msra.mxu0 %v196
    %1727 = vmatpush.msra.mxu0 %v195
    %1728 = vmatpush.msra.mxu0 %v194
    %1729 = vmatpush.msra.mxu0 %v193
    %1730 = vmatpush.msra.mxu0 %v192
    %1731 = vmatpush.msra.mxu0 %v191
    %1732 = vmatpush.msra.mxu0 %v190
    %1733 = vmatpush.msra.mxu0 %v189
    %1734 = vmatpush.msra.mxu0 %v188
    %1735 = vmatpush.msra.mxu0 %v187
    %1736 = vmatpush.msra.mxu0 %v186
    %1737 = vmatpush.msra.mxu0 %v185
    %1738 = vmatmul.f32.gmra.mxu0 %v1721
    %v1739 = vpop.f32.mrf.mxu0
    %v1740 = vadd.f32 0.0, %v1739
    %1741 = vdwg.mxu0
    %1742 = vmatpush.msra.mxu0 %v183
    %1743 = vmatpush.msra.mxu0 %v182
    %1744 = vmatpush.msra.mxu0 %v181
    %1745 = vmatpush.msra.mxu0 %v180
    %1746 = vmatpush.msra.mxu0 %v179
    %1747 = vmatpush.msra.mxu0 %v178
    %1748 = vmatpush.msra.mxu0 %v177
    %1749 = vmatpush.msra.mxu0 %v176
    %1750 = vmatpush.msra.mxu0 %v175
    %1751 = vmatpush.msra.mxu0 %v174
    %1752 = vmatpush.msra.mxu0 %v173
    %1753 = vmatpush.msra.mxu0 %v172
    %1754 = vmatpush.msra.mxu0 %v171
    %1755 = vmatpush.msra.mxu0 %v170
    %1756 = vmatpush.msra.mxu0 %v169
    %1757 = vmatpush.msra.mxu0 %v168
    %1758 = vmatmul.f32.gmra.mxu0 %v1696
    %v1759 = vpop.f32.mrf.mxu0
    %v1760 = vadd.f32 %v1740, %v1759
    %1761 = vdwg.mxu0
    %v1762 = vadd.f32 %v1760, %v160
    %v1763 = vxor.u32 %v1762, 2147483648
    %v1764 = vmul.f32 %v1763, 1.442695
    %v1765 = vpow.pop %v1764
    %v1766 = vadd.f32 %v1765, 1.0
    %v1767 = vrcp.pop %v1766
    %v1768 = vmul.f32 %v1766, %v1767
    %v1769 = vsub.f32 1.0, %v1768
    %v1770 = vmul.f32 %v1767, %v1769
    %v1771 = vadd.f32 %v1767, %v1770
    %vm1772 = vweird.f32 %v1766
    %vm1773 = vweird.f32 %v1767
    %vm1774 = vmor %vm1772, %vm1773
    %v1775 = vsel %vm1774, %v1767, %v1771
    %v1776 = vand.u32 2147483647, %v1766
    %vm1777 = vcmp.eq.f32.partialorder %v1776, 8.507059e+37
    %v1778 = vand.u32 %v1766, 2147483648
    %v1779 = vor.u32 1.1754944e-38, %v1778
    %v1780 = vsel %vm1777, %v1779, %v1775
    %v1781 = vmul.f32 1.0, %v1780
    %v1782 = vtanh.pop %v1762
    %v1783 = vmul.f32 %v1781, %v1589
    %1785 = vrot.lane.b32.xlu0 %v1782, 32
    %v1786 = vpop.permute.xlu0 %1785
    %v1788 = vmul.f32 %v1781, %v1786
    %1790 = vrot.lane.b32.xlu0 %v1788, 32
    %v1791 = vpop.permute.xlu0 %1790
    %v1793 = vadd.f32 %v1783, %v1791
    %v1794 = vtanh.pop %v1793
    %1796 = vrot.lane.b32.xlu0 %v1794, 32
    %v1797 = vpop.permute.xlu0 %1796
    %v1799 = vmul.f32 %v1781, %v1797
    %v1801 = vrot.slane %v1799, 1
    %v1802 = vrot.slane %v1799, 2
    %v1803 = vrot.slane %v1799, 3
    %v1804 = vrot.slane %v1799, 4
    %v1805 = vrot.slane %v1799, 5
    %v1806 = vrot.slane %v1799, 6
    %v1807 = vrot.slane %v1799, 7
    %v1808 = vperm.slane %v1799, 0
    %v1809 = vperm.slane %v1801, 0
    %v1810 = vperm.slane %v1802, 0
    %v1811 = vperm.slane %v1803, 0
    %v1812 = vperm.slane %v1804, 0
    %v1813 = vperm.slane %v1805, 0
    %v1814 = vperm.slane %v1806, 0
    %v1815 = vperm.slane %v1807, 0
    %1816 = vrot.lane.b32.xlu0 %v1808, 64
    %v1817 = vpop.permute.xlu0 %1816
    %1818 = vrot.lane.b32.xlu0 %v1809, 64
    %v1819 = vpop.permute.xlu0 %1818
    %1820 = vrot.lane.b32.xlu0 %v1810, 64
    %v1821 = vpop.permute.xlu0 %1820
    %1822 = vrot.lane.b32.xlu0 %v1811, 64
    %v1823 = vpop.permute.xlu0 %1822
    %1824 = vrot.lane.b32.xlu0 %v1812, 64
    %v1825 = vpop.permute.xlu0 %1824
    %1826 = vrot.lane.b32.xlu0 %v1813, 64
    %v1827 = vpop.permute.xlu0 %1826
    %1828 = vrot.lane.b32.xlu0 %v1814, 64
    %v1829 = vpop.permute.xlu0 %1828
    %1830 = vrot.lane.b32.xlu0 %v1815, 64
    %v1831 = vpop.permute.xlu0 %1830
    %1840 = vst.msk [vmem:[#allocation4 + $0x7] sm:$0x1] %vm411, %v1817
    %1841 = vst.msk [vmem:[#allocation4 + $0xf] sm:$0x1] %vm411, %v1819
    %1842 = vst.msk [vmem:[#allocation4 + $0x17] sm:$0x1] %vm411, %v1821
    %1843 = vst.msk [vmem:[#allocation4 + $0x1f] sm:$0x1] %vm411, %v1823
    %1844 = vst.msk [vmem:[#allocation4 + $0x27] sm:$0x1] %vm411, %v1825
    %1845 = vst.msk [vmem:[#allocation4 + $0x2f] sm:$0x1] %vm411, %v1827
    %1846 = vst.msk [vmem:[#allocation4 + $0x37] sm:$0x1] %vm411, %v1829
    %1847 = vst.msk [vmem:[#allocation4 + $0x3f] sm:$0x1] %vm411, %v1831
    %1848 = vrot.lane.b32.xlu0 %v1799, 64
    %v1849 = vpop.permute.xlu0 %1848
    %1851 = vst.msk [vmem:[#allocation2] sm:$0xff] %vm264, %v1849
    %1853 = vrot.lane.b32.xlu0 %v1793, 96
    %v1854 = vpop.permute.xlu0 %1853
    %1856 = vst.msk [vmem:[#allocation3] sm:$0xff] %vm264, %v1854
    %v1857 = vld [vmem:[#allocation4] sm:$0xff]
    %v1858 = vld [vmem:[#allocation4 + $0x8] sm:$0xff]
    %v1859 = vld [vmem:[#allocation4 + $0x10] sm:$0xff]
    %v1860 = vld [vmem:[#allocation4 + $0x18] sm:$0xff]
    %v1861 = vld [vmem:[#allocation4 + $0x20] sm:$0xff]
    %v1862 = vld [vmem:[#allocation4 + $0x28] sm:$0xff]
    %v1863 = vld [vmem:[#allocation4 + $0x30] sm:$0xff]
    %v1864 = vld [vmem:[#allocation4 + $0x38] sm:$0xff]
    %v1865 = vld [vmem:[#allocation17] sm:$0xff]
    %v1866 = vld [vmem:[#allocation17 + $0x8] sm:$0xff]
    %v1867 = vld [vmem:[#allocation17 + $0x10] sm:$0xff]
    %v1868 = vld [vmem:[#allocation17 + $0x18] sm:$0xff]
    %v1869 = vld [vmem:[%s8] sm:$0x1]
    %v1871 = vperm.slane %v1869, 0
    %v1874 = vsel %vm264, %v1857, 0
    %v1877 = vsel %vm264, %v1858, 0
    %v1880 = vsel %vm264, %v1859, 0
    %v1883 = vsel %vm264, %v1860, 0
    %v1886 = vsel %vm264, %v1861, 0
    %v1889 = vsel %vm264, %v1862, 0
    %v1892 = vsel %vm264, %v1863, 0
    %v1895 = vsel %vm264, %v1864, 0
    %1897 = vmatpush.msra.mxu0 0.0
    %1898 = vmatpush.msra.mxu0 0.0
    %1899 = vmatpush.msra.mxu0 0.0
    %1900 = vmatpush.msra.mxu0 0.0
    %1901 = vmatpush.msra.mxu0 0.0
    %1902 = vmatpush.msra.mxu0 0.0
    %1903 = vmatpush.msra.mxu0 0.0
    %1904 = vmatpush.msra.mxu0 0.0
    %1905 = vmatpush.msra.mxu0 0.0
    %1906 = vmatpush.msra.mxu0 0.0
    %1907 = vmatpush.msra.mxu0 0.0
    %1908 = vmatpush.msra.mxu0 0.0
    %1909 = vmatpush.msra.mxu0 %v1868
    %1910 = vmatpush.msra.mxu0 %v1867
    %1911 = vmatpush.msra.mxu0 %v1866
    %1912 = vmatpush.msra.mxu0 %v1865
    %1913 = vmatmul.f32.gmra.mxu0 %v1874
    %v1914 = vpop.f32.mrf.mxu0
    %v1915 = vadd.f32 %v1871, %v1914
    %1916 = vmatmul.f32.gmra.mxu0 %v1877
    %v1917 = vpop.f32.mrf.mxu0
    %v1918 = vadd.f32 %v1871, %v1917
    %1919 = vmatmul.f32.gmra.mxu0 %v1880
    %v1920 = vpop.f32.mrf.mxu0
    %v1921 = vadd.f32 %v1871, %v1920
    %1922 = vmatmul.f32.gmra.mxu0 %v1883
    %v1923 = vpop.f32.mrf.mxu0
    %v1924 = vadd.f32 %v1871, %v1923
    %1925 = vmatmul.f32.gmra.mxu0 %v1886
    %v1926 = vpop.f32.mrf.mxu0
    %v1927 = vadd.f32 %v1871, %v1926
    %1928 = vmatmul.f32.gmra.mxu0 %v1889
    %v1929 = vpop.f32.mrf.mxu0
    %v1930 = vadd.f32 %v1871, %v1929
    %1931 = vmatmul.f32.gmra.mxu0 %v1892
    %v1932 = vpop.f32.mrf.mxu0
    %v1933 = vadd.f32 %v1871, %v1932
    %1934 = vmatmul.f32.gmra.mxu0 %v1895
    %v1935 = vpop.f32.mrf.mxu0
    %v1936 = vadd.f32 %v1871, %v1935
    %1937 = vdwg.mxu0
    %1938 = vmax.xlane.f32.xlu0 %v1915
    %v1939 = vpop.xlane.xlu0 %1938
    %1940 = vmax.xlane.f32.xlu0 %v1918
    %v1941 = vpop.xlane.xlu0 %1940
    %1942 = vmax.xlane.f32.xlu0 %v1921
    %v1943 = vpop.xlane.xlu0 %1942
    %1944 = vmax.xlane.f32.xlu0 %v1924
    %v1945 = vpop.xlane.xlu0 %1944
    %1946 = vmax.xlane.f32.xlu0 %v1927
    %v1947 = vpop.xlane.xlu0 %1946
    %1948 = vmax.xlane.f32.xlu0 %v1930
    %v1949 = vpop.xlane.xlu0 %1948
    %1950 = vmax.xlane.f32.xlu0 %v1933
    %v1951 = vpop.xlane.xlu0 %1950
    %1952 = vmax.xlane.f32.xlu0 %v1936
    %v1953 = vpop.xlane.xlu0 %1952
    %v1954 = vsub.f32 %v1915, %v1939
    %v1955 = vsub.f32 %v1918, %v1941
    %v1956 = vsub.f32 %v1921, %v1943
    %v1957 = vsub.f32 %v1924, %v1945
    %v1958 = vsub.f32 %v1927, %v1947
    %v1959 = vsub.f32 %v1930, %v1949
    %v1960 = vsub.f32 %v1933, %v1951
    %v1961 = vsub.f32 %v1936, %v1953
    %v1962 = vmul.f32 %v1954, 1.442695
    %v1963 = vpow.pop %v1962
    %v1964 = vmul.f32 %v1955, 1.442695
    %v1965 = vpow.pop %v1964
    %v1966 = vmul.f32 %v1956, 1.442695
    %v1967 = vpow.pop %v1966
    %v1968 = vmul.f32 %v1957, 1.442695
    %v1969 = vpow.pop %v1968
    %v1970 = vmul.f32 %v1958, 1.442695
    %v1971 = vpow.pop %v1970
    %v1972 = vmul.f32 %v1959, 1.442695
    %v1973 = vpow.pop %v1972
    %v1974 = vmul.f32 %v1960, 1.442695
    %v1975 = vpow.pop %v1974
    %v1976 = vmul.f32 %v1961, 1.442695
    %v1977 = vpow.pop %v1976
    %1978 = vadd.xlane.f32.xlu0 %v1963
    %v1979 = vpop.xlane.xlu0 %1978
    %1980 = vadd.xlane.f32.xlu0 %v1965
    %v1981 = vpop.xlane.xlu0 %1980
    %1982 = vadd.xlane.f32.xlu0 %v1967
    %v1983 = vpop.xlane.xlu0 %1982
    %1984 = vadd.xlane.f32.xlu0 %v1969
    %v1985 = vpop.xlane.xlu0 %1984
    %1986 = vadd.xlane.f32.xlu0 %v1971
    %v1987 = vpop.xlane.xlu0 %1986
    %1988 = vadd.xlane.f32.xlu0 %v1973
    %v1989 = vpop.xlane.xlu0 %1988
    %1990 = vadd.xlane.f32.xlu0 %v1975
    %v1991 = vpop.xlane.xlu0 %1990
    %1992 = vadd.xlane.f32.xlu0 %v1977
    %v1993 = vpop.xlane.xlu0 %1992
    %v1994 = vlog2.pop %v1979
    %v1995 = vmul.f32 %v1994, 0.6931472
    %v1996 = vlog2.pop %v1981
    %v1997 = vmul.f32 %v1996, 0.6931472
    %v1998 = vlog2.pop %v1983
    %v1999 = vmul.f32 %v1998, 0.6931472
    %v2000 = vlog2.pop %v1985
    %v2001 = vmul.f32 %v2000, 0.6931472
    %v2002 = vlog2.pop %v1987
    %v2003 = vmul.f32 %v2002, 0.6931472
    %v2004 = vlog2.pop %v1989
    %v2005 = vmul.f32 %v2004, 0.6931472
    %v2006 = vlog2.pop %v1991
    %v2007 = vmul.f32 %v2006, 0.6931472
    %v2008 = vlog2.pop %v1993
    %v2009 = vmul.f32 %v2008, 0.6931472
    %v2010 = vsub.f32 %v1954, %v1995
    %v2011 = vsub.f32 %v1955, %v1997
    %v2012 = vsub.f32 %v1956, %v1999
    %v2013 = vsub.f32 %v1957, %v2001
    %v2014 = vsub.f32 %v1958, %v2003
    %v2015 = vsub.f32 %v1959, %v2005
    %v2016 = vsub.f32 %v1960, %v2007
    %v2017 = vsub.f32 %v1961, %v2009
    %2018 = vst [vmem:[#allocation19] sm:$0xff] %v2010
    %2019 = vst [vmem:[#allocation19 + $0x8] sm:$0xff] %v2011
    %2020 = vst [vmem:[#allocation19 + $0x10] sm:$0xff] %v2012
    %2021 = vst [vmem:[#allocation19 + $0x18] sm:$0xff] %v2013
    %2022 = vst [vmem:[#allocation19 + $0x20] sm:$0xff] %v2014
    %2023 = vst [vmem:[#allocation19 + $0x28] sm:$0xff] %v2015
    %2024 = vst [vmem:[#allocation19 + $0x30] sm:$0xff] %v2016
    %2025 = vst [vmem:[#allocation19 + $0x38] sm:$0xff] %v2017
    // Predicated region
    $region74: #{tpu_custom_call.1} parent=1 // pred_check
      _
    $region75: #{tpu_custom_call.1} parent=1 // pred_check_branch
      %2027 = sbr.rel (0) target = $region77
    $region76: #{tpu_custom_call.1} parent=1 // pred_region
      %2029 = vsyncadd [#allocation7], 0
      %s2030 = sshll.u32 [#allocation19], 4
      %s2031 = int_to_ptr.vmem [resolvable:$true] %s2030
      %s2032 = sshll.u32 %s9, 4
      %s2033 = int_to_ptr.hbm [resolvable:$true] %s2032
      %2038 = dma.vmem_to_hbm [thread:$0]  %s2031, 1024, %s2033, [#allocation7], 128, 128, 8
    $region77: #{tpu_custom_call.1} parent=1 // pred_fallthru
      _
    // Predicated region
    $region78: #{tpu_custom_call.1} parent=1 // pred_check
      _
    $region79: #{tpu_custom_call.1} parent=1 // pred_check_branch
      %2040 = sbr.rel (0) target = $region81
    $region80: #{tpu_custom_call.1} parent=1 // pred_region
      %2042 = dma.done [#allocation7], 1024
    $region81: #{tpu_custom_call.1} parent=1 // pred_fallthru
      _
    %2043 = vsyncpa [#allocation6], 1
    %2044 = vsyncpa [#allocation9], 1
    %2045 = vsyncpa [#allocation12], 1
    %2046 = vsyncpa [#allocation15], 1
    %2047 = vsyncpa [#allocation18], 1
    %2048 = vsyncpa [#allocation7], 1

</llo_original>
